<compile_context>
chip_gen: v6e
topology: v6e:2x2x1
jax: 0.10.0
libtpu: 0.0.40
codegen_flags: <defaults>
</compile_context>

<pallas_src>
import functools

import jax
import jax.numpy as jnp
import numpy as np
from jax import lax
from jax.experimental import pallas as pl
from jax.experimental.pallas import tpu as pltpu


def trans_conv_prelu(x_nchw, weight, bias, alpha, *, stride, padding,
                     output_padding):
    """ConvTranspose2d (torch weight layout [Cin, Cout, KH, KW]) + PReLU, NCHW in/out."""
    N, Cin, H, W = map(int, x_nchw.shape)
    Cin_w, Cout, KH, KW = map(int, weight.shape)
    assert Cin == Cin_w
    assert KH == KW, "square kernel expected (module passes a single int)"
    K = KH
    s, p, op = int(stride), int(padding), int(output_padding)
    assert 0 <= op < s, "torch requires output_padding < stride"
    # TODO(synk): padding > kernel_size - 1 would require output cropping, unsupported here.
    assert K - 1 - p >= 0
    pb = K - 1 - p

    OH = (H - 1) * s - 2 * p + K + op
    OW = (W - 1) * s - 2 * p + K + op
    s2 = s * s
    Tmax = -(-K // s)            # taps per polyphase sub-kernel (per spatial dim)
    OHp = -(-OH // s)            # per-phase output rows (padded up; cropped at the end)
    OWp = -(-OW // s)

    # ---- static polyphase index math (numpy, trace time) ----------------------
    q = np.arange(s)
    r = (pb - q) % s                        # flipped-tap offset for output phase q
    d = (q + r - pb) // s                   # base input offset for output phase q
    t = np.arange(Tmax)
    ktap = r[:, None] + t[None, :] * s      # [s, Tmax] flipped-kernel tap index
    tap_valid = ktap < K                    # taps past the kernel edge are skipped
    ktap_c = np.minimum(ktap, K - 1)

    lo = int(d.min())
    Lh = max(0, -lo)
    Lw = max(0, -lo)
    Rh = max(0, int(d.max()) + (Tmax - 1) + (OHp - 1) - (H - 1))
    Rw = max(0, int(d.max()) + (Tmax - 1) + (OWp - 1) - (W - 1))
    Hp, Wp = H + Lh + Rh, W + Lw + Rw

    # ---- tiny wrapper-side prep (input-sized only; no 16x im2col slab) --------
    xpad = jnp.pad(x_nchw.astype(jnp.float32),
                   ((0, 0), (0, 0), (Lh, Rh), (Lw, Rw)))

    # per-(phase, tap) sub-kernels, flattened for SMEM scalar access:
    # layout [qh, qw, th, tw, Cout, Cin] row-major.
    wflip = weight[:, :, ::-1, ::-1]                          # [Cin, Cout, kh', kw']
    wsel = wflip[:, :, ktap_c[:, :, None, None], ktap_c[None, None, :, :]]
    # wsel: [Cin, Cout, qh, th, qw, tw]
    wsel = jnp.transpose(wsel, (2, 4, 3, 5, 1, 0))            # [qh, qw, th, tw, Cout, Cin]
    wflat = wsel.reshape(-1).astype(jnp.float32)

    bias_v = jnp.asarray(bias, jnp.float32).reshape(Cout)
    alpha_v = jnp.asarray(alpha, jnp.float32).reshape(-1)     # scalar or per-channel PReLU
    n_alpha = int(alpha_v.shape[0])
    assert n_alpha in (1, Cout), "PReLU expects 1 or Cout parameters"

    d_i = [int(v) for v in d]

    def kernel(w_ref, b_ref, a_ref, x_ref, o_ref):
        # w_ref: (s2*Tmax*Tmax*Cout*Cin,) f32 SMEM   per-phase tap weights
        # b_ref: (Cout,)                  f32 SMEM   bias (added in f32)
        # a_ref: (1,) or (Cout,)          f32 SMEM   PReLU slope(s)
        # x_ref: (1, Cin, Hp, Wp)         f32 VMEM   padded input image (one batch)
        # o_ref: (1, s2, Cout, OHp, OWp)             per-phase outputs
        for qh in range(s):
            for qw in range(s):
                ph = qh * s + qw
                # f32 accumulators initialized with the bias (torch-precision bias add)
                acc = [jnp.full((OHp, OWp), b_ref[co], jnp.float32)
                       for co in range(Cout)]
                for th in range(Tmax):
                    if not bool(tap_valid[qh, th]):
                        continue
                    a0 = d_i[qh] + th + Lh
                    for tw in range(Tmax):
                        if not bool(tap_valid[qw, tw]):
                            continue
                        b0 = d_i[qw] + tw + Lw
                        for cin in range(Cin):
                            win = x_ref[0, cin, a0:a0 + OHp, b0:b0 + OWp]
                            base = (((ph * Tmax + th) * Tmax + tw) * Cout) * Cin + cin
                            for co in range(Cout):
                                acc[co] = acc[co] + w_ref[base + co * Cin] * win
                for co in range(Cout):
                    v = acc[co]
                    al = a_ref[co if n_alpha == Cout else 0]
                    o_ref[0, ph, co] = jnp.where(v >= 0.0, v, al * v).astype(o_ref.dtype)

    out_ph = pl.pallas_call(
        kernel,
        out_shape=jax.ShapeDtypeStruct((N, s2, Cout, OHp, OWp), x_nchw.dtype),
        grid=(N,),
        in_specs=[
            pl.BlockSpec(memory_space=pltpu.MemorySpace.SMEM),          # weights (resident)
            pl.BlockSpec(memory_space=pltpu.MemorySpace.SMEM),          # bias
            pl.BlockSpec(memory_space=pltpu.MemorySpace.SMEM),          # alpha
            pl.BlockSpec((1, Cin, Hp, Wp), lambda n: (n, 0, 0, 0)),     # padded image
        ],
        out_specs=pl.BlockSpec((1, s2, Cout, OHp, OWp),
                               lambda n: (n, 0, 0, 0, 0)),
        compiler_params=pltpu.CompilerParams(
            dimension_semantics=("parallel",)),
    )(wflat, bias_v, alpha_v, xpad)

    # ---- depth-to-space interleave of the s*s phases -> NCHW ------------------
    # TODO(synk): fusing this into the kernel would need strided output DMA,
    # which BlockSpec cannot express; kept as an output-sized XLA pass.
    out = out_ph.reshape(N, s, s, Cout, OHp, OWp)        # [N, qh, qw, Cout, jh, jw]
    out = jnp.transpose(out, (0, 3, 4, 1, 5, 2))         # [N, Cout, jh, qh, jw, qw]
    out = out.reshape(N, Cout, OHp * s, OWp * s)
    return out[:, :, :OH, :OW]


if __name__ == "__main__":
    key = jax.random.PRNGKey(0)
    # small shapes consistent with a JSCC decoder upsampling block
    N, Cin, H, W = 2, 4, 16, 16
    Cout, K, s, p, op = 8, 3, 2, 1, 1

    kx, kw, kb = jax.random.split(key, 3)
    x = jax.random.normal(kx, (N, Cin, H, W), jnp.float32)

    # deterministic xavier-normal style init (the module's `activate == nn.PReLU()`
    # check is always False for fresh instances, so it falls through to xavier)
    fan_in, fan_out = Cout * K * K, Cin * K * K
    std = (2.0 / (fan_in + fan_out)) ** 0.5
    weight = std * jax.random.normal(kw, (Cin, Cout, K, K), jnp.float32)  # ConvTranspose2d weight
    bias = 0.1 * jax.random.normal(kb, (Cout,), jnp.float32)
    alpha = 0.25                                          # nn.PReLU() default

    fwd = jax.jit(functools.partial(trans_conv_prelu, stride=s, padding=p,
                                    output_padding=op))
    out = jax.block_until_ready(fwd(x, weight, bias, alpha))

    # cross-check against XLA's transposed conv (== torch ConvTranspose2d) + PReLU (f32)
    w_oihw = jnp.transpose(weight[:, :, ::-1, ::-1], (1, 0, 2, 3))
    ref = lax.conv_general_dilated(
        x, w_oihw, window_strides=(1, 1),
        padding=[(K - 1 - p, K - 1 - p + op)] * 2,
        lhs_dilation=(s, s),
        dimension_numbers=("NCHW", "OIHW", "NCHW"))
    ref = ref + bias[None, :, None, None]
    ref = jnp.where(ref >= 0, ref, alpha * ref)

    expected_hw = (H - 1) * s - 2 * p + K + op
    assert out.shape == (N, Cout, expected_hw, expected_hw), out.shape
    # full f32 pipeline now -> tight tolerance
    np.testing.assert_allclose(np.asarray(out), np.asarray(ref), atol=1e-5, rtol=1e-4)
    print("KERNEL_OK")
</pallas_src>

<mosaic_0001>
module attributes {stable_mosaic.version = 11 : i64} {
  func.func @kernel(%arg0: i32, %arg1: memref<512xf32, #tpu.memory_space<smem>>, %arg2: memref<8xf32, #tpu.memory_space<smem>>, %arg3: memref<1xf32, #tpu.memory_space<smem>>, %arg4: memref<1x4x17x17xf32, #tpu.memory_space<vmem>>, %arg5: memref<1x4x8x16x16xf32, #tpu.memory_space<vmem>>) attributes {dimension_semantics = [#tpu.dimension_semantics<parallel>], iteration_bounds = array<i64: 2>, scalar_prefetch = 0 : i64, scratch_operands = 0 : i64, tpu.core_type = #tpu.core_type<tc>, window_params = [{transform_indices = @transform_0, window_bounds = array<i64: 512>}, {transform_indices = @transform_1, window_bounds = array<i64: 8>}, {transform_indices = @transform_2, window_bounds = array<i64: 1>}, {transform_indices = @transform_3, window_bounds = array<i64: 1, 4, 17, 17>}, {transform_indices = @transform_4, window_bounds = array<i64: 1, 4, 8, 16, 16>}]} {
    %c0 = arith.constant 0 : index
    %0 = memref.load %arg2[%c0] : memref<8xf32, #tpu.memory_space<smem>>
    %1 = vector.broadcast %0 : f32 to vector<16x16xf32>
    %c1 = arith.constant 1 : index
    %2 = memref.load %arg2[%c1] : memref<8xf32, #tpu.memory_space<smem>>
    %3 = vector.broadcast %2 : f32 to vector<16x16xf32>
    %c2 = arith.constant 2 : index
    %4 = memref.load %arg2[%c2] : memref<8xf32, #tpu.memory_space<smem>>
    %5 = vector.broadcast %4 : f32 to vector<16x16xf32>
    %c3 = arith.constant 3 : index
    %6 = memref.load %arg2[%c3] : memref<8xf32, #tpu.memory_space<smem>>
    %7 = vector.broadcast %6 : f32 to vector<16x16xf32>
    %c4 = arith.constant 4 : index
    %8 = memref.load %arg2[%c4] : memref<8xf32, #tpu.memory_space<smem>>
    %9 = vector.broadcast %8 : f32 to vector<16x16xf32>
    %c5 = arith.constant 5 : index
    %10 = memref.load %arg2[%c5] : memref<8xf32, #tpu.memory_space<smem>>
    %11 = vector.broadcast %10 : f32 to vector<16x16xf32>
    %c6 = arith.constant 6 : index
    %12 = memref.load %arg2[%c6] : memref<8xf32, #tpu.memory_space<smem>>
    %13 = vector.broadcast %12 : f32 to vector<16x16xf32>
    %c7 = arith.constant 7 : index
    %14 = memref.load %arg2[%c7] : memref<8xf32, #tpu.memory_space<smem>>
    %15 = vector.broadcast %14 : f32 to vector<16x16xf32>
    %c0_0 = arith.constant 0 : index
    %c0_1 = arith.constant 0 : index
    %c0_2 = arith.constant 0 : index
    %c0_3 = arith.constant 0 : index
    %16 = vector.load %arg4[%c0_0, %c0_1, %c0_2, %c0_3] : memref<1x4x17x17xf32, #tpu.memory_space<vmem>>, vector<1x1x16x16xf32>
    %17 = vector.shape_cast %16 : vector<1x1x16x16xf32> to vector<16x16xf32>
    %c0_4 = arith.constant 0 : index
    %18 = memref.load %arg1[%c0_4] : memref<512xf32, #tpu.memory_space<smem>>
    %19 = vector.broadcast %18 : f32 to vector<16x16xf32>
    %20 = arith.mulf %19, %17 : vector<16x16xf32>
    %21 = arith.addf %1, %20 : vector<16x16xf32>
    %c4_5 = arith.constant 4 : index
    %22 = memref.load %arg1[%c4_5] : memref<512xf32, #tpu.memory_space<smem>>
    %23 = vector.broadcast %22 : f32 to vector<16x16xf32>
    %24 = arith.mulf %23, %17 : vector<16x16xf32>
    %25 = arith.addf %3, %24 : vector<16x16xf32>
    %c8 = arith.constant 8 : index
    %26 = memref.load %arg1[%c8] : memref<512xf32, #tpu.memory_space<smem>>
    %27 = vector.broadcast %26 : f32 to vector<16x16xf32>
    %28 = arith.mulf %27, %17 : vector<16x16xf32>
    %29 = arith.addf %5, %28 : vector<16x16xf32>
    %c12 = arith.constant 12 : index
    %30 = memref.load %arg1[%c12] : memref<512xf32, #tpu.memory_space<smem>>
    %31 = vector.broadcast %30 : f32 to vector<16x16xf32>
    %32 = arith.mulf %31, %17 : vector<16x16xf32>
    %33 = arith.addf %7, %32 : vector<16x16xf32>
    %c16 = arith.constant 16 : index
    %34 = memref.load %arg1[%c16] : memref<512xf32, #tpu.memory_space<smem>>
    %35 = vector.broadcast %34 : f32 to vector<16x16xf32>
    %36 = arith.mulf %35, %17 : vector<16x16xf32>
    %37 = arith.addf %9, %36 : vector<16x16xf32>
    %c20 = arith.constant 20 : index
    %38 = memref.load %arg1[%c20] : memref<512xf32, #tpu.memory_space<smem>>
    %39 = vector.broadcast %38 : f32 to vector<16x16xf32>
    %40 = arith.mulf %39, %17 : vector<16x16xf32>
    %41 = arith.addf %11, %40 : vector<16x16xf32>
    %c24 = arith.constant 24 : index
    %42 = memref.load %arg1[%c24] : memref<512xf32, #tpu.memory_space<smem>>
    %43 = vector.broadcast %42 : f32 to vector<16x16xf32>
    %44 = arith.mulf %43, %17 : vector<16x16xf32>
    %45 = arith.addf %13, %44 : vector<16x16xf32>
    %c28 = arith.constant 28 : index
    %46 = memref.load %arg1[%c28] : memref<512xf32, #tpu.memory_space<smem>>
    %47 = vector.broadcast %46 : f32 to vector<16x16xf32>
    %48 = arith.mulf %47, %17 : vector<16x16xf32>
    %49 = arith.addf %15, %48 : vector<16x16xf32>
    %c0_6 = arith.constant 0 : index
    %c1_7 = arith.constant 1 : index
    %c0_8 = arith.constant 0 : index
    %c0_9 = arith.constant 0 : index
    %50 = vector.load %arg4[%c0_6, %c1_7, %c0_8, %c0_9] : memref<1x4x17x17xf32, #tpu.memory_space<vmem>>, vector<1x1x16x16xf32>
    %51 = vector.shape_cast %50 : vector<1x1x16x16xf32> to vector<16x16xf32>
    %c1_10 = arith.constant 1 : index
    %52 = memref.load %arg1[%c1_10] : memref<512xf32, #tpu.memory_space<smem>>
    %53 = vector.broadcast %52 : f32 to vector<16x16xf32>
    %54 = arith.mulf %53, %51 : vector<16x16xf32>
    %55 = arith.addf %21, %54 : vector<16x16xf32>
    %c5_11 = arith.constant 5 : index
    %56 = memref.load %arg1[%c5_11] : memref<512xf32, #tpu.memory_space<smem>>
    %57 = vector.broadcast %56 : f32 to vector<16x16xf32>
    %58 = arith.mulf %57, %51 : vector<16x16xf32>
    %59 = arith.addf %25, %58 : vector<16x16xf32>
    %c9 = arith.constant 9 : index
    %60 = memref.load %arg1[%c9] : memref<512xf32, #tpu.memory_space<smem>>
    %61 = vector.broadcast %60 : f32 to vector<16x16xf32>
    %62 = arith.mulf %61, %51 : vector<16x16xf32>
    %63 = arith.addf %29, %62 : vector<16x16xf32>
    %c13 = arith.constant 13 : index
    %64 = memref.load %arg1[%c13] : memref<512xf32, #tpu.memory_space<smem>>
    %65 = vector.broadcast %64 : f32 to vector<16x16xf32>
    %66 = arith.mulf %65, %51 : vector<16x16xf32>
    %67 = arith.addf %33, %66 : vector<16x16xf32>
    %c17 = arith.constant 17 : index
    %68 = memref.load %arg1[%c17] : memref<512xf32, #tpu.memory_space<smem>>
    %69 = vector.broadcast %68 : f32 to vector<16x16xf32>
    %70 = arith.mulf %69, %51 : vector<16x16xf32>
    %71 = arith.addf %37, %70 : vector<16x16xf32>
    %c21 = arith.constant 21 : index
    %72 = memref.load %arg1[%c21] : memref<512xf32, #tpu.memory_space<smem>>
    %73 = vector.broadcast %72 : f32 to vector<16x16xf32>
    %74 = arith.mulf %73, %51 : vector<16x16xf32>
    %75 = arith.addf %41, %74 : vector<16x16xf32>
    %c25 = arith.constant 25 : index
    %76 = memref.load %arg1[%c25] : memref<512xf32, #tpu.memory_space<smem>>
    %77 = vector.broadcast %76 : f32 to vector<16x16xf32>
    %78 = arith.mulf %77, %51 : vector<16x16xf32>
    %79 = arith.addf %45, %78 : vector<16x16xf32>
    %c29 = arith.constant 29 : index
    %80 = memref.load %arg1[%c29] : memref<512xf32, #tpu.memory_space<smem>>
    %81 = vector.broadcast %80 : f32 to vector<16x16xf32>
    %82 = arith.mulf %81, %51 : vector<16x16xf32>
    %83 = arith.addf %49, %82 : vector<16x16xf32>
    %c0_12 = arith.constant 0 : index
    %c2_13 = arith.constant 2 : index
    %c0_14 = arith.constant 0 : index
    %c0_15 = arith.constant 0 : index
    %84 = vector.load %arg4[%c0_12, %c2_13, %c0_14, %c0_15] : memref<1x4x17x17xf32, #tpu.memory_space<vmem>>, vector<1x1x16x16xf32>
    %85 = vector.shape_cast %84 : vector<1x1x16x16xf32> to vector<16x16xf32>
    %c2_16 = arith.constant 2 : index
    %86 = memref.load %arg1[%c2_16] : memref<512xf32, #tpu.memory_space<smem>>
    %87 = vector.broadcast %86 : f32 to vector<16x16xf32>
    %88 = arith.mulf %87, %85 : vector<16x16xf32>
    %89 = arith.addf %55, %88 : vector<16x16xf32>
    %c6_17 = arith.constant 6 : index
    %90 = memref.load %arg1[%c6_17] : memref<512xf32, #tpu.memory_space<smem>>
    %91 = vector.broadcast %90 : f32 to vector<16x16xf32>
    %92 = arith.mulf %91, %85 : vector<16x16xf32>
    %93 = arith.addf %59, %92 : vector<16x16xf32>
    %c10 = arith.constant 10 : index
    %94 = memref.load %arg1[%c10] : memref<512xf32, #tpu.memory_space<smem>>
    %95 = vector.broadcast %94 : f32 to vector<16x16xf32>
    %96 = arith.mulf %95, %85 : vector<16x16xf32>
    %97 = arith.addf %63, %96 : vector<16x16xf32>
    %c14 = arith.constant 14 : index
    %98 = memref.load %arg1[%c14] : memref<512xf32, #tpu.memory_space<smem>>
    %99 = vector.broadcast %98 : f32 to vector<16x16xf32>
    %100 = arith.mulf %99, %85 : vector<16x16xf32>
    %101 = arith.addf %67, %100 : vector<16x16xf32>
    %c18 = arith.constant 18 : index
    %102 = memref.load %arg1[%c18] : memref<512xf32, #tpu.memory_space<smem>>
    %103 = vector.broadcast %102 : f32 to vector<16x16xf32>
    %104 = arith.mulf %103, %85 : vector<16x16xf32>
    %105 = arith.addf %71, %104 : vector<16x16xf32>
    %c22 = arith.constant 22 : index
    %106 = memref.load %arg1[%c22] : memref<512xf32, #tpu.memory_space<smem>>
    %107 = vector.broadcast %106 : f32 to vector<16x16xf32>
    %108 = arith.mulf %107, %85 : vector<16x16xf32>
    %109 = arith.addf %75, %108 : vector<16x16xf32>
    %c26 = arith.constant 26 : index
    %110 = memref.load %arg1[%c26] : memref<512xf32, #tpu.memory_space<smem>>
    %111 = vector.broadcast %110 : f32 to vector<16x16xf32>
    %112 = arith.mulf %111, %85 : vector<16x16xf32>
    %113 = arith.addf %79, %112 : vector<16x16xf32>
    %c30 = arith.constant 30 : index
    %114 = memref.load %arg1[%c30] : memref<512xf32, #tpu.memory_space<smem>>
    %115 = vector.broadcast %114 : f32 to vector<16x16xf32>
    %116 = arith.mulf %115, %85 : vector<16x16xf32>
    %117 = arith.addf %83, %116 : vector<16x16xf32>
    %c0_18 = arith.constant 0 : index
    %c3_19 = arith.constant 3 : index
    %c0_20 = arith.constant 0 : index
    %c0_21 = arith.constant 0 : index
    %118 = vector.load %arg4[%c0_18, %c3_19, %c0_20, %c0_21] : memref<1x4x17x17xf32, #tpu.memory_space<vmem>>, vector<1x1x16x16xf32>
    %119 = vector.shape_cast %118 : vector<1x1x16x16xf32> to vector<16x16xf32>
    %c3_22 = arith.constant 3 : index
    %120 = memref.load %arg1[%c3_22] : memref<512xf32, #tpu.memory_space<smem>>
    %121 = vector.broadcast %120 : f32 to vector<16x16xf32>
    %122 = arith.mulf %121, %119 : vector<16x16xf32>
    %123 = arith.addf %89, %122 : vector<16x16xf32>
    %c7_23 = arith.constant 7 : index
    %124 = memref.load %arg1[%c7_23] : memref<512xf32, #tpu.memory_space<smem>>
    %125 = vector.broadcast %124 : f32 to vector<16x16xf32>
    %126 = arith.mulf %125, %119 : vector<16x16xf32>
    %127 = arith.addf %93, %126 : vector<16x16xf32>
    %c11 = arith.constant 11 : index
    %128 = memref.load %arg1[%c11] : memref<512xf32, #tpu.memory_space<smem>>
    %129 = vector.broadcast %128 : f32 to vector<16x16xf32>
    %130 = arith.mulf %129, %119 : vector<16x16xf32>
    %131 = arith.addf %97, %130 : vector<16x16xf32>
    %c15 = arith.constant 15 : index
    %132 = memref.load %arg1[%c15] : memref<512xf32, #tpu.memory_space<smem>>
    %133 = vector.broadcast %132 : f32 to vector<16x16xf32>
    %134 = arith.mulf %133, %119 : vector<16x16xf32>
    %135 = arith.addf %101, %134 : vector<16x16xf32>
    %c19 = arith.constant 19 : index
    %136 = memref.load %arg1[%c19] : memref<512xf32, #tpu.memory_space<smem>>
    %137 = vector.broadcast %136 : f32 to vector<16x16xf32>
    %138 = arith.mulf %137, %119 : vector<16x16xf32>
    %139 = arith.addf %105, %138 : vector<16x16xf32>
    %c23 = arith.constant 23 : index
    %140 = memref.load %arg1[%c23] : memref<512xf32, #tpu.memory_space<smem>>
    %141 = vector.broadcast %140 : f32 to vector<16x16xf32>
    %142 = arith.mulf %141, %119 : vector<16x16xf32>
    %143 = arith.addf %109, %142 : vector<16x16xf32>
    %c27 = arith.constant 27 : index
    %144 = memref.load %arg1[%c27] : memref<512xf32, #tpu.memory_space<smem>>
    %145 = vector.broadcast %144 : f32 to vector<16x16xf32>
    %146 = arith.mulf %145, %119 : vector<16x16xf32>
    %147 = arith.addf %113, %146 : vector<16x16xf32>
    %c31 = arith.constant 31 : index
    %148 = memref.load %arg1[%c31] : memref<512xf32, #tpu.memory_space<smem>>
    %149 = vector.broadcast %148 : f32 to vector<16x16xf32>
    %150 = arith.mulf %149, %119 : vector<16x16xf32>
    %151 = arith.addf %117, %150 : vector<16x16xf32>
    %c0_24 = arith.constant 0 : index
    %152 = memref.load %arg3[%c0_24] : memref<1xf32, #tpu.memory_space<smem>>
    %cst = arith.constant 0.000000e+00 : f32
    %153 = vector.broadcast %cst : f32 to vector<16x16xf32>
    %154 = arith.cmpf oge, %123, %153 : vector<16x16xf32>
    %155 = vector.broadcast %152 : f32 to vector<16x16xf32>
    %156 = arith.mulf %155, %123 : vector<16x16xf32>
    %157 = arith.select %154, %123, %156 : vector<16x16xi1>, vector<16x16xf32>
    %c0_25 = arith.constant 0 : index
    %c0_26 = arith.constant 0 : index
    %c0_27 = arith.constant 0 : index
    %c0_28 = arith.constant 0 : index
    %c0_29 = arith.constant 0 : index
    %158 = vector.load %arg5[%c0_25, %c0_26, %c0_27, %c0_28, %c0_29] : memref<1x4x8x16x16xf32, #tpu.memory_space<vmem>>, vector<1x1x1x16x16xf32>
    %159 = vector.shape_cast %158 : vector<1x1x1x16x16xf32> to vector<16x16xf32>
    %160 = vector.shape_cast %157 : vector<16x16xf32> to vector<1x1x1x16x16xf32>
    tpu.vector_store %arg5[%c0_25, %c0_26, %c0_27, %c0_28, %c0_29], %160 {strides = array<i32>} : memref<1x4x8x16x16xf32, #tpu.memory_space<vmem>>, vector<1x1x1x16x16xf32>,
    %c0_30 = arith.constant 0 : index
    %161 = memref.load %arg3[%c0_30] : memref<1xf32, #tpu.memory_space<smem>>
    %cst_31 = arith.constant 0.000000e+00 : f32
    %162 = vector.broadcast %cst_31 : f32 to vector<16x16xf32>
    %163 = arith.cmpf oge, %127, %162 : vector<16x16xf32>
    %164 = vector.broadcast %161 : f32 to vector<16x16xf32>
    %165 = arith.mulf %164, %127 : vector<16x16xf32>
    %166 = arith.select %163, %127, %165 : vector<16x16xi1>, vector<16x16xf32>
    %c0_32 = arith.constant 0 : index
    %c0_33 = arith.constant 0 : index
    %c1_34 = arith.constant 1 : index
    %c0_35 = arith.constant 0 : index
    %c0_36 = arith.constant 0 : index
    %167 = vector.load %arg5[%c0_32, %c0_33, %c1_34, %c0_35, %c0_36] : memref<1x4x8x16x16xf32, #tpu.memory_space<vmem>>, vector<1x1x1x16x16xf32>
    %168 = vector.shape_cast %167 : vector<1x1x1x16x16xf32> to vector<16x16xf32>
    %169 = vector.shape_cast %166 : vector<16x16xf32> to vector<1x1x1x16x16xf32>
    tpu.vector_store %arg5[%c0_32, %c0_33, %c1_34, %c0_35, %c0_36], %169 {strides = array<i32>} : memref<1x4x8x16x16xf32, #tpu.memory_space<vmem>>, vector<1x1x1x16x16xf32>,
    %c0_37 = arith.constant 0 : index
    %170 = memref.load %arg3[%c0_37] : memref<1xf32, #tpu.memory_space<smem>>
    %cst_38 = arith.constant 0.000000e+00 : f32
    %171 = vector.broadcast %cst_38 : f32 to vector<16x16xf32>
    %172 = arith.cmpf oge, %131, %171 : vector<16x16xf32>
    %173 = vector.broadcast %170 : f32 to vector<16x16xf32>
    %174 = arith.mulf %173, %131 : vector<16x16xf32>
    %175 = arith.select %172, %131, %174 : vector<16x16xi1>, vector<16x16xf32>
    %c0_39 = arith.constant 0 : index
    %c0_40 = arith.constant 0 : index
    %c2_41 = arith.constant 2 : index
    %c0_42 = arith.constant 0 : index
    %c0_43 = arith.constant 0 : index
    %176 = vector.load %arg5[%c0_39, %c0_40, %c2_41, %c0_42, %c0_43] : memref<1x4x8x16x16xf32, #tpu.memory_space<vmem>>, vector<1x1x1x16x16xf32>
    %177 = vector.shape_cast %176 : vector<1x1x1x16x16xf32> to vector<16x16xf32>
    %178 = vector.shape_cast %175 : vector<16x16xf32> to vector<1x1x1x16x16xf32>
    tpu.vector_store %arg5[%c0_39, %c0_40, %c2_41, %c0_42, %c0_43], %178 {strides = array<i32>} : memref<1x4x8x16x16xf32, #tpu.memory_space<vmem>>, vector<1x1x1x16x16xf32>,
    %c0_44 = arith.constant 0 : index
    %179 = memref.load %arg3[%c0_44] : memref<1xf32, #tpu.memory_space<smem>>
    %cst_45 = arith.constant 0.000000e+00 : f32
    %180 = vector.broadcast %cst_45 : f32 to vector<16x16xf32>
    %181 = arith.cmpf oge, %135, %180 : vector<16x16xf32>
    %182 = vector.broadcast %179 : f32 to vector<16x16xf32>
    %183 = arith.mulf %182, %135 : vector<16x16xf32>
    %184 = arith.select %181, %135, %183 : vector<16x16xi1>, vector<16x16xf32>
    %c0_46 = arith.constant 0 : index
    %c0_47 = arith.constant 0 : index
    %c3_48 = arith.constant 3 : index
    %c0_49 = arith.constant 0 : index
    %c0_50 = arith.constant 0 : index
    %185 = vector.load %arg5[%c0_46, %c0_47, %c3_48, %c0_49, %c0_50] : memref<1x4x8x16x16xf32, #tpu.memory_space<vmem>>, vector<1x1x1x16x16xf32>
    %186 = vector.shape_cast %185 : vector<1x1x1x16x16xf32> to vector<16x16xf32>
    %187 = vector.shape_cast %184 : vector<16x16xf32> to vector<1x1x1x16x16xf32>
    tpu.vector_store %arg5[%c0_46, %c0_47, %c3_48, %c0_49, %c0_50], %187 {strides = array<i32>} : memref<1x4x8x16x16xf32, #tpu.memory_space<vmem>>, vector<1x1x1x16x16xf32>,
    %c0_51 = arith.constant 0 : index
    %188 = memref.load %arg3[%c0_51] : memref<1xf32, #tpu.memory_space<smem>>
    %cst_52 = arith.constant 0.000000e+00 : f32
    %189 = vector.broadcast %cst_52 : f32 to vector<16x16xf32>
    %190 = arith.cmpf oge, %139, %189 : vector<16x16xf32>
    %191 = vector.broadcast %188 : f32 to vector<16x16xf32>
    %192 = arith.mulf %191, %139 : vector<16x16xf32>
    %193 = arith.select %190, %139, %192 : vector<16x16xi1>, vector<16x16xf32>
    %c0_53 = arith.constant 0 : index
    %c0_54 = arith.constant 0 : index
    %c4_55 = arith.constant 4 : index
    %c0_56 = arith.constant 0 : index
    %c0_57 = arith.constant 0 : index
    %194 = vector.load %arg5[%c0_53, %c0_54, %c4_55, %c0_56, %c0_57] : memref<1x4x8x16x16xf32, #tpu.memory_space<vmem>>, vector<1x1x1x16x16xf32>
    %195 = vector.shape_cast %194 : vector<1x1x1x16x16xf32> to vector<16x16xf32>
    %196 = vector.shape_cast %193 : vector<16x16xf32> to vector<1x1x1x16x16xf32>
    tpu.vector_store %arg5[%c0_53, %c0_54, %c4_55, %c0_56, %c0_57], %196 {strides = array<i32>} : memref<1x4x8x16x16xf32, #tpu.memory_space<vmem>>, vector<1x1x1x16x16xf32>,
    %c0_58 = arith.constant 0 : index
    %197 = memref.load %arg3[%c0_58] : memref<1xf32, #tpu.memory_space<smem>>
    %cst_59 = arith.constant 0.000000e+00 : f32
    %198 = vector.broadcast %cst_59 : f32 to vector<16x16xf32>
    %199 = arith.cmpf oge, %143, %198 : vector<16x16xf32>
    %200 = vector.broadcast %197 : f32 to vector<16x16xf32>
    %201 = arith.mulf %200, %143 : vector<16x16xf32>
    %202 = arith.select %199, %143, %201 : vector<16x16xi1>, vector<16x16xf32>
    %c0_60 = arith.constant 0 : index
    %c0_61 = arith.constant 0 : index
    %c5_62 = arith.constant 5 : index
    %c0_63 = arith.constant 0 : index
    %c0_64 = arith.constant 0 : index
    %203 = vector.load %arg5[%c0_60, %c0_61, %c5_62, %c0_63, %c0_64] : memref<1x4x8x16x16xf32, #tpu.memory_space<vmem>>, vector<1x1x1x16x16xf32>
    %204 = vector.shape_cast %203 : vector<1x1x1x16x16xf32> to vector<16x16xf32>
    %205 = vector.shape_cast %202 : vector<16x16xf32> to vector<1x1x1x16x16xf32>
    tpu.vector_store %arg5[%c0_60, %c0_61, %c5_62, %c0_63, %c0_64], %205 {strides = array<i32>} : memref<1x4x8x16x16xf32, #tpu.memory_space<vmem>>, vector<1x1x1x16x16xf32>,
    %c0_65 = arith.constant 0 : index
    %206 = memref.load %arg3[%c0_65] : memref<1xf32, #tpu.memory_space<smem>>
    %cst_66 = arith.constant 0.000000e+00 : f32
    %207 = vector.broadcast %cst_66 : f32 to vector<16x16xf32>
    %208 = arith.cmpf oge, %147, %207 : vector<16x16xf32>
    %209 = vector.broadcast %206 : f32 to vector<16x16xf32>
    %210 = arith.mulf %209, %147 : vector<16x16xf32>
    %211 = arith.select %208, %147, %210 : vector<16x16xi1>, vector<16x16xf32>
    %c0_67 = arith.constant 0 : index
    %c0_68 = arith.constant 0 : index
    %c6_69 = arith.constant 6 : index
    %c0_70 = arith.constant 0 : index
    %c0_71 = arith.constant 0 : index
    %212 = vector.load %arg5[%c0_67, %c0_68, %c6_69, %c0_70, %c0_71] : memref<1x4x8x16x16xf32, #tpu.memory_space<vmem>>, vector<1x1x1x16x16xf32>
    %213 = vector.shape_cast %212 : vector<1x1x1x16x16xf32> to vector<16x16xf32>
    %214 = vector.shape_cast %211 : vector<16x16xf32> to vector<1x1x1x16x16xf32>
    tpu.vector_store %arg5[%c0_67, %c0_68, %c6_69, %c0_70, %c0_71], %214 {strides = array<i32>} : memref<1x4x8x16x16xf32, #tpu.memory_space<vmem>>, vector<1x1x1x16x16xf32>,
    %c0_72 = arith.constant 0 : index
    %215 = memref.load %arg3[%c0_72] : memref<1xf32, #tpu.memory_space<smem>>
    %cst_73 = arith.constant 0.000000e+00 : f32
    %216 = vector.broadcast %cst_73 : f32 to vector<16x16xf32>
    %217 = arith.cmpf oge, %151, %216 : vector<16x16xf32>
    %218 = vector.broadcast %215 : f32 to vector<16x16xf32>
    %219 = arith.mulf %218, %151 : vector<16x16xf32>
    %220 = arith.select %217, %151, %219 : vector<16x16xi1>, vector<16x16xf32>
    %c0_74 = arith.constant 0 : index
    %c0_75 = arith.constant 0 : index
    %c7_76 = arith.constant 7 : index
    %c0_77 = arith.constant 0 : index
    %c0_78 = arith.constant 0 : index
    %221 = vector.load %arg5[%c0_74, %c0_75, %c7_76, %c0_77, %c0_78] : memref<1x4x8x16x16xf32, #tpu.memory_space<vmem>>, vector<1x1x1x16x16xf32>
    %222 = vector.shape_cast %221 : vector<1x1x1x16x16xf32> to vector<16x16xf32>
    %223 = vector.shape_cast %220 : vector<16x16xf32> to vector<1x1x1x16x16xf32>
    tpu.vector_store %arg5[%c0_74, %c0_75, %c7_76, %c0_77, %c0_78], %223 {strides = array<i32>} : memref<1x4x8x16x16xf32, #tpu.memory_space<vmem>>, vector<1x1x1x16x16xf32>,
    %c0_79 = arith.constant 0 : index
    %224 = memref.load %arg2[%c0_79] : memref<8xf32, #tpu.memory_space<smem>>
    %225 = vector.broadcast %224 : f32 to vector<16x16xf32>
    %c1_80 = arith.constant 1 : index
    %226 = memref.load %arg2[%c1_80] : memref<8xf32, #tpu.memory_space<smem>>
    %227 = vector.broadcast %226 : f32 to vector<16x16xf32>
    %c2_81 = arith.constant 2 : index
    %228 = memref.load %arg2[%c2_81] : memref<8xf32, #tpu.memory_space<smem>>
    %229 = vector.broadcast %228 : f32 to vector<16x16xf32>
    %c3_82 = arith.constant 3 : index
    %230 = memref.load %arg2[%c3_82] : memref<8xf32, #tpu.memory_space<smem>>
    %231 = vector.broadcast %230 : f32 to vector<16x16xf32>
    %c4_83 = arith.constant 4 : index
    %232 = memref.load %arg2[%c4_83] : memref<8xf32, #tpu.memory_space<smem>>
    %233 = vector.broadcast %232 : f32 to vector<16x16xf32>
    %c5_84 = arith.constant 5 : index
    %234 = memref.load %arg2[%c5_84] : memref<8xf32, #tpu.memory_space<smem>>
    %235 = vector.broadcast %234 : f32 to vector<16x16xf32>
    %c6_85 = arith.constant 6 : index
    %236 = memref.load %arg2[%c6_85] : memref<8xf32, #tpu.memory_space<smem>>
    %237 = vector.broadcast %236 : f32 to vector<16x16xf32>
    %c7_86 = arith.constant 7 : index
    %238 = memref.load %arg2[%c7_86] : memref<8xf32, #tpu.memory_space<smem>>
    %239 = vector.broadcast %238 : f32 to vector<16x16xf32>
    %c0_87 = arith.constant 0 : index
    %c0_88 = arith.constant 0 : index
    %c0_89 = arith.constant 0 : index
    %c0_90 = arith.constant 0 : index
    %240 = vector.load %arg4[%c0_87, %c0_88, %c0_89, %c0_90] : memref<1x4x17x17xf32, #tpu.memory_space<vmem>>, vector<1x1x16x16xf32>
    %241 = vector.shape_cast %240 : vector<1x1x16x16xf32> to vector<16x16xf32>
    %c128 = arith.constant 128 : index
    %242 = memref.load %arg1[%c128] : memref<512xf32, #tpu.memory_space<smem>>
    %243 = vector.broadcast %242 : f32 to vector<16x16xf32>
    %244 = arith.mulf %243, %241 : vector<16x16xf32>
    %245 = arith.addf %225, %244 : vector<16x16xf32>
    %c132 = arith.constant 132 : index
    %246 = memref.load %arg1[%c132] : memref<512xf32, #tpu.memory_space<smem>>
    %247 = vector.broadcast %246 : f32 to vector<16x16xf32>
    %248 = arith.mulf %247, %241 : vector<16x16xf32>
    %249 = arith.addf %227, %248 : vector<16x16xf32>
    %c136 = arith.constant 136 : index
    %250 = memref.load %arg1[%c136] : memref<512xf32, #tpu.memory_space<smem>>
    %251 = vector.broadcast %250 : f32 to vector<16x16xf32>
    %252 = arith.mulf %251, %241 : vector<16x16xf32>
    %253 = arith.addf %229, %252 : vector<16x16xf32>
    %c140 = arith.constant 140 : index
    %254 = memref.load %arg1[%c140] : memref<512xf32, #tpu.memory_space<smem>>
    %255 = vector.broadcast %254 : f32 to vector<16x16xf32>
    %256 = arith.mulf %255, %241 : vector<16x16xf32>
    %257 = arith.addf %231, %256 : vector<16x16xf32>
    %c144 = arith.constant 144 : index
    %258 = memref.load %arg1[%c144] : memref<512xf32, #tpu.memory_space<smem>>
    %259 = vector.broadcast %258 : f32 to vector<16x16xf32>
    %260 = arith.mulf %259, %241 : vector<16x16xf32>
    %261 = arith.addf %233, %260 : vector<16x16xf32>
    %c148 = arith.constant 148 : index
    %262 = memref.load %arg1[%c148] : memref<512xf32, #tpu.memory_space<smem>>
    %263 = vector.broadcast %262 : f32 to vector<16x16xf32>
    %264 = arith.mulf %263, %241 : vector<16x16xf32>
    %265 = arith.addf %235, %264 : vector<16x16xf32>
    %c152 = arith.constant 152 : index
    %266 = memref.load %arg1[%c152] : memref<512xf32, #tpu.memory_space<smem>>
    %267 = vector.broadcast %266 : f32 to vector<16x16xf32>
    %268 = arith.mulf %267, %241 : vector<16x16xf32>
    %269 = arith.addf %237, %268 : vector<16x16xf32>
    %c156 = arith.constant 156 : index
    %270 = memref.load %arg1[%c156] : memref<512xf32, #tpu.memory_space<smem>>
    %271 = vector.broadcast %270 : f32 to vector<16x16xf32>
    %272 = arith.mulf %271, %241 : vector<16x16xf32>
    %273 = arith.addf %239, %272 : vector<16x16xf32>
    %c0_91 = arith.constant 0 : index
    %c1_92 = arith.constant 1 : index
    %c0_93 = arith.constant 0 : index
    %c0_94 = arith.constant 0 : index
    %274 = vector.load %arg4[%c0_91, %c1_92, %c0_93, %c0_94] : memref<1x4x17x17xf32, #tpu.memory_space<vmem>>, vector<1x1x16x16xf32>
    %275 = vector.shape_cast %274 : vector<1x1x16x16xf32> to vector<16x16xf32>
    %c129 = arith.constant 129 : index
    %276 = memref.load %arg1[%c129] : memref<512xf32, #tpu.memory_space<smem>>
    %277 = vector.broadcast %276 : f32 to vector<16x16xf32>
    %278 = arith.mulf %277, %275 : vector<16x16xf32>
    %279 = arith.addf %245, %278 : vector<16x16xf32>
    %c133 = arith.constant 133 : index
    %280 = memref.load %arg1[%c133] : memref<512xf32, #tpu.memory_space<smem>>
    %281 = vector.broadcast %280 : f32 to vector<16x16xf32>
    %282 = arith.mulf %281, %275 : vector<16x16xf32>
    %283 = arith.addf %249, %282 : vector<16x16xf32>
    %c137 = arith.constant 137 : index
    %284 = memref.load %arg1[%c137] : memref<512xf32, #tpu.memory_space<smem>>
    %285 = vector.broadcast %284 : f32 to vector<16x16xf32>
    %286 = arith.mulf %285, %275 : vector<16x16xf32>
    %287 = arith.addf %253, %286 : vector<16x16xf32>
    %c141 = arith.constant 141 : index
    %288 = memref.load %arg1[%c141] : memref<512xf32, #tpu.memory_space<smem>>
    %289 = vector.broadcast %288 : f32 to vector<16x16xf32>
    %290 = arith.mulf %289, %275 : vector<16x16xf32>
    %291 = arith.addf %257, %290 : vector<16x16xf32>
    %c145 = arith.constant 145 : index
    %292 = memref.load %arg1[%c145] : memref<512xf32, #tpu.memory_space<smem>>
    %293 = vector.broadcast %292 : f32 to vector<16x16xf32>
    %294 = arith.mulf %293, %275 : vector<16x16xf32>
    %295 = arith.addf %261, %294 : vector<16x16xf32>
    %c149 = arith.constant 149 : index
    %296 = memref.load %arg1[%c149] : memref<512xf32, #tpu.memory_space<smem>>
    %297 = vector.broadcast %296 : f32 to vector<16x16xf32>
    %298 = arith.mulf %297, %275 : vector<16x16xf32>
    %299 = arith.addf %265, %298 : vector<16x16xf32>
    %c153 = arith.constant 153 : index
    %300 = memref.load %arg1[%c153] : memref<512xf32, #tpu.memory_space<smem>>
    %301 = vector.broadcast %300 : f32 to vector<16x16xf32>
    %302 = arith.mulf %301, %275 : vector<16x16xf32>
    %303 = arith.addf %269, %302 : vector<16x16xf32>
    %c157 = arith.constant 157 : index
    %304 = memref.load %arg1[%c157] : memref<512xf32, #tpu.memory_space<smem>>
    %305 = vector.broadcast %304 : f32 to vector<16x16xf32>
    %306 = arith.mulf %305, %275 : vector<16x16xf32>
    %307 = arith.addf %273, %306 : vector<16x16xf32>
    %c0_95 = arith.constant 0 : index
    %c2_96 = arith.constant 2 : index
    %c0_97 = arith.constant 0 : index
    %c0_98 = arith.constant 0 : index
    %308 = vector.load %arg4[%c0_95, %c2_96, %c0_97, %c0_98] : memref<1x4x17x17xf32, #tpu.memory_space<vmem>>, vector<1x1x16x16xf32>
    %309 = vector.shape_cast %308 : vector<1x1x16x16xf32> to vector<16x16xf32>
    %c130 = arith.constant 130 : index
    %310 = memref.load %arg1[%c130] : memref<512xf32, #tpu.memory_space<smem>>
    %311 = vector.broadcast %310 : f32 to vector<16x16xf32>
    %312 = arith.mulf %311, %309 : vector<16x16xf32>
    %313 = arith.addf %279, %312 : vector<16x16xf32>
    %c134 = arith.constant 134 : index
    %314 = memref.load %arg1[%c134] : memref<512xf32, #tpu.memory_space<smem>>
    %315 = vector.broadcast %314 : f32 to vector<16x16xf32>
    %316 = arith.mulf %315, %309 : vector<16x16xf32>
    %317 = arith.addf %283, %316 : vector<16x16xf32>
    %c138 = arith.constant 138 : index
    %318 = memref.load %arg1[%c138] : memref<512xf32, #tpu.memory_space<smem>>
    %319 = vector.broadcast %318 : f32 to vector<16x16xf32>
    %320 = arith.mulf %319, %309 : vector<16x16xf32>
    %321 = arith.addf %287, %320 : vector<16x16xf32>
    %c142 = arith.constant 142 : index
    %322 = memref.load %arg1[%c142] : memref<512xf32, #tpu.memory_space<smem>>
    %323 = vector.broadcast %322 : f32 to vector<16x16xf32>
    %324 = arith.mulf %323, %309 : vector<16x16xf32>
    %325 = arith.addf %291, %324 : vector<16x16xf32>
    %c146 = arith.constant 146 : index
    %326 = memref.load %arg1[%c146] : memref<512xf32, #tpu.memory_space<smem>>
    %327 = vector.broadcast %326 : f32 to vector<16x16xf32>
    %328 = arith.mulf %327, %309 : vector<16x16xf32>
    %329 = arith.addf %295, %328 : vector<16x16xf32>
    %c150 = arith.constant 150 : index
    %330 = memref.load %arg1[%c150] : memref<512xf32, #tpu.memory_space<smem>>
    %331 = vector.broadcast %330 : f32 to vector<16x16xf32>
    %332 = arith.mulf %331, %309 : vector<16x16xf32>
    %333 = arith.addf %299, %332 : vector<16x16xf32>
    %c154 = arith.constant 154 : index
    %334 = memref.load %arg1[%c154] : memref<512xf32, #tpu.memory_space<smem>>
    %335 = vector.broadcast %334 : f32 to vector<16x16xf32>
    %336 = arith.mulf %335, %309 : vector<16x16xf32>
    %337 = arith.addf %303, %336 : vector<16x16xf32>
    %c158 = arith.constant 158 : index
    %338 = memref.load %arg1[%c158] : memref<512xf32, #tpu.memory_space<smem>>
    %339 = vector.broadcast %338 : f32 to vector<16x16xf32>
    %340 = arith.mulf %339, %309 : vector<16x16xf32>
    %341 = arith.addf %307, %340 : vector<16x16xf32>
    %c0_99 = arith.constant 0 : index
    %c3_100 = arith.constant 3 : index
    %c0_101 = arith.constant 0 : index
    %c0_102 = arith.constant 0 : index
    %342 = vector.load %arg4[%c0_99, %c3_100, %c0_101, %c0_102] : memref<1x4x17x17xf32, #tpu.memory_space<vmem>>, vector<1x1x16x16xf32>
    %343 = vector.shape_cast %342 : vector<1x1x16x16xf32> to vector<16x16xf32>
    %c131 = arith.constant 131 : index
    %344 = memref.load %arg1[%c131] : memref<512xf32, #tpu.memory_space<smem>>
    %345 = vector.broadcast %344 : f32 to vector<16x16xf32>
    %346 = arith.mulf %345, %343 : vector<16x16xf32>
    %347 = arith.addf %313, %346 : vector<16x16xf32>
    %c135 = arith.constant 135 : index
    %348 = memref.load %arg1[%c135] : memref<512xf32, #tpu.memory_space<smem>>
    %349 = vector.broadcast %348 : f32 to vector<16x16xf32>
    %350 = arith.mulf %349, %343 : vector<16x16xf32>
    %351 = arith.addf %317, %350 : vector<16x16xf32>
    %c139 = arith.constant 139 : index
    %352 = memref.load %arg1[%c139] : memref<512xf32, #tpu.memory_space<smem>>
    %353 = vector.broadcast %352 : f32 to vector<16x16xf32>
    %354 = arith.mulf %353, %343 : vector<16x16xf32>
    %355 = arith.addf %321, %354 : vector<16x16xf32>
    %c143 = arith.constant 143 : index
    %356 = memref.load %arg1[%c143] : memref<512xf32, #tpu.memory_space<smem>>
    %357 = vector.broadcast %356 : f32 to vector<16x16xf32>
    %358 = arith.mulf %357, %343 : vector<16x16xf32>
    %359 = arith.addf %325, %358 : vector<16x16xf32>
    %c147 = arith.constant 147 : index
    %360 = memref.load %arg1[%c147] : memref<512xf32, #tpu.memory_space<smem>>
    %361 = vector.broadcast %360 : f32 to vector<16x16xf32>
    %362 = arith.mulf %361, %343 : vector<16x16xf32>
    %363 = arith.addf %329, %362 : vector<16x16xf32>
    %c151 = arith.constant 151 : index
    %364 = memref.load %arg1[%c151] : memref<512xf32, #tpu.memory_space<smem>>
    %365 = vector.broadcast %364 : f32 to vector<16x16xf32>
    %366 = arith.mulf %365, %343 : vector<16x16xf32>
    %367 = arith.addf %333, %366 : vector<16x16xf32>
    %c155 = arith.constant 155 : index
    %368 = memref.load %arg1[%c155] : memref<512xf32, #tpu.memory_space<smem>>
    %369 = vector.broadcast %368 : f32 to vector<16x16xf32>
    %370 = arith.mulf %369, %343 : vector<16x16xf32>
    %371 = arith.addf %337, %370 : vector<16x16xf32>
    %c159 = arith.constant 159 : index
    %372 = memref.load %arg1[%c159] : memref<512xf32, #tpu.memory_space<smem>>
    %373 = vector.broadcast %372 : f32 to vector<16x16xf32>
    %374 = arith.mulf %373, %343 : vector<16x16xf32>
    %375 = arith.addf %341, %374 : vector<16x16xf32>
    %c0_103 = arith.constant 0 : index
    %c0_104 = arith.constant 0 : index
    %c0_105 = arith.constant 0 : index
    %c1_106 = arith.constant 1 : index
    %376 = vector.load %arg4[%c0_103, %c0_104, %c0_105, %c1_106] : memref<1x4x17x17xf32, #tpu.memory_space<vmem>>, vector<1x1x16x16xf32>
    %377 = vector.shape_cast %376 : vector<1x1x16x16xf32> to vector<16x16xf32>
    %c160 = arith.constant 160 : index
    %378 = memref.load %arg1[%c160] : memref<512xf32, #tpu.memory_space<smem>>
    %379 = vector.broadcast %378 : f32 to vector<16x16xf32>
    %380 = arith.mulf %379, %377 : vector<16x16xf32>
    %381 = arith.addf %347, %380 : vector<16x16xf32>
    %c164 = arith.constant 164 : index
    %382 = memref.load %arg1[%c164] : memref<512xf32, #tpu.memory_space<smem>>
    %383 = vector.broadcast %382 : f32 to vector<16x16xf32>
    %384 = arith.mulf %383, %377 : vector<16x16xf32>
    %385 = arith.addf %351, %384 : vector<16x16xf32>
    %c168 = arith.constant 168 : index
    %386 = memref.load %arg1[%c168] : memref<512xf32, #tpu.memory_space<smem>>
    %387 = vector.broadcast %386 : f32 to vector<16x16xf32>
    %388 = arith.mulf %387, %377 : vector<16x16xf32>
    %389 = arith.addf %355, %388 : vector<16x16xf32>
    %c172 = arith.constant 172 : index
    %390 = memref.load %arg1[%c172] : memref<512xf32, #tpu.memory_space<smem>>
    %391 = vector.broadcast %390 : f32 to vector<16x16xf32>
    %392 = arith.mulf %391, %377 : vector<16x16xf32>
    %393 = arith.addf %359, %392 : vector<16x16xf32>
    %c176 = arith.constant 176 : index
    %394 = memref.load %arg1[%c176] : memref<512xf32, #tpu.memory_space<smem>>
    %395 = vector.broadcast %394 : f32 to vector<16x16xf32>
    %396 = arith.mulf %395, %377 : vector<16x16xf32>
    %397 = arith.addf %363, %396 : vector<16x16xf32>
    %c180 = arith.constant 180 : index
    %398 = memref.load %arg1[%c180] : memref<512xf32, #tpu.memory_space<smem>>
    %399 = vector.broadcast %398 : f32 to vector<16x16xf32>
    %400 = arith.mulf %399, %377 : vector<16x16xf32>
    %401 = arith.addf %367, %400 : vector<16x16xf32>
    %c184 = arith.constant 184 : index
    %402 = memref.load %arg1[%c184] : memref<512xf32, #tpu.memory_space<smem>>
    %403 = vector.broadcast %402 : f32 to vector<16x16xf32>
    %404 = arith.mulf %403, %377 : vector<16x16xf32>
    %405 = arith.addf %371, %404 : vector<16x16xf32>
    %c188 = arith.constant 188 : index
    %406 = memref.load %arg1[%c188] : memref<512xf32, #tpu.memory_space<smem>>
    %407 = vector.broadcast %406 : f32 to vector<16x16xf32>
    %408 = arith.mulf %407, %377 : vector<16x16xf32>
    %409 = arith.addf %375, %408 : vector<16x16xf32>
    %c0_107 = arith.constant 0 : index
    %c1_108 = arith.constant 1 : index
    %c0_109 = arith.constant 0 : index
    %c1_110 = arith.constant 1 : index
    %410 = vector.load %arg4[%c0_107, %c1_108, %c0_109, %c1_110] : memref<1x4x17x17xf32, #tpu.memory_space<vmem>>, vector<1x1x16x16xf32>
    %411 = vector.shape_cast %410 : vector<1x1x16x16xf32> to vector<16x16xf32>
    %c161 = arith.constant 161 : index
    %412 = memref.load %arg1[%c161] : memref<512xf32, #tpu.memory_space<smem>>
    %413 = vector.broadcast %412 : f32 to vector<16x16xf32>
    %414 = arith.mulf %413, %411 : vector<16x16xf32>
    %415 = arith.addf %381, %414 : vector<16x16xf32>
    %c165 = arith.constant 165 : index
    %416 = memref.load %arg1[%c165] : memref<512xf32, #tpu.memory_space<smem>>
    %417 = vector.broadcast %416 : f32 to vector<16x16xf32>
    %418 = arith.mulf %417, %411 : vector<16x16xf32>
    %419 = arith.addf %385, %418 : vector<16x16xf32>
    %c169 = arith.constant 169 : index
    %420 = memref.load %arg1[%c169] : memref<512xf32, #tpu.memory_space<smem>>
    %421 = vector.broadcast %420 : f32 to vector<16x16xf32>
    %422 = arith.mulf %421, %411 : vector<16x16xf32>
    %423 = arith.addf %389, %422 : vector<16x16xf32>
    %c173 = arith.constant 173 : index
    %424 = memref.load %arg1[%c173] : memref<512xf32, #tpu.memory_space<smem>>
    %425 = vector.broadcast %424 : f32 to vector<16x16xf32>
    %426 = arith.mulf %425, %411 : vector<16x16xf32>
    %427 = arith.addf %393, %426 : vector<16x16xf32>
    %c177 = arith.constant 177 : index
    %428 = memref.load %arg1[%c177] : memref<512xf32, #tpu.memory_space<smem>>
    %429 = vector.broadcast %428 : f32 to vector<16x16xf32>
    %430 = arith.mulf %429, %411 : vector<16x16xf32>
    %431 = arith.addf %397, %430 : vector<16x16xf32>
    %c181 = arith.constant 181 : index
    %432 = memref.load %arg1[%c181] : memref<512xf32, #tpu.memory_space<smem>>
    %433 = vector.broadcast %432 : f32 to vector<16x16xf32>
    %434 = arith.mulf %433, %411 : vector<16x16xf32>
    %435 = arith.addf %401, %434 : vector<16x16xf32>
    %c185 = arith.constant 185 : index
    %436 = memref.load %arg1[%c185] : memref<512xf32, #tpu.memory_space<smem>>
    %437 = vector.broadcast %436 : f32 to vector<16x16xf32>
    %438 = arith.mulf %437, %411 : vector<16x16xf32>
    %439 = arith.addf %405, %438 : vector<16x16xf32>
    %c189 = arith.constant 189 : index
    %440 = memref.load %arg1[%c189] : memref<512xf32, #tpu.memory_space<smem>>
    %441 = vector.broadcast %440 : f32 to vector<16x16xf32>
    %442 = arith.mulf %441, %411 : vector<16x16xf32>
    %443 = arith.addf %409, %442 : vector<16x16xf32>
    %c0_111 = arith.constant 0 : index
    %c2_112 = arith.constant 2 : index
    %c0_113 = arith.constant 0 : index
    %c1_114 = arith.constant 1 : index
    %444 = vector.load %arg4[%c0_111, %c2_112, %c0_113, %c1_114] : memref<1x4x17x17xf32, #tpu.memory_space<vmem>>, vector<1x1x16x16xf32>
    %445 = vector.shape_cast %444 : vector<1x1x16x16xf32> to vector<16x16xf32>
    %c162 = arith.constant 162 : index
    %446 = memref.load %arg1[%c162] : memref<512xf32, #tpu.memory_space<smem>>
    %447 = vector.broadcast %446 : f32 to vector<16x16xf32>
    %448 = arith.mulf %447, %445 : vector<16x16xf32>
    %449 = arith.addf %415, %448 : vector<16x16xf32>
    %c166 = arith.constant 166 : index
    %450 = memref.load %arg1[%c166] : memref<512xf32, #tpu.memory_space<smem>>
    %451 = vector.broadcast %450 : f32 to vector<16x16xf32>
    %452 = arith.mulf %451, %445 : vector<16x16xf32>
    %453 = arith.addf %419, %452 : vector<16x16xf32>
    %c170 = arith.constant 170 : index
    %454 = memref.load %arg1[%c170] : memref<512xf32, #tpu.memory_space<smem>>
    %455 = vector.broadcast %454 : f32 to vector<16x16xf32>
    %456 = arith.mulf %455, %445 : vector<16x16xf32>
    %457 = arith.addf %423, %456 : vector<16x16xf32>
    %c174 = arith.constant 174 : index
    %458 = memref.load %arg1[%c174] : memref<512xf32, #tpu.memory_space<smem>>
    %459 = vector.broadcast %458 : f32 to vector<16x16xf32>
    %460 = arith.mulf %459, %445 : vector<16x16xf32>
    %461 = arith.addf %427, %460 : vector<16x16xf32>
    %c178 = arith.constant 178 : index
    %462 = memref.load %arg1[%c178] : memref<512xf32, #tpu.memory_space<smem>>
    %463 = vector.broadcast %462 : f32 to vector<16x16xf32>
    %464 = arith.mulf %463, %445 : vector<16x16xf32>
    %465 = arith.addf %431, %464 : vector<16x16xf32>
    %c182 = arith.constant 182 : index
    %466 = memref.load %arg1[%c182] : memref<512xf32, #tpu.memory_space<smem>>
    %467 = vector.broadcast %466 : f32 to vector<16x16xf32>
    %468 = arith.mulf %467, %445 : vector<16x16xf32>
    %469 = arith.addf %435, %468 : vector<16x16xf32>
    %c186 = arith.constant 186 : index
    %470 = memref.load %arg1[%c186] : memref<512xf32, #tpu.memory_space<smem>>
    %471 = vector.broadcast %470 : f32 to vector<16x16xf32>
    %472 = arith.mulf %471, %445 : vector<16x16xf32>
    %473 = arith.addf %439, %472 : vector<16x16xf32>
    %c190 = arith.constant 190 : index
    %474 = memref.load %arg1[%c190] : memref<512xf32, #tpu.memory_space<smem>>
    %475 = vector.broadcast %474 : f32 to vector<16x16xf32>
    %476 = arith.mulf %475, %445 : vector<16x16xf32>
    %477 = arith.addf %443, %476 : vector<16x16xf32>
    %c0_115 = arith.constant 0 : index
    %c3_116 = arith.constant 3 : index
    %c0_117 = arith.constant 0 : index
    %c1_118 = arith.constant 1 : index
    %478 = vector.load %arg4[%c0_115, %c3_116, %c0_117, %c1_118] : memref<1x4x17x17xf32, #tpu.memory_space<vmem>>, vector<1x1x16x16xf32>
    %479 = vector.shape_cast %478 : vector<1x1x16x16xf32> to vector<16x16xf32>
    %c163 = arith.constant 163 : index
    %480 = memref.load %arg1[%c163] : memref<512xf32, #tpu.memory_space<smem>>
    %481 = vector.broadcast %480 : f32 to vector<16x16xf32>
    %482 = arith.mulf %481, %479 : vector<16x16xf32>
    %483 = arith.addf %449, %482 : vector<16x16xf32>
    %c167 = arith.constant 167 : index
    %484 = memref.load %arg1[%c167] : memref<512xf32, #tpu.memory_space<smem>>
    %485 = vector.broadcast %484 : f32 to vector<16x16xf32>
    %486 = arith.mulf %485, %479 : vector<16x16xf32>
    %487 = arith.addf %453, %486 : vector<16x16xf32>
    %c171 = arith.constant 171 : index
    %488 = memref.load %arg1[%c171] : memref<512xf32, #tpu.memory_space<smem>>
    %489 = vector.broadcast %488 : f32 to vector<16x16xf32>
    %490 = arith.mulf %489, %479 : vector<16x16xf32>
    %491 = arith.addf %457, %490 : vector<16x16xf32>
    %c175 = arith.constant 175 : index
    %492 = memref.load %arg1[%c175] : memref<512xf32, #tpu.memory_space<smem>>
    %493 = vector.broadcast %492 : f32 to vector<16x16xf32>
    %494 = arith.mulf %493, %479 : vector<16x16xf32>
    %495 = arith.addf %461, %494 : vector<16x16xf32>
    %c179 = arith.constant 179 : index
    %496 = memref.load %arg1[%c179] : memref<512xf32, #tpu.memory_space<smem>>
    %497 = vector.broadcast %496 : f32 to vector<16x16xf32>
    %498 = arith.mulf %497, %479 : vector<16x16xf32>
    %499 = arith.addf %465, %498 : vector<16x16xf32>
    %c183 = arith.constant 183 : index
    %500 = memref.load %arg1[%c183] : memref<512xf32, #tpu.memory_space<smem>>
    %501 = vector.broadcast %500 : f32 to vector<16x16xf32>
    %502 = arith.mulf %501, %479 : vector<16x16xf32>
    %503 = arith.addf %469, %502 : vector<16x16xf32>
    %c187 = arith.constant 187 : index
    %504 = memref.load %arg1[%c187] : memref<512xf32, #tpu.memory_space<smem>>
    %505 = vector.broadcast %504 : f32 to vector<16x16xf32>
    %506 = arith.mulf %505, %479 : vector<16x16xf32>
    %507 = arith.addf %473, %506 : vector<16x16xf32>
    %c191 = arith.constant 191 : index
    %508 = memref.load %arg1[%c191] : memref<512xf32, #tpu.memory_space<smem>>
    %509 = vector.broadcast %508 : f32 to vector<16x16xf32>
    %510 = arith.mulf %509, %479 : vector<16x16xf32>
    %511 = arith.addf %477, %510 : vector<16x16xf32>
    %c0_119 = arith.constant 0 : index
    %512 = memref.load %arg3[%c0_119] : memref<1xf32, #tpu.memory_space<smem>>
    %cst_120 = arith.constant 0.000000e+00 : f32
    %513 = vector.broadcast %cst_120 : f32 to vector<16x16xf32>
    %514 = arith.cmpf oge, %483, %513 : vector<16x16xf32>
    %515 = vector.broadcast %512 : f32 to vector<16x16xf32>
    %516 = arith.mulf %515, %483 : vector<16x16xf32>
    %517 = arith.select %514, %483, %516 : vector<16x16xi1>, vector<16x16xf32>
    %c0_121 = arith.constant 0 : index
    %c1_122 = arith.constant 1 : index
    %c0_123 = arith.constant 0 : index
    %c0_124 = arith.constant 0 : index
    %c0_125 = arith.constant 0 : index
    %518 = vector.load %arg5[%c0_121, %c1_122, %c0_123, %c0_124, %c0_125] : memref<1x4x8x16x16xf32, #tpu.memory_space<vmem>>, vector<1x1x1x16x16xf32>
    %519 = vector.shape_cast %518 : vector<1x1x1x16x16xf32> to vector<16x16xf32>
    %520 = vector.shape_cast %517 : vector<16x16xf32> to vector<1x1x1x16x16xf32>
    tpu.vector_store %arg5[%c0_121, %c1_122, %c0_123, %c0_124, %c0_125], %520 {strides = array<i32>} : memref<1x4x8x16x16xf32, #tpu.memory_space<vmem>>, vector<1x1x1x16x16xf32>,
    %c0_126 = arith.constant 0 : index
    %521 = memref.load %arg3[%c0_126] : memref<1xf32, #tpu.memory_space<smem>>
    %cst_127 = arith.constant 0.000000e+00 : f32
    %522 = vector.broadcast %cst_127 : f32 to vector<16x16xf32>
    %523 = arith.cmpf oge, %487, %522 : vector<16x16xf32>
    %524 = vector.broadcast %521 : f32 to vector<16x16xf32>
    %525 = arith.mulf %524, %487 : vector<16x16xf32>
    %526 = arith.select %523, %487, %525 : vector<16x16xi1>, vector<16x16xf32>
    %c0_128 = arith.constant 0 : index
    %c1_129 = arith.constant 1 : index
    %c1_130 = arith.constant 1 : index
    %c0_131 = arith.constant 0 : index
    %c0_132 = arith.constant 0 : index
    %527 = vector.load %arg5[%c0_128, %c1_129, %c1_130, %c0_131, %c0_132] : memref<1x4x8x16x16xf32, #tpu.memory_space<vmem>>, vector<1x1x1x16x16xf32>
    %528 = vector.shape_cast %527 : vector<1x1x1x16x16xf32> to vector<16x16xf32>
    %529 = vector.shape_cast %526 : vector<16x16xf32> to vector<1x1x1x16x16xf32>
    tpu.vector_store %arg5[%c0_128, %c1_129, %c1_130, %c0_131, %c0_132], %529 {strides = array<i32>} : memref<1x4x8x16x16xf32, #tpu.memory_space<vmem>>, vector<1x1x1x16x16xf32>,
    %c0_133 = arith.constant 0 : index
    %530 = memref.load %arg3[%c0_133] : memref<1xf32, #tpu.memory_space<smem>>
    %cst_134 = arith.constant 0.000000e+00 : f32
    %531 = vector.broadcast %cst_134 : f32 to vector<16x16xf32>
    %532 = arith.cmpf oge, %491, %531 : vector<16x16xf32>
    %533 = vector.broadcast %530 : f32 to vector<16x16xf32>
    %534 = arith.mulf %533, %491 : vector<16x16xf32>
    %535 = arith.select %532, %491, %534 : vector<16x16xi1>, vector<16x16xf32>
    %c0_135 = arith.constant 0 : index
    %c1_136 = arith.constant 1 : index
    %c2_137 = arith.constant 2 : index
    %c0_138 = arith.constant 0 : index
    %c0_139 = arith.constant 0 : index
    %536 = vector.load %arg5[%c0_135, %c1_136, %c2_137, %c0_138, %c0_139] : memref<1x4x8x16x16xf32, #tpu.memory_space<vmem>>, vector<1x1x1x16x16xf32>
    %537 = vector.shape_cast %536 : vector<1x1x1x16x16xf32> to vector<16x16xf32>
    %538 = vector.shape_cast %535 : vector<16x16xf32> to vector<1x1x1x16x16xf32>
    tpu.vector_store %arg5[%c0_135, %c1_136, %c2_137, %c0_138, %c0_139], %538 {strides = array<i32>} : memref<1x4x8x16x16xf32, #tpu.memory_space<vmem>>, vector<1x1x1x16x16xf32>,
    %c0_140 = arith.constant 0 : index
    %539 = memref.load %arg3[%c0_140] : memref<1xf32, #tpu.memory_space<smem>>
    %cst_141 = arith.constant 0.000000e+00 : f32
    %540 = vector.broadcast %cst_141 : f32 to vector<16x16xf32>
    %541 = arith.cmpf oge, %495, %540 : vector<16x16xf32>
    %542 = vector.broadcast %539 : f32 to vector<16x16xf32>
    %543 = arith.mulf %542, %495 : vector<16x16xf32>
    %544 = arith.select %541, %495, %543 : vector<16x16xi1>, vector<16x16xf32>
    %c0_142 = arith.constant 0 : index
    %c1_143 = arith.constant 1 : index
    %c3_144 = arith.constant 3 : index
    %c0_145 = arith.constant 0 : index
    %c0_146 = arith.constant 0 : index
    %545 = vector.load %arg5[%c0_142, %c1_143, %c3_144, %c0_145, %c0_146] : memref<1x4x8x16x16xf32, #tpu.memory_space<vmem>>, vector<1x1x1x16x16xf32>
    %546 = vector.shape_cast %545 : vector<1x1x1x16x16xf32> to vector<16x16xf32>
    %547 = vector.shape_cast %544 : vector<16x16xf32> to vector<1x1x1x16x16xf32>
    tpu.vector_store %arg5[%c0_142, %c1_143, %c3_144, %c0_145, %c0_146], %547 {strides = array<i32>} : memref<1x4x8x16x16xf32, #tpu.memory_space<vmem>>, vector<1x1x1x16x16xf32>,
    %c0_147 = arith.constant 0 : index
    %548 = memref.load %arg3[%c0_147] : memref<1xf32, #tpu.memory_space<smem>>
    %cst_148 = arith.constant 0.000000e+00 : f32
    %549 = vector.broadcast %cst_148 : f32 to vector<16x16xf32>
    %550 = arith.cmpf oge, %499, %549 : vector<16x16xf32>
    %551 = vector.broadcast %548 : f32 to vector<16x16xf32>
    %552 = arith.mulf %551, %499 : vector<16x16xf32>
    %553 = arith.select %550, %499, %552 : vector<16x16xi1>, vector<16x16xf32>
    %c0_149 = arith.constant 0 : index
    %c1_150 = arith.constant 1 : index
    %c4_151 = arith.constant 4 : index
    %c0_152 = arith.constant 0 : index
    %c0_153 = arith.constant 0 : index
    %554 = vector.load %arg5[%c0_149, %c1_150, %c4_151, %c0_152, %c0_153] : memref<1x4x8x16x16xf32, #tpu.memory_space<vmem>>, vector<1x1x1x16x16xf32>
    %555 = vector.shape_cast %554 : vector<1x1x1x16x16xf32> to vector<16x16xf32>
    %556 = vector.shape_cast %553 : vector<16x16xf32> to vector<1x1x1x16x16xf32>
    tpu.vector_store %arg5[%c0_149, %c1_150, %c4_151, %c0_152, %c0_153], %556 {strides = array<i32>} : memref<1x4x8x16x16xf32, #tpu.memory_space<vmem>>, vector<1x1x1x16x16xf32>,
    %c0_154 = arith.constant 0 : index
    %557 = memref.load %arg3[%c0_154] : memref<1xf32, #tpu.memory_space<smem>>
    %cst_155 = arith.constant 0.000000e+00 : f32
    %558 = vector.broadcast %cst_155 : f32 to vector<16x16xf32>
    %559 = arith.cmpf oge, %503, %558 : vector<16x16xf32>
    %560 = vector.broadcast %557 : f32 to vector<16x16xf32>
    %561 = arith.mulf %560, %503 : vector<16x16xf32>
    %562 = arith.select %559, %503, %561 : vector<16x16xi1>, vector<16x16xf32>
    %c0_156 = arith.constant 0 : index
    %c1_157 = arith.constant 1 : index
    %c5_158 = arith.constant 5 : index
    %c0_159 = arith.constant 0 : index
    %c0_160 = arith.constant 0 : index
    %563 = vector.load %arg5[%c0_156, %c1_157, %c5_158, %c0_159, %c0_160] : memref<1x4x8x16x16xf32, #tpu.memory_space<vmem>>, vector<1x1x1x16x16xf32>
    %564 = vector.shape_cast %563 : vector<1x1x1x16x16xf32> to vector<16x16xf32>
    %565 = vector.shape_cast %562 : vector<16x16xf32> to vector<1x1x1x16x16xf32>
    tpu.vector_store %arg5[%c0_156, %c1_157, %c5_158, %c0_159, %c0_160], %565 {strides = array<i32>} : memref<1x4x8x16x16xf32, #tpu.memory_space<vmem>>, vector<1x1x1x16x16xf32>,
    %c0_161 = arith.constant 0 : index
    %566 = memref.load %arg3[%c0_161] : memref<1xf32, #tpu.memory_space<smem>>
    %cst_162 = arith.constant 0.000000e+00 : f32
    %567 = vector.broadcast %cst_162 : f32 to vector<16x16xf32>
    %568 = arith.cmpf oge, %507, %567 : vector<16x16xf32>
    %569 = vector.broadcast %566 : f32 to vector<16x16xf32>
    %570 = arith.mulf %569, %507 : vector<16x16xf32>
    %571 = arith.select %568, %507, %570 : vector<16x16xi1>, vector<16x16xf32>
    %c0_163 = arith.constant 0 : index
    %c1_164 = arith.constant 1 : index
    %c6_165 = arith.constant 6 : index
    %c0_166 = arith.constant 0 : index
    %c0_167 = arith.constant 0 : index
    %572 = vector.load %arg5[%c0_163, %c1_164, %c6_165, %c0_166, %c0_167] : memref<1x4x8x16x16xf32, #tpu.memory_space<vmem>>, vector<1x1x1x16x16xf32>
    %573 = vector.shape_cast %572 : vector<1x1x1x16x16xf32> to vector<16x16xf32>
    %574 = vector.shape_cast %571 : vector<16x16xf32> to vector<1x1x1x16x16xf32>
    tpu.vector_store %arg5[%c0_163, %c1_164, %c6_165, %c0_166, %c0_167], %574 {strides = array<i32>} : memref<1x4x8x16x16xf32, #tpu.memory_space<vmem>>, vector<1x1x1x16x16xf32>,
    %c0_168 = arith.constant 0 : index
    %575 = memref.load %arg3[%c0_168] : memref<1xf32, #tpu.memory_space<smem>>
    %cst_169 = arith.constant 0.000000e+00 : f32
    %576 = vector.broadcast %cst_169 : f32 to vector<16x16xf32>
    %577 = arith.cmpf oge, %511, %576 : vector<16x16xf32>
    %578 = vector.broadcast %575 : f32 to vector<16x16xf32>
    %579 = arith.mulf %578, %511 : vector<16x16xf32>
    %580 = arith.select %577, %511, %579 : vector<16x16xi1>, vector<16x16xf32>
    %c0_170 = arith.constant 0 : index
    %c1_171 = arith.constant 1 : index
    %c7_172 = arith.constant 7 : index
    %c0_173 = arith.constant 0 : index
    %c0_174 = arith.constant 0 : index
    %581 = vector.load %arg5[%c0_170, %c1_171, %c7_172, %c0_173, %c0_174] : memref<1x4x8x16x16xf32, #tpu.memory_space<vmem>>, vector<1x1x1x16x16xf32>
    %582 = vector.shape_cast %581 : vector<1x1x1x16x16xf32> to vector<16x16xf32>
    %583 = vector.shape_cast %580 : vector<16x16xf32> to vector<1x1x1x16x16xf32>
    tpu.vector_store %arg5[%c0_170, %c1_171, %c7_172, %c0_173, %c0_174], %583 {strides = array<i32>} : memref<1x4x8x16x16xf32, #tpu.memory_space<vmem>>, vector<1x1x1x16x16xf32>,
    %c0_175 = arith.constant 0 : index
    %584 = memref.load %arg2[%c0_175] : memref<8xf32, #tpu.memory_space<smem>>
    %585 = vector.broadcast %584 : f32 to vector<16x16xf32>
    %c1_176 = arith.constant 1 : index
    %586 = memref.load %arg2[%c1_176] : memref<8xf32, #tpu.memory_space<smem>>
    %587 = vector.broadcast %586 : f32 to vector<16x16xf32>
    %c2_177 = arith.constant 2 : index
    %588 = memref.load %arg2[%c2_177] : memref<8xf32, #tpu.memory_space<smem>>
    %589 = vector.broadcast %588 : f32 to vector<16x16xf32>
    %c3_178 = arith.constant 3 : index
    %590 = memref.load %arg2[%c3_178] : memref<8xf32, #tpu.memory_space<smem>>
    %591 = vector.broadcast %590 : f32 to vector<16x16xf32>
    %c4_179 = arith.constant 4 : index
    %592 = memref.load %arg2[%c4_179] : memref<8xf32, #tpu.memory_space<smem>>
    %593 = vector.broadcast %592 : f32 to vector<16x16xf32>
    %c5_180 = arith.constant 5 : index
    %594 = memref.load %arg2[%c5_180] : memref<8xf32, #tpu.memory_space<smem>>
    %595 = vector.broadcast %594 : f32 to vector<16x16xf32>
    %c6_181 = arith.constant 6 : index
    %596 = memref.load %arg2[%c6_181] : memref<8xf32, #tpu.memory_space<smem>>
    %597 = vector.broadcast %596 : f32 to vector<16x16xf32>
    %c7_182 = arith.constant 7 : index
    %598 = memref.load %arg2[%c7_182] : memref<8xf32, #tpu.memory_space<smem>>
    %599 = vector.broadcast %598 : f32 to vector<16x16xf32>
    %c0_183 = arith.constant 0 : index
    %c0_184 = arith.constant 0 : index
    %c0_185 = arith.constant 0 : index
    %c0_186 = arith.constant 0 : index
    %600 = vector.load %arg4[%c0_183, %c0_184, %c0_185, %c0_186] : memref<1x4x17x17xf32, #tpu.memory_space<vmem>>, vector<1x1x16x16xf32>
    %601 = vector.shape_cast %600 : vector<1x1x16x16xf32> to vector<16x16xf32>
    %c256 = arith.constant 256 : index
    %602 = memref.load %arg1[%c256] : memref<512xf32, #tpu.memory_space<smem>>
    %603 = vector.broadcast %602 : f32 to vector<16x16xf32>
    %604 = arith.mulf %603, %601 : vector<16x16xf32>
    %605 = arith.addf %585, %604 : vector<16x16xf32>
    %c260 = arith.constant 260 : index
    %606 = memref.load %arg1[%c260] : memref<512xf32, #tpu.memory_space<smem>>
    %607 = vector.broadcast %606 : f32 to vector<16x16xf32>
    %608 = arith.mulf %607, %601 : vector<16x16xf32>
    %609 = arith.addf %587, %608 : vector<16x16xf32>
    %c264 = arith.constant 264 : index
    %610 = memref.load %arg1[%c264] : memref<512xf32, #tpu.memory_space<smem>>
    %611 = vector.broadcast %610 : f32 to vector<16x16xf32>
    %612 = arith.mulf %611, %601 : vector<16x16xf32>
    %613 = arith.addf %589, %612 : vector<16x16xf32>
    %c268 = arith.constant 268 : index
    %614 = memref.load %arg1[%c268] : memref<512xf32, #tpu.memory_space<smem>>
    %615 = vector.broadcast %614 : f32 to vector<16x16xf32>
    %616 = arith.mulf %615, %601 : vector<16x16xf32>
    %617 = arith.addf %591, %616 : vector<16x16xf32>
    %c272 = arith.constant 272 : index
    %618 = memref.load %arg1[%c272] : memref<512xf32, #tpu.memory_space<smem>>
    %619 = vector.broadcast %618 : f32 to vector<16x16xf32>
    %620 = arith.mulf %619, %601 : vector<16x16xf32>
    %621 = arith.addf %593, %620 : vector<16x16xf32>
    %c276 = arith.constant 276 : index
    %622 = memref.load %arg1[%c276] : memref<512xf32, #tpu.memory_space<smem>>
    %623 = vector.broadcast %622 : f32 to vector<16x16xf32>
    %624 = arith.mulf %623, %601 : vector<16x16xf32>
    %625 = arith.addf %595, %624 : vector<16x16xf32>
    %c280 = arith.constant 280 : index
    %626 = memref.load %arg1[%c280] : memref<512xf32, #tpu.memory_space<smem>>
    %627 = vector.broadcast %626 : f32 to vector<16x16xf32>
    %628 = arith.mulf %627, %601 : vector<16x16xf32>
    %629 = arith.addf %597, %628 : vector<16x16xf32>
    %c284 = arith.constant 284 : index
    %630 = memref.load %arg1[%c284] : memref<512xf32, #tpu.memory_space<smem>>
    %631 = vector.broadcast %630 : f32 to vector<16x16xf32>
    %632 = arith.mulf %631, %601 : vector<16x16xf32>
    %633 = arith.addf %599, %632 : vector<16x16xf32>
    %c0_187 = arith.constant 0 : index
    %c1_188 = arith.constant 1 : index
    %c0_189 = arith.constant 0 : index
    %c0_190 = arith.constant 0 : index
    %634 = vector.load %arg4[%c0_187, %c1_188, %c0_189, %c0_190] : memref<1x4x17x17xf32, #tpu.memory_space<vmem>>, vector<1x1x16x16xf32>
    %635 = vector.shape_cast %634 : vector<1x1x16x16xf32> to vector<16x16xf32>
    %c257 = arith.constant 257 : index
    %636 = memref.load %arg1[%c257] : memref<512xf32, #tpu.memory_space<smem>>
    %637 = vector.broadcast %636 : f32 to vector<16x16xf32>
    %638 = arith.mulf %637, %635 : vector<16x16xf32>
    %639 = arith.addf %605, %638 : vector<16x16xf32>
    %c261 = arith.constant 261 : index
    %640 = memref.load %arg1[%c261] : memref<512xf32, #tpu.memory_space<smem>>
    %641 = vector.broadcast %640 : f32 to vector<16x16xf32>
    %642 = arith.mulf %641, %635 : vector<16x16xf32>
    %643 = arith.addf %609, %642 : vector<16x16xf32>
    %c265 = arith.constant 265 : index
    %644 = memref.load %arg1[%c265] : memref<512xf32, #tpu.memory_space<smem>>
    %645 = vector.broadcast %644 : f32 to vector<16x16xf32>
    %646 = arith.mulf %645, %635 : vector<16x16xf32>
    %647 = arith.addf %613, %646 : vector<16x16xf32>
    %c269 = arith.constant 269 : index
    %648 = memref.load %arg1[%c269] : memref<512xf32, #tpu.memory_space<smem>>
    %649 = vector.broadcast %648 : f32 to vector<16x16xf32>
    %650 = arith.mulf %649, %635 : vector<16x16xf32>
    %651 = arith.addf %617, %650 : vector<16x16xf32>
    %c273 = arith.constant 273 : index
    %652 = memref.load %arg1[%c273] : memref<512xf32, #tpu.memory_space<smem>>
    %653 = vector.broadcast %652 : f32 to vector<16x16xf32>
    %654 = arith.mulf %653, %635 : vector<16x16xf32>
    %655 = arith.addf %621, %654 : vector<16x16xf32>
    %c277 = arith.constant 277 : index
    %656 = memref.load %arg1[%c277] : memref<512xf32, #tpu.memory_space<smem>>
    %657 = vector.broadcast %656 : f32 to vector<16x16xf32>
    %658 = arith.mulf %657, %635 : vector<16x16xf32>
    %659 = arith.addf %625, %658 : vector<16x16xf32>
    %c281 = arith.constant 281 : index
    %660 = memref.load %arg1[%c281] : memref<512xf32, #tpu.memory_space<smem>>
    %661 = vector.broadcast %660 : f32 to vector<16x16xf32>
    %662 = arith.mulf %661, %635 : vector<16x16xf32>
    %663 = arith.addf %629, %662 : vector<16x16xf32>
    %c285 = arith.constant 285 : index
    %664 = memref.load %arg1[%c285] : memref<512xf32, #tpu.memory_space<smem>>
    %665 = vector.broadcast %664 : f32 to vector<16x16xf32>
    %666 = arith.mulf %665, %635 : vector<16x16xf32>
    %667 = arith.addf %633, %666 : vector<16x16xf32>
    %c0_191 = arith.constant 0 : index
    %c2_192 = arith.constant 2 : index
    %c0_193 = arith.constant 0 : index
    %c0_194 = arith.constant 0 : index
    %668 = vector.load %arg4[%c0_191, %c2_192, %c0_193, %c0_194] : memref<1x4x17x17xf32, #tpu.memory_space<vmem>>, vector<1x1x16x16xf32>
    %669 = vector.shape_cast %668 : vector<1x1x16x16xf32> to vector<16x16xf32>
    %c258 = arith.constant 258 : index
    %670 = memref.load %arg1[%c258] : memref<512xf32, #tpu.memory_space<smem>>
    %671 = vector.broadcast %670 : f32 to vector<16x16xf32>
    %672 = arith.mulf %671, %669 : vector<16x16xf32>
    %673 = arith.addf %639, %672 : vector<16x16xf32>
    %c262 = arith.constant 262 : index
    %674 = memref.load %arg1[%c262] : memref<512xf32, #tpu.memory_space<smem>>
    %675 = vector.broadcast %674 : f32 to vector<16x16xf32>
    %676 = arith.mulf %675, %669 : vector<16x16xf32>
    %677 = arith.addf %643, %676 : vector<16x16xf32>
    %c266 = arith.constant 266 : index
    %678 = memref.load %arg1[%c266] : memref<512xf32, #tpu.memory_space<smem>>
    %679 = vector.broadcast %678 : f32 to vector<16x16xf32>
    %680 = arith.mulf %679, %669 : vector<16x16xf32>
    %681 = arith.addf %647, %680 : vector<16x16xf32>
    %c270 = arith.constant 270 : index
    %682 = memref.load %arg1[%c270] : memref<512xf32, #tpu.memory_space<smem>>
    %683 = vector.broadcast %682 : f32 to vector<16x16xf32>
    %684 = arith.mulf %683, %669 : vector<16x16xf32>
    %685 = arith.addf %651, %684 : vector<16x16xf32>
    %c274 = arith.constant 274 : index
    %686 = memref.load %arg1[%c274] : memref<512xf32, #tpu.memory_space<smem>>
    %687 = vector.broadcast %686 : f32 to vector<16x16xf32>
    %688 = arith.mulf %687, %669 : vector<16x16xf32>
    %689 = arith.addf %655, %688 : vector<16x16xf32>
    %c278 = arith.constant 278 : index
    %690 = memref.load %arg1[%c278] : memref<512xf32, #tpu.memory_space<smem>>
    %691 = vector.broadcast %690 : f32 to vector<16x16xf32>
    %692 = arith.mulf %691, %669 : vector<16x16xf32>
    %693 = arith.addf %659, %692 : vector<16x16xf32>
    %c282 = arith.constant 282 : index
    %694 = memref.load %arg1[%c282] : memref<512xf32, #tpu.memory_space<smem>>
    %695 = vector.broadcast %694 : f32 to vector<16x16xf32>
    %696 = arith.mulf %695, %669 : vector<16x16xf32>
    %697 = arith.addf %663, %696 : vector<16x16xf32>
    %c286 = arith.constant 286 : index
    %698 = memref.load %arg1[%c286] : memref<512xf32, #tpu.memory_space<smem>>
    %699 = vector.broadcast %698 : f32 to vector<16x16xf32>
    %700 = arith.mulf %699, %669 : vector<16x16xf32>
    %701 = arith.addf %667, %700 : vector<16x16xf32>
    %c0_195 = arith.constant 0 : index
    %c3_196 = arith.constant 3 : index
    %c0_197 = arith.constant 0 : index
    %c0_198 = arith.constant 0 : index
    %702 = vector.load %arg4[%c0_195, %c3_196, %c0_197, %c0_198] : memref<1x4x17x17xf32, #tpu.memory_space<vmem>>, vector<1x1x16x16xf32>
    %703 = vector.shape_cast %702 : vector<1x1x16x16xf32> to vector<16x16xf32>
    %c259 = arith.constant 259 : index
    %704 = memref.load %arg1[%c259] : memref<512xf32, #tpu.memory_space<smem>>
    %705 = vector.broadcast %704 : f32 to vector<16x16xf32>
    %706 = arith.mulf %705, %703 : vector<16x16xf32>
    %707 = arith.addf %673, %706 : vector<16x16xf32>
    %c263 = arith.constant 263 : index
    %708 = memref.load %arg1[%c263] : memref<512xf32, #tpu.memory_space<smem>>
    %709 = vector.broadcast %708 : f32 to vector<16x16xf32>
    %710 = arith.mulf %709, %703 : vector<16x16xf32>
    %711 = arith.addf %677, %710 : vector<16x16xf32>
    %c267 = arith.constant 267 : index
    %712 = memref.load %arg1[%c267] : memref<512xf32, #tpu.memory_space<smem>>
    %713 = vector.broadcast %712 : f32 to vector<16x16xf32>
    %714 = arith.mulf %713, %703 : vector<16x16xf32>
    %715 = arith.addf %681, %714 : vector<16x16xf32>
    %c271 = arith.constant 271 : index
    %716 = memref.load %arg1[%c271] : memref<512xf32, #tpu.memory_space<smem>>
    %717 = vector.broadcast %716 : f32 to vector<16x16xf32>
    %718 = arith.mulf %717, %703 : vector<16x16xf32>
    %719 = arith.addf %685, %718 : vector<16x16xf32>
    %c275 = arith.constant 275 : index
    %720 = memref.load %arg1[%c275] : memref<512xf32, #tpu.memory_space<smem>>
    %721 = vector.broadcast %720 : f32 to vector<16x16xf32>
    %722 = arith.mulf %721, %703 : vector<16x16xf32>
    %723 = arith.addf %689, %722 : vector<16x16xf32>
    %c279 = arith.constant 279 : index
    %724 = memref.load %arg1[%c279] : memref<512xf32, #tpu.memory_space<smem>>
    %725 = vector.broadcast %724 : f32 to vector<16x16xf32>
    %726 = arith.mulf %725, %703 : vector<16x16xf32>
    %727 = arith.addf %693, %726 : vector<16x16xf32>
    %c283 = arith.constant 283 : index
    %728 = memref.load %arg1[%c283] : memref<512xf32, #tpu.memory_space<smem>>
    %729 = vector.broadcast %728 : f32 to vector<16x16xf32>
    %730 = arith.mulf %729, %703 : vector<16x16xf32>
    %731 = arith.addf %697, %730 : vector<16x16xf32>
    %c287 = arith.constant 287 : index
    %732 = memref.load %arg1[%c287] : memref<512xf32, #tpu.memory_space<smem>>
    %733 = vector.broadcast %732 : f32 to vector<16x16xf32>
    %734 = arith.mulf %733, %703 : vector<16x16xf32>
    %735 = arith.addf %701, %734 : vector<16x16xf32>
    %c0_199 = arith.constant 0 : index
    %c0_200 = arith.constant 0 : index
    %c1_201 = arith.constant 1 : index
    %c0_202 = arith.constant 0 : index
    %736 = vector.load %arg4[%c0_199, %c0_200, %c1_201, %c0_202] : memref<1x4x17x17xf32, #tpu.memory_space<vmem>>, vector<1x1x16x16xf32>
    %737 = vector.shape_cast %736 : vector<1x1x16x16xf32> to vector<16x16xf32>
    %c320 = arith.constant 320 : index
    %738 = memref.load %arg1[%c320] : memref<512xf32, #tpu.memory_space<smem>>
    %739 = vector.broadcast %738 : f32 to vector<16x16xf32>
    %740 = arith.mulf %739, %737 : vector<16x16xf32>
    %741 = arith.addf %707, %740 : vector<16x16xf32>
    %c324 = arith.constant 324 : index
    %742 = memref.load %arg1[%c324] : memref<512xf32, #tpu.memory_space<smem>>
    %743 = vector.broadcast %742 : f32 to vector<16x16xf32>
    %744 = arith.mulf %743, %737 : vector<16x16xf32>
    %745 = arith.addf %711, %744 : vector<16x16xf32>
    %c328 = arith.constant 328 : index
    %746 = memref.load %arg1[%c328] : memref<512xf32, #tpu.memory_space<smem>>
    %747 = vector.broadcast %746 : f32 to vector<16x16xf32>
    %748 = arith.mulf %747, %737 : vector<16x16xf32>
    %749 = arith.addf %715, %748 : vector<16x16xf32>
    %c332 = arith.constant 332 : index
    %750 = memref.load %arg1[%c332] : memref<512xf32, #tpu.memory_space<smem>>
    %751 = vector.broadcast %750 : f32 to vector<16x16xf32>
    %752 = arith.mulf %751, %737 : vector<16x16xf32>
    %753 = arith.addf %719, %752 : vector<16x16xf32>
    %c336 = arith.constant 336 : index
    %754 = memref.load %arg1[%c336] : memref<512xf32, #tpu.memory_space<smem>>
    %755 = vector.broadcast %754 : f32 to vector<16x16xf32>
    %756 = arith.mulf %755, %737 : vector<16x16xf32>
    %757 = arith.addf %723, %756 : vector<16x16xf32>
    %c340 = arith.constant 340 : index
    %758 = memref.load %arg1[%c340] : memref<512xf32, #tpu.memory_space<smem>>
    %759 = vector.broadcast %758 : f32 to vector<16x16xf32>
    %760 = arith.mulf %759, %737 : vector<16x16xf32>
    %761 = arith.addf %727, %760 : vector<16x16xf32>
    %c344 = arith.constant 344 : index
    %762 = memref.load %arg1[%c344] : memref<512xf32, #tpu.memory_space<smem>>
    %763 = vector.broadcast %762 : f32 to vector<16x16xf32>
    %764 = arith.mulf %763, %737 : vector<16x16xf32>
    %765 = arith.addf %731, %764 : vector<16x16xf32>
    %c348 = arith.constant 348 : index
    %766 = memref.load %arg1[%c348] : memref<512xf32, #tpu.memory_space<smem>>
    %767 = vector.broadcast %766 : f32 to vector<16x16xf32>
    %768 = arith.mulf %767, %737 : vector<16x16xf32>
    %769 = arith.addf %735, %768 : vector<16x16xf32>
    %c0_203 = arith.constant 0 : index
    %c1_204 = arith.constant 1 : index
    %c1_205 = arith.constant 1 : index
    %c0_206 = arith.constant 0 : index
    %770 = vector.load %arg4[%c0_203, %c1_204, %c1_205, %c0_206] : memref<1x4x17x17xf32, #tpu.memory_space<vmem>>, vector<1x1x16x16xf32>
    %771 = vector.shape_cast %770 : vector<1x1x16x16xf32> to vector<16x16xf32>
    %c321 = arith.constant 321 : index
    %772 = memref.load %arg1[%c321] : memref<512xf32, #tpu.memory_space<smem>>
    %773 = vector.broadcast %772 : f32 to vector<16x16xf32>
    %774 = arith.mulf %773, %771 : vector<16x16xf32>
    %775 = arith.addf %741, %774 : vector<16x16xf32>
    %c325 = arith.constant 325 : index
    %776 = memref.load %arg1[%c325] : memref<512xf32, #tpu.memory_space<smem>>
    %777 = vector.broadcast %776 : f32 to vector<16x16xf32>
    %778 = arith.mulf %777, %771 : vector<16x16xf32>
    %779 = arith.addf %745, %778 : vector<16x16xf32>
    %c329 = arith.constant 329 : index
    %780 = memref.load %arg1[%c329] : memref<512xf32, #tpu.memory_space<smem>>
    %781 = vector.broadcast %780 : f32 to vector<16x16xf32>
    %782 = arith.mulf %781, %771 : vector<16x16xf32>
    %783 = arith.addf %749, %782 : vector<16x16xf32>
    %c333 = arith.constant 333 : index
    %784 = memref.load %arg1[%c333] : memref<512xf32, #tpu.memory_space<smem>>
    %785 = vector.broadcast %784 : f32 to vector<16x16xf32>
    %786 = arith.mulf %785, %771 : vector<16x16xf32>
    %787 = arith.addf %753, %786 : vector<16x16xf32>
    %c337 = arith.constant 337 : index
    %788 = memref.load %arg1[%c337] : memref<512xf32, #tpu.memory_space<smem>>
    %789 = vector.broadcast %788 : f32 to vector<16x16xf32>
    %790 = arith.mulf %789, %771 : vector<16x16xf32>
    %791 = arith.addf %757, %790 : vector<16x16xf32>
    %c341 = arith.constant 341 : index
    %792 = memref.load %arg1[%c341] : memref<512xf32, #tpu.memory_space<smem>>
    %793 = vector.broadcast %792 : f32 to vector<16x16xf32>
    %794 = arith.mulf %793, %771 : vector<16x16xf32>
    %795 = arith.addf %761, %794 : vector<16x16xf32>
    %c345 = arith.constant 345 : index
    %796 = memref.load %arg1[%c345] : memref<512xf32, #tpu.memory_space<smem>>
    %797 = vector.broadcast %796 : f32 to vector<16x16xf32>
    %798 = arith.mulf %797, %771 : vector<16x16xf32>
    %799 = arith.addf %765, %798 : vector<16x16xf32>
    %c349 = arith.constant 349 : index
    %800 = memref.load %arg1[%c349] : memref<512xf32, #tpu.memory_space<smem>>
    %801 = vector.broadcast %800 : f32 to vector<16x16xf32>
    %802 = arith.mulf %801, %771 : vector<16x16xf32>
    %803 = arith.addf %769, %802 : vector<16x16xf32>
    %c0_207 = arith.constant 0 : index
    %c2_208 = arith.constant 2 : index
    %c1_209 = arith.constant 1 : index
    %c0_210 = arith.constant 0 : index
    %804 = vector.load %arg4[%c0_207, %c2_208, %c1_209, %c0_210] : memref<1x4x17x17xf32, #tpu.memory_space<vmem>>, vector<1x1x16x16xf32>
    %805 = vector.shape_cast %804 : vector<1x1x16x16xf32> to vector<16x16xf32>
    %c322 = arith.constant 322 : index
    %806 = memref.load %arg1[%c322] : memref<512xf32, #tpu.memory_space<smem>>
    %807 = vector.broadcast %806 : f32 to vector<16x16xf32>
    %808 = arith.mulf %807, %805 : vector<16x16xf32>
    %809 = arith.addf %775, %808 : vector<16x16xf32>
    %c326 = arith.constant 326 : index
    %810 = memref.load %arg1[%c326] : memref<512xf32, #tpu.memory_space<smem>>
    %811 = vector.broadcast %810 : f32 to vector<16x16xf32>
    %812 = arith.mulf %811, %805 : vector<16x16xf32>
    %813 = arith.addf %779, %812 : vector<16x16xf32>
    %c330 = arith.constant 330 : index
    %814 = memref.load %arg1[%c330] : memref<512xf32, #tpu.memory_space<smem>>
    %815 = vector.broadcast %814 : f32 to vector<16x16xf32>
    %816 = arith.mulf %815, %805 : vector<16x16xf32>
    %817 = arith.addf %783, %816 : vector<16x16xf32>
    %c334 = arith.constant 334 : index
    %818 = memref.load %arg1[%c334] : memref<512xf32, #tpu.memory_space<smem>>
    %819 = vector.broadcast %818 : f32 to vector<16x16xf32>
    %820 = arith.mulf %819, %805 : vector<16x16xf32>
    %821 = arith.addf %787, %820 : vector<16x16xf32>
    %c338 = arith.constant 338 : index
    %822 = memref.load %arg1[%c338] : memref<512xf32, #tpu.memory_space<smem>>
    %823 = vector.broadcast %822 : f32 to vector<16x16xf32>
    %824 = arith.mulf %823, %805 : vector<16x16xf32>
    %825 = arith.addf %791, %824 : vector<16x16xf32>
    %c342 = arith.constant 342 : index
    %826 = memref.load %arg1[%c342] : memref<512xf32, #tpu.memory_space<smem>>
    %827 = vector.broadcast %826 : f32 to vector<16x16xf32>
    %828 = arith.mulf %827, %805 : vector<16x16xf32>
    %829 = arith.addf %795, %828 : vector<16x16xf32>
    %c346 = arith.constant 346 : index
    %830 = memref.load %arg1[%c346] : memref<512xf32, #tpu.memory_space<smem>>
    %831 = vector.broadcast %830 : f32 to vector<16x16xf32>
    %832 = arith.mulf %831, %805 : vector<16x16xf32>
    %833 = arith.addf %799, %832 : vector<16x16xf32>
    %c350 = arith.constant 350 : index
    %834 = memref.load %arg1[%c350] : memref<512xf32, #tpu.memory_space<smem>>
    %835 = vector.broadcast %834 : f32 to vector<16x16xf32>
    %836 = arith.mulf %835, %805 : vector<16x16xf32>
    %837 = arith.addf %803, %836 : vector<16x16xf32>
    %c0_211 = arith.constant 0 : index
    %c3_212 = arith.constant 3 : index
    %c1_213 = arith.constant 1 : index
    %c0_214 = arith.constant 0 : index
    %838 = vector.load %arg4[%c0_211, %c3_212, %c1_213, %c0_214] : memref<1x4x17x17xf32, #tpu.memory_space<vmem>>, vector<1x1x16x16xf32>
    %839 = vector.shape_cast %838 : vector<1x1x16x16xf32> to vector<16x16xf32>
    %c323 = arith.constant 323 : index
    %840 = memref.load %arg1[%c323] : memref<512xf32, #tpu.memory_space<smem>>
    %841 = vector.broadcast %840 : f32 to vector<16x16xf32>
    %842 = arith.mulf %841, %839 : vector<16x16xf32>
    %843 = arith.addf %809, %842 : vector<16x16xf32>
    %c327 = arith.constant 327 : index
    %844 = memref.load %arg1[%c327] : memref<512xf32, #tpu.memory_space<smem>>
    %845 = vector.broadcast %844 : f32 to vector<16x16xf32>
    %846 = arith.mulf %845, %839 : vector<16x16xf32>
    %847 = arith.addf %813, %846 : vector<16x16xf32>
    %c331 = arith.constant 331 : index
    %848 = memref.load %arg1[%c331] : memref<512xf32, #tpu.memory_space<smem>>
    %849 = vector.broadcast %848 : f32 to vector<16x16xf32>
    %850 = arith.mulf %849, %839 : vector<16x16xf32>
    %851 = arith.addf %817, %850 : vector<16x16xf32>
    %c335 = arith.constant 335 : index
    %852 = memref.load %arg1[%c335] : memref<512xf32, #tpu.memory_space<smem>>
    %853 = vector.broadcast %852 : f32 to vector<16x16xf32>
    %854 = arith.mulf %853, %839 : vector<16x16xf32>
    %855 = arith.addf %821, %854 : vector<16x16xf32>
    %c339 = arith.constant 339 : index
    %856 = memref.load %arg1[%c339] : memref<512xf32, #tpu.memory_space<smem>>
    %857 = vector.broadcast %856 : f32 to vector<16x16xf32>
    %858 = arith.mulf %857, %839 : vector<16x16xf32>
    %859 = arith.addf %825, %858 : vector<16x16xf32>
    %c343 = arith.constant 343 : index
    %860 = memref.load %arg1[%c343] : memref<512xf32, #tpu.memory_space<smem>>
    %861 = vector.broadcast %860 : f32 to vector<16x16xf32>
    %862 = arith.mulf %861, %839 : vector<16x16xf32>
    %863 = arith.addf %829, %862 : vector<16x16xf32>
    %c347 = arith.constant 347 : index
    %864 = memref.load %arg1[%c347] : memref<512xf32, #tpu.memory_space<smem>>
    %865 = vector.broadcast %864 : f32 to vector<16x16xf32>
    %866 = arith.mulf %865, %839 : vector<16x16xf32>
    %867 = arith.addf %833, %866 : vector<16x16xf32>
    %c351 = arith.constant 351 : index
    %868 = memref.load %arg1[%c351] : memref<512xf32, #tpu.memory_space<smem>>
    %869 = vector.broadcast %868 : f32 to vector<16x16xf32>
    %870 = arith.mulf %869, %839 : vector<16x16xf32>
    %871 = arith.addf %837, %870 : vector<16x16xf32>
    %c0_215 = arith.constant 0 : index
    %872 = memref.load %arg3[%c0_215] : memref<1xf32, #tpu.memory_space<smem>>
    %cst_216 = arith.constant 0.000000e+00 : f32
    %873 = vector.broadcast %cst_216 : f32 to vector<16x16xf32>
    %874 = arith.cmpf oge, %843, %873 : vector<16x16xf32>
    %875 = vector.broadcast %872 : f32 to vector<16x16xf32>
    %876 = arith.mulf %875, %843 : vector<16x16xf32>
    %877 = arith.select %874, %843, %876 : vector<16x16xi1>, vector<16x16xf32>
    %c0_217 = arith.constant 0 : index
    %c2_218 = arith.constant 2 : index
    %c0_219 = arith.constant 0 : index
    %c0_220 = arith.constant 0 : index
    %c0_221 = arith.constant 0 : index
    %878 = vector.load %arg5[%c0_217, %c2_218, %c0_219, %c0_220, %c0_221] : memref<1x4x8x16x16xf32, #tpu.memory_space<vmem>>, vector<1x1x1x16x16xf32>
    %879 = vector.shape_cast %878 : vector<1x1x1x16x16xf32> to vector<16x16xf32>
    %880 = vector.shape_cast %877 : vector<16x16xf32> to vector<1x1x1x16x16xf32>
    tpu.vector_store %arg5[%c0_217, %c2_218, %c0_219, %c0_220, %c0_221], %880 {strides = array<i32>} : memref<1x4x8x16x16xf32, #tpu.memory_space<vmem>>, vector<1x1x1x16x16xf32>,
    %c0_222 = arith.constant 0 : index
    %881 = memref.load %arg3[%c0_222] : memref<1xf32, #tpu.memory_space<smem>>
    %cst_223 = arith.constant 0.000000e+00 : f32
    %882 = vector.broadcast %cst_223 : f32 to vector<16x16xf32>
    %883 = arith.cmpf oge, %847, %882 : vector<16x16xf32>
    %884 = vector.broadcast %881 : f32 to vector<16x16xf32>
    %885 = arith.mulf %884, %847 : vector<16x16xf32>
    %886 = arith.select %883, %847, %885 : vector<16x16xi1>, vector<16x16xf32>
    %c0_224 = arith.constant 0 : index
    %c2_225 = arith.constant 2 : index
    %c1_226 = arith.constant 1 : index
    %c0_227 = arith.constant 0 : index
    %c0_228 = arith.constant 0 : index
    %887 = vector.load %arg5[%c0_224, %c2_225, %c1_226, %c0_227, %c0_228] : memref<1x4x8x16x16xf32, #tpu.memory_space<vmem>>, vector<1x1x1x16x16xf32>
    %888 = vector.shape_cast %887 : vector<1x1x1x16x16xf32> to vector<16x16xf32>
    %889 = vector.shape_cast %886 : vector<16x16xf32> to vector<1x1x1x16x16xf32>
    tpu.vector_store %arg5[%c0_224, %c2_225, %c1_226, %c0_227, %c0_228], %889 {strides = array<i32>} : memref<1x4x8x16x16xf32, #tpu.memory_space<vmem>>, vector<1x1x1x16x16xf32>,
    %c0_229 = arith.constant 0 : index
    %890 = memref.load %arg3[%c0_229] : memref<1xf32, #tpu.memory_space<smem>>
    %cst_230 = arith.constant 0.000000e+00 : f32
    %891 = vector.broadcast %cst_230 : f32 to vector<16x16xf32>
    %892 = arith.cmpf oge, %851, %891 : vector<16x16xf32>
    %893 = vector.broadcast %890 : f32 to vector<16x16xf32>
    %894 = arith.mulf %893, %851 : vector<16x16xf32>
    %895 = arith.select %892, %851, %894 : vector<16x16xi1>, vector<16x16xf32>
    %c0_231 = arith.constant 0 : index
    %c2_232 = arith.constant 2 : index
    %c2_233 = arith.constant 2 : index
    %c0_234 = arith.constant 0 : index
    %c0_235 = arith.constant 0 : index
    %896 = vector.load %arg5[%c0_231, %c2_232, %c2_233, %c0_234, %c0_235] : memref<1x4x8x16x16xf32, #tpu.memory_space<vmem>>, vector<1x1x1x16x16xf32>
    %897 = vector.shape_cast %896 : vector<1x1x1x16x16xf32> to vector<16x16xf32>
    %898 = vector.shape_cast %895 : vector<16x16xf32> to vector<1x1x1x16x16xf32>
    tpu.vector_store %arg5[%c0_231, %c2_232, %c2_233, %c0_234, %c0_235], %898 {strides = array<i32>} : memref<1x4x8x16x16xf32, #tpu.memory_space<vmem>>, vector<1x1x1x16x16xf32>,
    %c0_236 = arith.constant 0 : index
    %899 = memref.load %arg3[%c0_236] : memref<1xf32, #tpu.memory_space<smem>>
    %cst_237 = arith.constant 0.000000e+00 : f32
    %900 = vector.broadcast %cst_237 : f32 to vector<16x16xf32>
    %901 = arith.cmpf oge, %855, %900 : vector<16x16xf32>
    %902 = vector.broadcast %899 : f32 to vector<16x16xf32>
    %903 = arith.mulf %902, %855 : vector<16x16xf32>
    %904 = arith.select %901, %855, %903 : vector<16x16xi1>, vector<16x16xf32>
    %c0_238 = arith.constant 0 : index
    %c2_239 = arith.constant 2 : index
    %c3_240 = arith.constant 3 : index
    %c0_241 = arith.constant 0 : index
    %c0_242 = arith.constant 0 : index
    %905 = vector.load %arg5[%c0_238, %c2_239, %c3_240, %c0_241, %c0_242] : memref<1x4x8x16x16xf32, #tpu.memory_space<vmem>>, vector<1x1x1x16x16xf32>
    %906 = vector.shape_cast %905 : vector<1x1x1x16x16xf32> to vector<16x16xf32>
    %907 = vector.shape_cast %904 : vector<16x16xf32> to vector<1x1x1x16x16xf32>
    tpu.vector_store %arg5[%c0_238, %c2_239, %c3_240, %c0_241, %c0_242], %907 {strides = array<i32>} : memref<1x4x8x16x16xf32, #tpu.memory_space<vmem>>, vector<1x1x1x16x16xf32>,
    %c0_243 = arith.constant 0 : index
    %908 = memref.load %arg3[%c0_243] : memref<1xf32, #tpu.memory_space<smem>>
    %cst_244 = arith.constant 0.000000e+00 : f32
    %909 = vector.broadcast %cst_244 : f32 to vector<16x16xf32>
    %910 = arith.cmpf oge, %859, %909 : vector<16x16xf32>
    %911 = vector.broadcast %908 : f32 to vector<16x16xf32>
    %912 = arith.mulf %911, %859 : vector<16x16xf32>
    %913 = arith.select %910, %859, %912 : vector<16x16xi1>, vector<16x16xf32>
    %c0_245 = arith.constant 0 : index
    %c2_246 = arith.constant 2 : index
    %c4_247 = arith.constant 4 : index
    %c0_248 = arith.constant 0 : index
    %c0_249 = arith.constant 0 : index
    %914 = vector.load %arg5[%c0_245, %c2_246, %c4_247, %c0_248, %c0_249] : memref<1x4x8x16x16xf32, #tpu.memory_space<vmem>>, vector<1x1x1x16x16xf32>
    %915 = vector.shape_cast %914 : vector<1x1x1x16x16xf32> to vector<16x16xf32>
    %916 = vector.shape_cast %913 : vector<16x16xf32> to vector<1x1x1x16x16xf32>
    tpu.vector_store %arg5[%c0_245, %c2_246, %c4_247, %c0_248, %c0_249], %916 {strides = array<i32>} : memref<1x4x8x16x16xf32, #tpu.memory_space<vmem>>, vector<1x1x1x16x16xf32>,
    %c0_250 = arith.constant 0 : index
    %917 = memref.load %arg3[%c0_250] : memref<1xf32, #tpu.memory_space<smem>>
    %cst_251 = arith.constant 0.000000e+00 : f32
    %918 = vector.broadcast %cst_251 : f32 to vector<16x16xf32>
    %919 = arith.cmpf oge, %863, %918 : vector<16x16xf32>
    %920 = vector.broadcast %917 : f32 to vector<16x16xf32>
    %921 = arith.mulf %920, %863 : vector<16x16xf32>
    %922 = arith.select %919, %863, %921 : vector<16x16xi1>, vector<16x16xf32>
    %c0_252 = arith.constant 0 : index
    %c2_253 = arith.constant 2 : index
    %c5_254 = arith.constant 5 : index
    %c0_255 = arith.constant 0 : index
    %c0_256 = arith.constant 0 : index
    %923 = vector.load %arg5[%c0_252, %c2_253, %c5_254, %c0_255, %c0_256] : memref<1x4x8x16x16xf32, #tpu.memory_space<vmem>>, vector<1x1x1x16x16xf32>
    %924 = vector.shape_cast %923 : vector<1x1x1x16x16xf32> to vector<16x16xf32>
    %925 = vector.shape_cast %922 : vector<16x16xf32> to vector<1x1x1x16x16xf32>
    tpu.vector_store %arg5[%c0_252, %c2_253, %c5_254, %c0_255, %c0_256], %925 {strides = array<i32>} : memref<1x4x8x16x16xf32, #tpu.memory_space<vmem>>, vector<1x1x1x16x16xf32>,
    %c0_257 = arith.constant 0 : index
    %926 = memref.load %arg3[%c0_257] : memref<1xf32, #tpu.memory_space<smem>>
    %cst_258 = arith.constant 0.000000e+00 : f32
    %927 = vector.broadcast %cst_258 : f32 to vector<16x16xf32>
    %928 = arith.cmpf oge, %867, %927 : vector<16x16xf32>
    %929 = vector.broadcast %926 : f32 to vector<16x16xf32>
    %930 = arith.mulf %929, %867 : vector<16x16xf32>
    %931 = arith.select %928, %867, %930 : vector<16x16xi1>, vector<16x16xf32>
    %c0_259 = arith.constant 0 : index
    %c2_260 = arith.constant 2 : index
    %c6_261 = arith.constant 6 : index
    %c0_262 = arith.constant 0 : index
    %c0_263 = arith.constant 0 : index
    %932 = vector.load %arg5[%c0_259, %c2_260, %c6_261, %c0_262, %c0_263] : memref<1x4x8x16x16xf32, #tpu.memory_space<vmem>>, vector<1x1x1x16x16xf32>
    %933 = vector.shape_cast %932 : vector<1x1x1x16x16xf32> to vector<16x16xf32>
    %934 = vector.shape_cast %931 : vector<16x16xf32> to vector<1x1x1x16x16xf32>
    tpu.vector_store %arg5[%c0_259, %c2_260, %c6_261, %c0_262, %c0_263], %934 {strides = array<i32>} : memref<1x4x8x16x16xf32, #tpu.memory_space<vmem>>, vector<1x1x1x16x16xf32>,
    %c0_264 = arith.constant 0 : index
    %935 = memref.load %arg3[%c0_264] : memref<1xf32, #tpu.memory_space<smem>>
    %cst_265 = arith.constant 0.000000e+00 : f32
    %936 = vector.broadcast %cst_265 : f32 to vector<16x16xf32>
    %937 = arith.cmpf oge, %871, %936 : vector<16x16xf32>
    %938 = vector.broadcast %935 : f32 to vector<16x16xf32>
    %939 = arith.mulf %938, %871 : vector<16x16xf32>
    %940 = arith.select %937, %871, %939 : vector<16x16xi1>, vector<16x16xf32>
    %c0_266 = arith.constant 0 : index
    %c2_267 = arith.constant 2 : index
    %c7_268 = arith.constant 7 : index
    %c0_269 = arith.constant 0 : index
    %c0_270 = arith.constant 0 : index
    %941 = vector.load %arg5[%c0_266, %c2_267, %c7_268, %c0_269, %c0_270] : memref<1x4x8x16x16xf32, #tpu.memory_space<vmem>>, vector<1x1x1x16x16xf32>
    %942 = vector.shape_cast %941 : vector<1x1x1x16x16xf32> to vector<16x16xf32>
    %943 = vector.shape_cast %940 : vector<16x16xf32> to vector<1x1x1x16x16xf32>
    tpu.vector_store %arg5[%c0_266, %c2_267, %c7_268, %c0_269, %c0_270], %943 {strides = array<i32>} : memref<1x4x8x16x16xf32, #tpu.memory_space<vmem>>, vector<1x1x1x16x16xf32>,
    %c0_271 = arith.constant 0 : index
    %944 = memref.load %arg2[%c0_271] : memref<8xf32, #tpu.memory_space<smem>>
    %945 = vector.broadcast %944 : f32 to vector<16x16xf32>
    %c1_272 = arith.constant 1 : index
    %946 = memref.load %arg2[%c1_272] : memref<8xf32, #tpu.memory_space<smem>>
    %947 = vector.broadcast %946 : f32 to vector<16x16xf32>
    %c2_273 = arith.constant 2 : index
    %948 = memref.load %arg2[%c2_273] : memref<8xf32, #tpu.memory_space<smem>>
    %949 = vector.broadcast %948 : f32 to vector<16x16xf32>
    %c3_274 = arith.constant 3 : index
    %950 = memref.load %arg2[%c3_274] : memref<8xf32, #tpu.memory_space<smem>>
    %951 = vector.broadcast %950 : f32 to vector<16x16xf32>
    %c4_275 = arith.constant 4 : index
    %952 = memref.load %arg2[%c4_275] : memref<8xf32, #tpu.memory_space<smem>>
    %953 = vector.broadcast %952 : f32 to vector<16x16xf32>
    %c5_276 = arith.constant 5 : index
    %954 = memref.load %arg2[%c5_276] : memref<8xf32, #tpu.memory_space<smem>>
    %955 = vector.broadcast %954 : f32 to vector<16x16xf32>
    %c6_277 = arith.constant 6 : index
    %956 = memref.load %arg2[%c6_277] : memref<8xf32, #tpu.memory_space<smem>>
    %957 = vector.broadcast %956 : f32 to vector<16x16xf32>
    %c7_278 = arith.constant 7 : index
    %958 = memref.load %arg2[%c7_278] : memref<8xf32, #tpu.memory_space<smem>>
    %959 = vector.broadcast %958 : f32 to vector<16x16xf32>
    %c0_279 = arith.constant 0 : index
    %c0_280 = arith.constant 0 : index
    %c0_281 = arith.constant 0 : index
    %c0_282 = arith.constant 0 : index
    %960 = vector.load %arg4[%c0_279, %c0_280, %c0_281, %c0_282] : memref<1x4x17x17xf32, #tpu.memory_space<vmem>>, vector<1x1x16x16xf32>
    %961 = vector.shape_cast %960 : vector<1x1x16x16xf32> to vector<16x16xf32>
    %c384 = arith.constant 384 : index
    %962 = memref.load %arg1[%c384] : memref<512xf32, #tpu.memory_space<smem>>
    %963 = vector.broadcast %962 : f32 to vector<16x16xf32>
    %964 = arith.mulf %963, %961 : vector<16x16xf32>
    %965 = arith.addf %945, %964 : vector<16x16xf32>
    %c388 = arith.constant 388 : index
    %966 = memref.load %arg1[%c388] : memref<512xf32, #tpu.memory_space<smem>>
    %967 = vector.broadcast %966 : f32 to vector<16x16xf32>
    %968 = arith.mulf %967, %961 : vector<16x16xf32>
    %969 = arith.addf %947, %968 : vector<16x16xf32>
    %c392 = arith.constant 392 : index
    %970 = memref.load %arg1[%c392] : memref<512xf32, #tpu.memory_space<smem>>
    %971 = vector.broadcast %970 : f32 to vector<16x16xf32>
    %972 = arith.mulf %971, %961 : vector<16x16xf32>
    %973 = arith.addf %949, %972 : vector<16x16xf32>
    %c396 = arith.constant 396 : index
    %974 = memref.load %arg1[%c396] : memref<512xf32, #tpu.memory_space<smem>>
    %975 = vector.broadcast %974 : f32 to vector<16x16xf32>
    %976 = arith.mulf %975, %961 : vector<16x16xf32>
    %977 = arith.addf %951, %976 : vector<16x16xf32>
    %c400 = arith.constant 400 : index
    %978 = memref.load %arg1[%c400] : memref<512xf32, #tpu.memory_space<smem>>
    %979 = vector.broadcast %978 : f32 to vector<16x16xf32>
    %980 = arith.mulf %979, %961 : vector<16x16xf32>
    %981 = arith.addf %953, %980 : vector<16x16xf32>
    %c404 = arith.constant 404 : index
    %982 = memref.load %arg1[%c404] : memref<512xf32, #tpu.memory_space<smem>>
    %983 = vector.broadcast %982 : f32 to vector<16x16xf32>
    %984 = arith.mulf %983, %961 : vector<16x16xf32>
    %985 = arith.addf %955, %984 : vector<16x16xf32>
    %c408 = arith.constant 408 : index
    %986 = memref.load %arg1[%c408] : memref<512xf32, #tpu.memory_space<smem>>
    %987 = vector.broadcast %986 : f32 to vector<16x16xf32>
    %988 = arith.mulf %987, %961 : vector<16x16xf32>
    %989 = arith.addf %957, %988 : vector<16x16xf32>
    %c412 = arith.constant 412 : index
    %990 = memref.load %arg1[%c412] : memref<512xf32, #tpu.memory_space<smem>>
    %991 = vector.broadcast %990 : f32 to vector<16x16xf32>
    %992 = arith.mulf %991, %961 : vector<16x16xf32>
    %993 = arith.addf %959, %992 : vector<16x16xf32>
    %c0_283 = arith.constant 0 : index
    %c1_284 = arith.constant 1 : index
    %c0_285 = arith.constant 0 : index
    %c0_286 = arith.constant 0 : index
    %994 = vector.load %arg4[%c0_283, %c1_284, %c0_285, %c0_286] : memref<1x4x17x17xf32, #tpu.memory_space<vmem>>, vector<1x1x16x16xf32>
    %995 = vector.shape_cast %994 : vector<1x1x16x16xf32> to vector<16x16xf32>
    %c385 = arith.constant 385 : index
    %996 = memref.load %arg1[%c385] : memref<512xf32, #tpu.memory_space<smem>>
    %997 = vector.broadcast %996 : f32 to vector<16x16xf32>
    %998 = arith.mulf %997, %995 : vector<16x16xf32>
    %999 = arith.addf %965, %998 : vector<16x16xf32>
    %c389 = arith.constant 389 : index
    %1000 = memref.load %arg1[%c389] : memref<512xf32, #tpu.memory_space<smem>>
    %1001 = vector.broadcast %1000 : f32 to vector<16x16xf32>
    %1002 = arith.mulf %1001, %995 : vector<16x16xf32>
    %1003 = arith.addf %969, %1002 : vector<16x16xf32>
    %c393 = arith.constant 393 : index
    %1004 = memref.load %arg1[%c393] : memref<512xf32, #tpu.memory_space<smem>>
    %1005 = vector.broadcast %1004 : f32 to vector<16x16xf32>
    %1006 = arith.mulf %1005, %995 : vector<16x16xf32>
    %1007 = arith.addf %973, %1006 : vector<16x16xf32>
    %c397 = arith.constant 397 : index
    %1008 = memref.load %arg1[%c397] : memref<512xf32, #tpu.memory_space<smem>>
    %1009 = vector.broadcast %1008 : f32 to vector<16x16xf32>
    %1010 = arith.mulf %1009, %995 : vector<16x16xf32>
    %1011 = arith.addf %977, %1010 : vector<16x16xf32>
    %c401 = arith.constant 401 : index
    %1012 = memref.load %arg1[%c401] : memref<512xf32, #tpu.memory_space<smem>>
    %1013 = vector.broadcast %1012 : f32 to vector<16x16xf32>
    %1014 = arith.mulf %1013, %995 : vector<16x16xf32>
    %1015 = arith.addf %981, %1014 : vector<16x16xf32>
    %c405 = arith.constant 405 : index
    %1016 = memref.load %arg1[%c405] : memref<512xf32, #tpu.memory_space<smem>>
    %1017 = vector.broadcast %1016 : f32 to vector<16x16xf32>
    %1018 = arith.mulf %1017, %995 : vector<16x16xf32>
    %1019 = arith.addf %985, %1018 : vector<16x16xf32>
    %c409 = arith.constant 409 : index
    %1020 = memref.load %arg1[%c409] : memref<512xf32, #tpu.memory_space<smem>>
    %1021 = vector.broadcast %1020 : f32 to vector<16x16xf32>
    %1022 = arith.mulf %1021, %995 : vector<16x16xf32>
    %1023 = arith.addf %989, %1022 : vector<16x16xf32>
    %c413 = arith.constant 413 : index
    %1024 = memref.load %arg1[%c413] : memref<512xf32, #tpu.memory_space<smem>>
    %1025 = vector.broadcast %1024 : f32 to vector<16x16xf32>
    %1026 = arith.mulf %1025, %995 : vector<16x16xf32>
    %1027 = arith.addf %993, %1026 : vector<16x16xf32>
    %c0_287 = arith.constant 0 : index
    %c2_288 = arith.constant 2 : index
    %c0_289 = arith.constant 0 : index
    %c0_290 = arith.constant 0 : index
    %1028 = vector.load %arg4[%c0_287, %c2_288, %c0_289, %c0_290] : memref<1x4x17x17xf32, #tpu.memory_space<vmem>>, vector<1x1x16x16xf32>
    %1029 = vector.shape_cast %1028 : vector<1x1x16x16xf32> to vector<16x16xf32>
    %c386 = arith.constant 386 : index
    %1030 = memref.load %arg1[%c386] : memref<512xf32, #tpu.memory_space<smem>>
    %1031 = vector.broadcast %1030 : f32 to vector<16x16xf32>
    %1032 = arith.mulf %1031, %1029 : vector<16x16xf32>
    %1033 = arith.addf %999, %1032 : vector<16x16xf32>
    %c390 = arith.constant 390 : index
    %1034 = memref.load %arg1[%c390] : memref<512xf32, #tpu.memory_space<smem>>
    %1035 = vector.broadcast %1034 : f32 to vector<16x16xf32>
    %1036 = arith.mulf %1035, %1029 : vector<16x16xf32>
    %1037 = arith.addf %1003, %1036 : vector<16x16xf32>
    %c394 = arith.constant 394 : index
    %1038 = memref.load %arg1[%c394] : memref<512xf32, #tpu.memory_space<smem>>
    %1039 = vector.broadcast %1038 : f32 to vector<16x16xf32>
    %1040 = arith.mulf %1039, %1029 : vector<16x16xf32>
    %1041 = arith.addf %1007, %1040 : vector<16x16xf32>
    %c398 = arith.constant 398 : index
    %1042 = memref.load %arg1[%c398] : memref<512xf32, #tpu.memory_space<smem>>
    %1043 = vector.broadcast %1042 : f32 to vector<16x16xf32>
    %1044 = arith.mulf %1043, %1029 : vector<16x16xf32>
    %1045 = arith.addf %1011, %1044 : vector<16x16xf32>
    %c402 = arith.constant 402 : index
    %1046 = memref.load %arg1[%c402] : memref<512xf32, #tpu.memory_space<smem>>
    %1047 = vector.broadcast %1046 : f32 to vector<16x16xf32>
    %1048 = arith.mulf %1047, %1029 : vector<16x16xf32>
    %1049 = arith.addf %1015, %1048 : vector<16x16xf32>
    %c406 = arith.constant 406 : index
    %1050 = memref.load %arg1[%c406] : memref<512xf32, #tpu.memory_space<smem>>
    %1051 = vector.broadcast %1050 : f32 to vector<16x16xf32>
    %1052 = arith.mulf %1051, %1029 : vector<16x16xf32>
    %1053 = arith.addf %1019, %1052 : vector<16x16xf32>
    %c410 = arith.constant 410 : index
    %1054 = memref.load %arg1[%c410] : memref<512xf32, #tpu.memory_space<smem>>
    %1055 = vector.broadcast %1054 : f32 to vector<16x16xf32>
    %1056 = arith.mulf %1055, %1029 : vector<16x16xf32>
    %1057 = arith.addf %1023, %1056 : vector<16x16xf32>
    %c414 = arith.constant 414 : index
    %1058 = memref.load %arg1[%c414] : memref<512xf32, #tpu.memory_space<smem>>
    %1059 = vector.broadcast %1058 : f32 to vector<16x16xf32>
    %1060 = arith.mulf %1059, %1029 : vector<16x16xf32>
    %1061 = arith.addf %1027, %1060 : vector<16x16xf32>
    %c0_291 = arith.constant 0 : index
    %c3_292 = arith.constant 3 : index
    %c0_293 = arith.constant 0 : index
    %c0_294 = arith.constant 0 : index
    %1062 = vector.load %arg4[%c0_291, %c3_292, %c0_293, %c0_294] : memref<1x4x17x17xf32, #tpu.memory_space<vmem>>, vector<1x1x16x16xf32>
    %1063 = vector.shape_cast %1062 : vector<1x1x16x16xf32> to vector<16x16xf32>
    %c387 = arith.constant 387 : index
    %1064 = memref.load %arg1[%c387] : memref<512xf32, #tpu.memory_space<smem>>
    %1065 = vector.broadcast %1064 : f32 to vector<16x16xf32>
    %1066 = arith.mulf %1065, %1063 : vector<16x16xf32>
    %1067 = arith.addf %1033, %1066 : vector<16x16xf32>
    %c391 = arith.constant 391 : index
    %1068 = memref.load %arg1[%c391] : memref<512xf32, #tpu.memory_space<smem>>
    %1069 = vector.broadcast %1068 : f32 to vector<16x16xf32>
    %1070 = arith.mulf %1069, %1063 : vector<16x16xf32>
    %1071 = arith.addf %1037, %1070 : vector<16x16xf32>
    %c395 = arith.constant 395 : index
    %1072 = memref.load %arg1[%c395] : memref<512xf32, #tpu.memory_space<smem>>
    %1073 = vector.broadcast %1072 : f32 to vector<16x16xf32>
    %1074 = arith.mulf %1073, %1063 : vector<16x16xf32>
    %1075 = arith.addf %1041, %1074 : vector<16x16xf32>
    %c399 = arith.constant 399 : index
    %1076 = memref.load %arg1[%c399] : memref<512xf32, #tpu.memory_space<smem>>
    %1077 = vector.broadcast %1076 : f32 to vector<16x16xf32>
    %1078 = arith.mulf %1077, %1063 : vector<16x16xf32>
    %1079 = arith.addf %1045, %1078 : vector<16x16xf32>
    %c403 = arith.constant 403 : index
    %1080 = memref.load %arg1[%c403] : memref<512xf32, #tpu.memory_space<smem>>
    %1081 = vector.broadcast %1080 : f32 to vector<16x16xf32>
    %1082 = arith.mulf %1081, %1063 : vector<16x16xf32>
    %1083 = arith.addf %1049, %1082 : vector<16x16xf32>
    %c407 = arith.constant 407 : index
    %1084 = memref.load %arg1[%c407] : memref<512xf32, #tpu.memory_space<smem>>
    %1085 = vector.broadcast %1084 : f32 to vector<16x16xf32>
    %1086 = arith.mulf %1085, %1063 : vector<16x16xf32>
    %1087 = arith.addf %1053, %1086 : vector<16x16xf32>
    %c411 = arith.constant 411 : index
    %1088 = memref.load %arg1[%c411] : memref<512xf32, #tpu.memory_space<smem>>
    %1089 = vector.broadcast %1088 : f32 to vector<16x16xf32>
    %1090 = arith.mulf %1089, %1063 : vector<16x16xf32>
    %1091 = arith.addf %1057, %1090 : vector<16x16xf32>
    %c415 = arith.constant 415 : index
    %1092 = memref.load %arg1[%c415] : memref<512xf32, #tpu.memory_space<smem>>
    %1093 = vector.broadcast %1092 : f32 to vector<16x16xf32>
    %1094 = arith.mulf %1093, %1063 : vector<16x16xf32>
    %1095 = arith.addf %1061, %1094 : vector<16x16xf32>
    %c0_295 = arith.constant 0 : index
    %c0_296 = arith.constant 0 : index
    %c0_297 = arith.constant 0 : index
    %c1_298 = arith.constant 1 : index
    %1096 = vector.load %arg4[%c0_295, %c0_296, %c0_297, %c1_298] : memref<1x4x17x17xf32, #tpu.memory_space<vmem>>, vector<1x1x16x16xf32>
    %1097 = vector.shape_cast %1096 : vector<1x1x16x16xf32> to vector<16x16xf32>
    %c416 = arith.constant 416 : index
    %1098 = memref.load %arg1[%c416] : memref<512xf32, #tpu.memory_space<smem>>
    %1099 = vector.broadcast %1098 : f32 to vector<16x16xf32>
    %1100 = arith.mulf %1099, %1097 : vector<16x16xf32>
    %1101 = arith.addf %1067, %1100 : vector<16x16xf32>
    %c420 = arith.constant 420 : index
    %1102 = memref.load %arg1[%c420] : memref<512xf32, #tpu.memory_space<smem>>
    %1103 = vector.broadcast %1102 : f32 to vector<16x16xf32>
    %1104 = arith.mulf %1103, %1097 : vector<16x16xf32>
    %1105 = arith.addf %1071, %1104 : vector<16x16xf32>
    %c424 = arith.constant 424 : index
    %1106 = memref.load %arg1[%c424] : memref<512xf32, #tpu.memory_space<smem>>
    %1107 = vector.broadcast %1106 : f32 to vector<16x16xf32>
    %1108 = arith.mulf %1107, %1097 : vector<16x16xf32>
    %1109 = arith.addf %1075, %1108 : vector<16x16xf32>
    %c428 = arith.constant 428 : index
    %1110 = memref.load %arg1[%c428] : memref<512xf32, #tpu.memory_space<smem>>
    %1111 = vector.broadcast %1110 : f32 to vector<16x16xf32>
    %1112 = arith.mulf %1111, %1097 : vector<16x16xf32>
    %1113 = arith.addf %1079, %1112 : vector<16x16xf32>
    %c432 = arith.constant 432 : index
    %1114 = memref.load %arg1[%c432] : memref<512xf32, #tpu.memory_space<smem>>
    %1115 = vector.broadcast %1114 : f32 to vector<16x16xf32>
    %1116 = arith.mulf %1115, %1097 : vector<16x16xf32>
    %1117 = arith.addf %1083, %1116 : vector<16x16xf32>
    %c436 = arith.constant 436 : index
    %1118 = memref.load %arg1[%c436] : memref<512xf32, #tpu.memory_space<smem>>
    %1119 = vector.broadcast %1118 : f32 to vector<16x16xf32>
    %1120 = arith.mulf %1119, %1097 : vector<16x16xf32>
    %1121 = arith.addf %1087, %1120 : vector<16x16xf32>
    %c440 = arith.constant 440 : index
    %1122 = memref.load %arg1[%c440] : memref<512xf32, #tpu.memory_space<smem>>
    %1123 = vector.broadcast %1122 : f32 to vector<16x16xf32>
    %1124 = arith.mulf %1123, %1097 : vector<16x16xf32>
    %1125 = arith.addf %1091, %1124 : vector<16x16xf32>
    %c444 = arith.constant 444 : index
    %1126 = memref.load %arg1[%c444] : memref<512xf32, #tpu.memory_space<smem>>
    %1127 = vector.broadcast %1126 : f32 to vector<16x16xf32>
    %1128 = arith.mulf %1127, %1097 : vector<16x16xf32>
    %1129 = arith.addf %1095, %1128 : vector<16x16xf32>
    %c0_299 = arith.constant 0 : index
    %c1_300 = arith.constant 1 : index
    %c0_301 = arith.constant 0 : index
    %c1_302 = arith.constant 1 : index
    %1130 = vector.load %arg4[%c0_299, %c1_300, %c0_301, %c1_302] : memref<1x4x17x17xf32, #tpu.memory_space<vmem>>, vector<1x1x16x16xf32>
    %1131 = vector.shape_cast %1130 : vector<1x1x16x16xf32> to vector<16x16xf32>
    %c417 = arith.constant 417 : index
    %1132 = memref.load %arg1[%c417] : memref<512xf32, #tpu.memory_space<smem>>
    %1133 = vector.broadcast %1132 : f32 to vector<16x16xf32>
    %1134 = arith.mulf %1133, %1131 : vector<16x16xf32>
    %1135 = arith.addf %1101, %1134 : vector<16x16xf32>
    %c421 = arith.constant 421 : index
    %1136 = memref.load %arg1[%c421] : memref<512xf32, #tpu.memory_space<smem>>
    %1137 = vector.broadcast %1136 : f32 to vector<16x16xf32>
    %1138 = arith.mulf %1137, %1131 : vector<16x16xf32>
    %1139 = arith.addf %1105, %1138 : vector<16x16xf32>
    %c425 = arith.constant 425 : index
    %1140 = memref.load %arg1[%c425] : memref<512xf32, #tpu.memory_space<smem>>
    %1141 = vector.broadcast %1140 : f32 to vector<16x16xf32>
    %1142 = arith.mulf %1141, %1131 : vector<16x16xf32>
    %1143 = arith.addf %1109, %1142 : vector<16x16xf32>
    %c429 = arith.constant 429 : index
    %1144 = memref.load %arg1[%c429] : memref<512xf32, #tpu.memory_space<smem>>
    %1145 = vector.broadcast %1144 : f32 to vector<16x16xf32>
    %1146 = arith.mulf %1145, %1131 : vector<16x16xf32>
    %1147 = arith.addf %1113, %1146 : vector<16x16xf32>
    %c433 = arith.constant 433 : index
    %1148 = memref.load %arg1[%c433] : memref<512xf32, #tpu.memory_space<smem>>
    %1149 = vector.broadcast %1148 : f32 to vector<16x16xf32>
    %1150 = arith.mulf %1149, %1131 : vector<16x16xf32>
    %1151 = arith.addf %1117, %1150 : vector<16x16xf32>
    %c437 = arith.constant 437 : index
    %1152 = memref.load %arg1[%c437] : memref<512xf32, #tpu.memory_space<smem>>
    %1153 = vector.broadcast %1152 : f32 to vector<16x16xf32>
    %1154 = arith.mulf %1153, %1131 : vector<16x16xf32>
    %1155 = arith.addf %1121, %1154 : vector<16x16xf32>
    %c441 = arith.constant 441 : index
    %1156 = memref.load %arg1[%c441] : memref<512xf32, #tpu.memory_space<smem>>
    %1157 = vector.broadcast %1156 : f32 to vector<16x16xf32>
    %1158 = arith.mulf %1157, %1131 : vector<16x16xf32>
    %1159 = arith.addf %1125, %1158 : vector<16x16xf32>
    %c445 = arith.constant 445 : index
    %1160 = memref.load %arg1[%c445] : memref<512xf32, #tpu.memory_space<smem>>
    %1161 = vector.broadcast %1160 : f32 to vector<16x16xf32>
    %1162 = arith.mulf %1161, %1131 : vector<16x16xf32>
    %1163 = arith.addf %1129, %1162 : vector<16x16xf32>
    %c0_303 = arith.constant 0 : index
    %c2_304 = arith.constant 2 : index
    %c0_305 = arith.constant 0 : index
    %c1_306 = arith.constant 1 : index
    %1164 = vector.load %arg4[%c0_303, %c2_304, %c0_305, %c1_306] : memref<1x4x17x17xf32, #tpu.memory_space<vmem>>, vector<1x1x16x16xf32>
    %1165 = vector.shape_cast %1164 : vector<1x1x16x16xf32> to vector<16x16xf32>
    %c418 = arith.constant 418 : index
    %1166 = memref.load %arg1[%c418] : memref<512xf32, #tpu.memory_space<smem>>
    %1167 = vector.broadcast %1166 : f32 to vector<16x16xf32>
    %1168 = arith.mulf %1167, %1165 : vector<16x16xf32>
    %1169 = arith.addf %1135, %1168 : vector<16x16xf32>
    %c422 = arith.constant 422 : index
    %1170 = memref.load %arg1[%c422] : memref<512xf32, #tpu.memory_space<smem>>
    %1171 = vector.broadcast %1170 : f32 to vector<16x16xf32>
    %1172 = arith.mulf %1171, %1165 : vector<16x16xf32>
    %1173 = arith.addf %1139, %1172 : vector<16x16xf32>
    %c426 = arith.constant 426 : index
    %1174 = memref.load %arg1[%c426] : memref<512xf32, #tpu.memory_space<smem>>
    %1175 = vector.broadcast %1174 : f32 to vector<16x16xf32>
    %1176 = arith.mulf %1175, %1165 : vector<16x16xf32>
    %1177 = arith.addf %1143, %1176 : vector<16x16xf32>
    %c430 = arith.constant 430 : index
    %1178 = memref.load %arg1[%c430] : memref<512xf32, #tpu.memory_space<smem>>
    %1179 = vector.broadcast %1178 : f32 to vector<16x16xf32>
    %1180 = arith.mulf %1179, %1165 : vector<16x16xf32>
    %1181 = arith.addf %1147, %1180 : vector<16x16xf32>
    %c434 = arith.constant 434 : index
    %1182 = memref.load %arg1[%c434] : memref<512xf32, #tpu.memory_space<smem>>
    %1183 = vector.broadcast %1182 : f32 to vector<16x16xf32>
    %1184 = arith.mulf %1183, %1165 : vector<16x16xf32>
    %1185 = arith.addf %1151, %1184 : vector<16x16xf32>
    %c438 = arith.constant 438 : index
    %1186 = memref.load %arg1[%c438] : memref<512xf32, #tpu.memory_space<smem>>
    %1187 = vector.broadcast %1186 : f32 to vector<16x16xf32>
    %1188 = arith.mulf %1187, %1165 : vector<16x16xf32>
    %1189 = arith.addf %1155, %1188 : vector<16x16xf32>
    %c442 = arith.constant 442 : index
    %1190 = memref.load %arg1[%c442] : memref<512xf32, #tpu.memory_space<smem>>
    %1191 = vector.broadcast %1190 : f32 to vector<16x16xf32>
    %1192 = arith.mulf %1191, %1165 : vector<16x16xf32>
    %1193 = arith.addf %1159, %1192 : vector<16x16xf32>
    %c446 = arith.constant 446 : index
    %1194 = memref.load %arg1[%c446] : memref<512xf32, #tpu.memory_space<smem>>
    %1195 = vector.broadcast %1194 : f32 to vector<16x16xf32>
    %1196 = arith.mulf %1195, %1165 : vector<16x16xf32>
    %1197 = arith.addf %1163, %1196 : vector<16x16xf32>
    %c0_307 = arith.constant 0 : index
    %c3_308 = arith.constant 3 : index
    %c0_309 = arith.constant 0 : index
    %c1_310 = arith.constant 1 : index
    %1198 = vector.load %arg4[%c0_307, %c3_308, %c0_309, %c1_310] : memref<1x4x17x17xf32, #tpu.memory_space<vmem>>, vector<1x1x16x16xf32>
    %1199 = vector.shape_cast %1198 : vector<1x1x16x16xf32> to vector<16x16xf32>
    %c419 = arith.constant 419 : index
    %1200 = memref.load %arg1[%c419] : memref<512xf32, #tpu.memory_space<smem>>
    %1201 = vector.broadcast %1200 : f32 to vector<16x16xf32>
    %1202 = arith.mulf %1201, %1199 : vector<16x16xf32>
    %1203 = arith.addf %1169, %1202 : vector<16x16xf32>
    %c423 = arith.constant 423 : index
    %1204 = memref.load %arg1[%c423] : memref<512xf32, #tpu.memory_space<smem>>
    %1205 = vector.broadcast %1204 : f32 to vector<16x16xf32>
    %1206 = arith.mulf %1205, %1199 : vector<16x16xf32>
    %1207 = arith.addf %1173, %1206 : vector<16x16xf32>
    %c427 = arith.constant 427 : index
    %1208 = memref.load %arg1[%c427] : memref<512xf32, #tpu.memory_space<smem>>
    %1209 = vector.broadcast %1208 : f32 to vector<16x16xf32>
    %1210 = arith.mulf %1209, %1199 : vector<16x16xf32>
    %1211 = arith.addf %1177, %1210 : vector<16x16xf32>
    %c431 = arith.constant 431 : index
    %1212 = memref.load %arg1[%c431] : memref<512xf32, #tpu.memory_space<smem>>
    %1213 = vector.broadcast %1212 : f32 to vector<16x16xf32>
    %1214 = arith.mulf %1213, %1199 : vector<16x16xf32>
    %1215 = arith.addf %1181, %1214 : vector<16x16xf32>
    %c435 = arith.constant 435 : index
    %1216 = memref.load %arg1[%c435] : memref<512xf32, #tpu.memory_space<smem>>
    %1217 = vector.broadcast %1216 : f32 to vector<16x16xf32>
    %1218 = arith.mulf %1217, %1199 : vector<16x16xf32>
    %1219 = arith.addf %1185, %1218 : vector<16x16xf32>
    %c439 = arith.constant 439 : index
    %1220 = memref.load %arg1[%c439] : memref<512xf32, #tpu.memory_space<smem>>
    %1221 = vector.broadcast %1220 : f32 to vector<16x16xf32>
    %1222 = arith.mulf %1221, %1199 : vector<16x16xf32>
    %1223 = arith.addf %1189, %1222 : vector<16x16xf32>
    %c443 = arith.constant 443 : index
    %1224 = memref.load %arg1[%c443] : memref<512xf32, #tpu.memory_space<smem>>
    %1225 = vector.broadcast %1224 : f32 to vector<16x16xf32>
    %1226 = arith.mulf %1225, %1199 : vector<16x16xf32>
    %1227 = arith.addf %1193, %1226 : vector<16x16xf32>
    %c447 = arith.constant 447 : index
    %1228 = memref.load %arg1[%c447] : memref<512xf32, #tpu.memory_space<smem>>
    %1229 = vector.broadcast %1228 : f32 to vector<16x16xf32>
    %1230 = arith.mulf %1229, %1199 : vector<16x16xf32>
    %1231 = arith.addf %1197, %1230 : vector<16x16xf32>
    %c0_311 = arith.constant 0 : index
    %c0_312 = arith.constant 0 : index
    %c1_313 = arith.constant 1 : index
    %c0_314 = arith.constant 0 : index
    %1232 = vector.load %arg4[%c0_311, %c0_312, %c1_313, %c0_314] : memref<1x4x17x17xf32, #tpu.memory_space<vmem>>, vector<1x1x16x16xf32>
    %1233 = vector.shape_cast %1232 : vector<1x1x16x16xf32> to vector<16x16xf32>
    %c448 = arith.constant 448 : index
    %1234 = memref.load %arg1[%c448] : memref<512xf32, #tpu.memory_space<smem>>
    %1235 = vector.broadcast %1234 : f32 to vector<16x16xf32>
    %1236 = arith.mulf %1235, %1233 : vector<16x16xf32>
    %1237 = arith.addf %1203, %1236 : vector<16x16xf32>
    %c452 = arith.constant 452 : index
    %1238 = memref.load %arg1[%c452] : memref<512xf32, #tpu.memory_space<smem>>
    %1239 = vector.broadcast %1238 : f32 to vector<16x16xf32>
    %1240 = arith.mulf %1239, %1233 : vector<16x16xf32>
    %1241 = arith.addf %1207, %1240 : vector<16x16xf32>
    %c456 = arith.constant 456 : index
    %1242 = memref.load %arg1[%c456] : memref<512xf32, #tpu.memory_space<smem>>
    %1243 = vector.broadcast %1242 : f32 to vector<16x16xf32>
    %1244 = arith.mulf %1243, %1233 : vector<16x16xf32>
    %1245 = arith.addf %1211, %1244 : vector<16x16xf32>
    %c460 = arith.constant 460 : index
    %1246 = memref.load %arg1[%c460] : memref<512xf32, #tpu.memory_space<smem>>
    %1247 = vector.broadcast %1246 : f32 to vector<16x16xf32>
    %1248 = arith.mulf %1247, %1233 : vector<16x16xf32>
    %1249 = arith.addf %1215, %1248 : vector<16x16xf32>
    %c464 = arith.constant 464 : index
    %1250 = memref.load %arg1[%c464] : memref<512xf32, #tpu.memory_space<smem>>
    %1251 = vector.broadcast %1250 : f32 to vector<16x16xf32>
    %1252 = arith.mulf %1251, %1233 : vector<16x16xf32>
    %1253 = arith.addf %1219, %1252 : vector<16x16xf32>
    %c468 = arith.constant 468 : index
    %1254 = memref.load %arg1[%c468] : memref<512xf32, #tpu.memory_space<smem>>
    %1255 = vector.broadcast %1254 : f32 to vector<16x16xf32>
    %1256 = arith.mulf %1255, %1233 : vector<16x16xf32>
    %1257 = arith.addf %1223, %1256 : vector<16x16xf32>
    %c472 = arith.constant 472 : index
    %1258 = memref.load %arg1[%c472] : memref<512xf32, #tpu.memory_space<smem>>
    %1259 = vector.broadcast %1258 : f32 to vector<16x16xf32>
    %1260 = arith.mulf %1259, %1233 : vector<16x16xf32>
    %1261 = arith.addf %1227, %1260 : vector<16x16xf32>
    %c476 = arith.constant 476 : index
    %1262 = memref.load %arg1[%c476] : memref<512xf32, #tpu.memory_space<smem>>
    %1263 = vector.broadcast %1262 : f32 to vector<16x16xf32>
    %1264 = arith.mulf %1263, %1233 : vector<16x16xf32>
    %1265 = arith.addf %1231, %1264 : vector<16x16xf32>
    %c0_315 = arith.constant 0 : index
    %c1_316 = arith.constant 1 : index
    %c1_317 = arith.constant 1 : index
    %c0_318 = arith.constant 0 : index
    %1266 = vector.load %arg4[%c0_315, %c1_316, %c1_317, %c0_318] : memref<1x4x17x17xf32, #tpu.memory_space<vmem>>, vector<1x1x16x16xf32>
    %1267 = vector.shape_cast %1266 : vector<1x1x16x16xf32> to vector<16x16xf32>
    %c449 = arith.constant 449 : index
    %1268 = memref.load %arg1[%c449] : memref<512xf32, #tpu.memory_space<smem>>
    %1269 = vector.broadcast %1268 : f32 to vector<16x16xf32>
    %1270 = arith.mulf %1269, %1267 : vector<16x16xf32>
    %1271 = arith.addf %1237, %1270 : vector<16x16xf32>
    %c453 = arith.constant 453 : index
    %1272 = memref.load %arg1[%c453] : memref<512xf32, #tpu.memory_space<smem>>
    %1273 = vector.broadcast %1272 : f32 to vector<16x16xf32>
    %1274 = arith.mulf %1273, %1267 : vector<16x16xf32>
    %1275 = arith.addf %1241, %1274 : vector<16x16xf32>
    %c457 = arith.constant 457 : index
    %1276 = memref.load %arg1[%c457] : memref<512xf32, #tpu.memory_space<smem>>
    %1277 = vector.broadcast %1276 : f32 to vector<16x16xf32>
    %1278 = arith.mulf %1277, %1267 : vector<16x16xf32>
    %1279 = arith.addf %1245, %1278 : vector<16x16xf32>
    %c461 = arith.constant 461 : index
    %1280 = memref.load %arg1[%c461] : memref<512xf32, #tpu.memory_space<smem>>
    %1281 = vector.broadcast %1280 : f32 to vector<16x16xf32>
    %1282 = arith.mulf %1281, %1267 : vector<16x16xf32>
    %1283 = arith.addf %1249, %1282 : vector<16x16xf32>
    %c465 = arith.constant 465 : index
    %1284 = memref.load %arg1[%c465] : memref<512xf32, #tpu.memory_space<smem>>
    %1285 = vector.broadcast %1284 : f32 to vector<16x16xf32>
    %1286 = arith.mulf %1285, %1267 : vector<16x16xf32>
    %1287 = arith.addf %1253, %1286 : vector<16x16xf32>
    %c469 = arith.constant 469 : index
    %1288 = memref.load %arg1[%c469] : memref<512xf32, #tpu.memory_space<smem>>
    %1289 = vector.broadcast %1288 : f32 to vector<16x16xf32>
    %1290 = arith.mulf %1289, %1267 : vector<16x16xf32>
    %1291 = arith.addf %1257, %1290 : vector<16x16xf32>
    %c473 = arith.constant 473 : index
    %1292 = memref.load %arg1[%c473] : memref<512xf32, #tpu.memory_space<smem>>
    %1293 = vector.broadcast %1292 : f32 to vector<16x16xf32>
    %1294 = arith.mulf %1293, %1267 : vector<16x16xf32>
    %1295 = arith.addf %1261, %1294 : vector<16x16xf32>
    %c477 = arith.constant 477 : index
    %1296 = memref.load %arg1[%c477] : memref<512xf32, #tpu.memory_space<smem>>
    %1297 = vector.broadcast %1296 : f32 to vector<16x16xf32>
    %1298 = arith.mulf %1297, %1267 : vector<16x16xf32>
    %1299 = arith.addf %1265, %1298 : vector<16x16xf32>
    %c0_319 = arith.constant 0 : index
    %c2_320 = arith.constant 2 : index
    %c1_321 = arith.constant 1 : index
    %c0_322 = arith.constant 0 : index
    %1300 = vector.load %arg4[%c0_319, %c2_320, %c1_321, %c0_322] : memref<1x4x17x17xf32, #tpu.memory_space<vmem>>, vector<1x1x16x16xf32>
    %1301 = vector.shape_cast %1300 : vector<1x1x16x16xf32> to vector<16x16xf32>
    %c450 = arith.constant 450 : index
    %1302 = memref.load %arg1[%c450] : memref<512xf32, #tpu.memory_space<smem>>
    %1303 = vector.broadcast %1302 : f32 to vector<16x16xf32>
    %1304 = arith.mulf %1303, %1301 : vector<16x16xf32>
    %1305 = arith.addf %1271, %1304 : vector<16x16xf32>
    %c454 = arith.constant 454 : index
    %1306 = memref.load %arg1[%c454] : memref<512xf32, #tpu.memory_space<smem>>
    %1307 = vector.broadcast %1306 : f32 to vector<16x16xf32>
    %1308 = arith.mulf %1307, %1301 : vector<16x16xf32>
    %1309 = arith.addf %1275, %1308 : vector<16x16xf32>
    %c458 = arith.constant 458 : index
    %1310 = memref.load %arg1[%c458] : memref<512xf32, #tpu.memory_space<smem>>
    %1311 = vector.broadcast %1310 : f32 to vector<16x16xf32>
    %1312 = arith.mulf %1311, %1301 : vector<16x16xf32>
    %1313 = arith.addf %1279, %1312 : vector<16x16xf32>
    %c462 = arith.constant 462 : index
    %1314 = memref.load %arg1[%c462] : memref<512xf32, #tpu.memory_space<smem>>
    %1315 = vector.broadcast %1314 : f32 to vector<16x16xf32>
    %1316 = arith.mulf %1315, %1301 : vector<16x16xf32>
    %1317 = arith.addf %1283, %1316 : vector<16x16xf32>
    %c466 = arith.constant 466 : index
    %1318 = memref.load %arg1[%c466] : memref<512xf32, #tpu.memory_space<smem>>
    %1319 = vector.broadcast %1318 : f32 to vector<16x16xf32>
    %1320 = arith.mulf %1319, %1301 : vector<16x16xf32>
    %1321 = arith.addf %1287, %1320 : vector<16x16xf32>
    %c470 = arith.constant 470 : index
    %1322 = memref.load %arg1[%c470] : memref<512xf32, #tpu.memory_space<smem>>
    %1323 = vector.broadcast %1322 : f32 to vector<16x16xf32>
    %1324 = arith.mulf %1323, %1301 : vector<16x16xf32>
    %1325 = arith.addf %1291, %1324 : vector<16x16xf32>
    %c474 = arith.constant 474 : index
    %1326 = memref.load %arg1[%c474] : memref<512xf32, #tpu.memory_space<smem>>
    %1327 = vector.broadcast %1326 : f32 to vector<16x16xf32>
    %1328 = arith.mulf %1327, %1301 : vector<16x16xf32>
    %1329 = arith.addf %1295, %1328 : vector<16x16xf32>
    %c478 = arith.constant 478 : index
    %1330 = memref.load %arg1[%c478] : memref<512xf32, #tpu.memory_space<smem>>
    %1331 = vector.broadcast %1330 : f32 to vector<16x16xf32>
    %1332 = arith.mulf %1331, %1301 : vector<16x16xf32>
    %1333 = arith.addf %1299, %1332 : vector<16x16xf32>
    %c0_323 = arith.constant 0 : index
    %c3_324 = arith.constant 3 : index
    %c1_325 = arith.constant 1 : index
    %c0_326 = arith.constant 0 : index
    %1334 = vector.load %arg4[%c0_323, %c3_324, %c1_325, %c0_326] : memref<1x4x17x17xf32, #tpu.memory_space<vmem>>, vector<1x1x16x16xf32>
    %1335 = vector.shape_cast %1334 : vector<1x1x16x16xf32> to vector<16x16xf32>
    %c451 = arith.constant 451 : index
    %1336 = memref.load %arg1[%c451] : memref<512xf32, #tpu.memory_space<smem>>
    %1337 = vector.broadcast %1336 : f32 to vector<16x16xf32>
    %1338 = arith.mulf %1337, %1335 : vector<16x16xf32>
    %1339 = arith.addf %1305, %1338 : vector<16x16xf32>
    %c455 = arith.constant 455 : index
    %1340 = memref.load %arg1[%c455] : memref<512xf32, #tpu.memory_space<smem>>
    %1341 = vector.broadcast %1340 : f32 to vector<16x16xf32>
    %1342 = arith.mulf %1341, %1335 : vector<16x16xf32>
    %1343 = arith.addf %1309, %1342 : vector<16x16xf32>
    %c459 = arith.constant 459 : index
    %1344 = memref.load %arg1[%c459] : memref<512xf32, #tpu.memory_space<smem>>
    %1345 = vector.broadcast %1344 : f32 to vector<16x16xf32>
    %1346 = arith.mulf %1345, %1335 : vector<16x16xf32>
    %1347 = arith.addf %1313, %1346 : vector<16x16xf32>
    %c463 = arith.constant 463 : index
    %1348 = memref.load %arg1[%c463] : memref<512xf32, #tpu.memory_space<smem>>
    %1349 = vector.broadcast %1348 : f32 to vector<16x16xf32>
    %1350 = arith.mulf %1349, %1335 : vector<16x16xf32>
    %1351 = arith.addf %1317, %1350 : vector<16x16xf32>
    %c467 = arith.constant 467 : index
    %1352 = memref.load %arg1[%c467] : memref<512xf32, #tpu.memory_space<smem>>
    %1353 = vector.broadcast %1352 : f32 to vector<16x16xf32>
    %1354 = arith.mulf %1353, %1335 : vector<16x16xf32>
    %1355 = arith.addf %1321, %1354 : vector<16x16xf32>
    %c471 = arith.constant 471 : index
    %1356 = memref.load %arg1[%c471] : memref<512xf32, #tpu.memory_space<smem>>
    %1357 = vector.broadcast %1356 : f32 to vector<16x16xf32>
    %1358 = arith.mulf %1357, %1335 : vector<16x16xf32>
    %1359 = arith.addf %1325, %1358 : vector<16x16xf32>
    %c475 = arith.constant 475 : index
    %1360 = memref.load %arg1[%c475] : memref<512xf32, #tpu.memory_space<smem>>
    %1361 = vector.broadcast %1360 : f32 to vector<16x16xf32>
    %1362 = arith.mulf %1361, %1335 : vector<16x16xf32>
    %1363 = arith.addf %1329, %1362 : vector<16x16xf32>
    %c479 = arith.constant 479 : index
    %1364 = memref.load %arg1[%c479] : memref<512xf32, #tpu.memory_space<smem>>
    %1365 = vector.broadcast %1364 : f32 to vector<16x16xf32>
    %1366 = arith.mulf %1365, %1335 : vector<16x16xf32>
    %1367 = arith.addf %1333, %1366 : vector<16x16xf32>
    %c0_327 = arith.constant 0 : index
    %c0_328 = arith.constant 0 : index
    %c1_329 = arith.constant 1 : index
    %c1_330 = arith.constant 1 : index
    %1368 = vector.load %arg4[%c0_327, %c0_328, %c1_329, %c1_330] : memref<1x4x17x17xf32, #tpu.memory_space<vmem>>, vector<1x1x16x16xf32>
    %1369 = vector.shape_cast %1368 : vector<1x1x16x16xf32> to vector<16x16xf32>
    %c480 = arith.constant 480 : index
    %1370 = memref.load %arg1[%c480] : memref<512xf32, #tpu.memory_space<smem>>
    %1371 = vector.broadcast %1370 : f32 to vector<16x16xf32>
    %1372 = arith.mulf %1371, %1369 : vector<16x16xf32>
    %1373 = arith.addf %1339, %1372 : vector<16x16xf32>
    %c484 = arith.constant 484 : index
    %1374 = memref.load %arg1[%c484] : memref<512xf32, #tpu.memory_space<smem>>
    %1375 = vector.broadcast %1374 : f32 to vector<16x16xf32>
    %1376 = arith.mulf %1375, %1369 : vector<16x16xf32>
    %1377 = arith.addf %1343, %1376 : vector<16x16xf32>
    %c488 = arith.constant 488 : index
    %1378 = memref.load %arg1[%c488] : memref<512xf32, #tpu.memory_space<smem>>
    %1379 = vector.broadcast %1378 : f32 to vector<16x16xf32>
    %1380 = arith.mulf %1379, %1369 : vector<16x16xf32>
    %1381 = arith.addf %1347, %1380 : vector<16x16xf32>
    %c492 = arith.constant 492 : index
    %1382 = memref.load %arg1[%c492] : memref<512xf32, #tpu.memory_space<smem>>
    %1383 = vector.broadcast %1382 : f32 to vector<16x16xf32>
    %1384 = arith.mulf %1383, %1369 : vector<16x16xf32>
    %1385 = arith.addf %1351, %1384 : vector<16x16xf32>
    %c496 = arith.constant 496 : index
    %1386 = memref.load %arg1[%c496] : memref<512xf32, #tpu.memory_space<smem>>
    %1387 = vector.broadcast %1386 : f32 to vector<16x16xf32>
    %1388 = arith.mulf %1387, %1369 : vector<16x16xf32>
    %1389 = arith.addf %1355, %1388 : vector<16x16xf32>
    %c500 = arith.constant 500 : index
    %1390 = memref.load %arg1[%c500] : memref<512xf32, #tpu.memory_space<smem>>
    %1391 = vector.broadcast %1390 : f32 to vector<16x16xf32>
    %1392 = arith.mulf %1391, %1369 : vector<16x16xf32>
    %1393 = arith.addf %1359, %1392 : vector<16x16xf32>
    %c504 = arith.constant 504 : index
    %1394 = memref.load %arg1[%c504] : memref<512xf32, #tpu.memory_space<smem>>
    %1395 = vector.broadcast %1394 : f32 to vector<16x16xf32>
    %1396 = arith.mulf %1395, %1369 : vector<16x16xf32>
    %1397 = arith.addf %1363, %1396 : vector<16x16xf32>
    %c508 = arith.constant 508 : index
    %1398 = memref.load %arg1[%c508] : memref<512xf32, #tpu.memory_space<smem>>
    %1399 = vector.broadcast %1398 : f32 to vector<16x16xf32>
    %1400 = arith.mulf %1399, %1369 : vector<16x16xf32>
    %1401 = arith.addf %1367, %1400 : vector<16x16xf32>
    %c0_331 = arith.constant 0 : index
    %c1_332 = arith.constant 1 : index
    %c1_333 = arith.constant 1 : index
    %c1_334 = arith.constant 1 : index
    %1402 = vector.load %arg4[%c0_331, %c1_332, %c1_333, %c1_334] : memref<1x4x17x17xf32, #tpu.memory_space<vmem>>, vector<1x1x16x16xf32>
    %1403 = vector.shape_cast %1402 : vector<1x1x16x16xf32> to vector<16x16xf32>
    %c481 = arith.constant 481 : index
    %1404 = memref.load %arg1[%c481] : memref<512xf32, #tpu.memory_space<smem>>
    %1405 = vector.broadcast %1404 : f32 to vector<16x16xf32>
    %1406 = arith.mulf %1405, %1403 : vector<16x16xf32>
    %1407 = arith.addf %1373, %1406 : vector<16x16xf32>
    %c485 = arith.constant 485 : index
    %1408 = memref.load %arg1[%c485] : memref<512xf32, #tpu.memory_space<smem>>
    %1409 = vector.broadcast %1408 : f32 to vector<16x16xf32>
    %1410 = arith.mulf %1409, %1403 : vector<16x16xf32>
    %1411 = arith.addf %1377, %1410 : vector<16x16xf32>
    %c489 = arith.constant 489 : index
    %1412 = memref.load %arg1[%c489] : memref<512xf32, #tpu.memory_space<smem>>
    %1413 = vector.broadcast %1412 : f32 to vector<16x16xf32>
    %1414 = arith.mulf %1413, %1403 : vector<16x16xf32>
    %1415 = arith.addf %1381, %1414 : vector<16x16xf32>
    %c493 = arith.constant 493 : index
    %1416 = memref.load %arg1[%c493] : memref<512xf32, #tpu.memory_space<smem>>
    %1417 = vector.broadcast %1416 : f32 to vector<16x16xf32>
    %1418 = arith.mulf %1417, %1403 : vector<16x16xf32>
    %1419 = arith.addf %1385, %1418 : vector<16x16xf32>
    %c497 = arith.constant 497 : index
    %1420 = memref.load %arg1[%c497] : memref<512xf32, #tpu.memory_space<smem>>
    %1421 = vector.broadcast %1420 : f32 to vector<16x16xf32>
    %1422 = arith.mulf %1421, %1403 : vector<16x16xf32>
    %1423 = arith.addf %1389, %1422 : vector<16x16xf32>
    %c501 = arith.constant 501 : index
    %1424 = memref.load %arg1[%c501] : memref<512xf32, #tpu.memory_space<smem>>
    %1425 = vector.broadcast %1424 : f32 to vector<16x16xf32>
    %1426 = arith.mulf %1425, %1403 : vector<16x16xf32>
    %1427 = arith.addf %1393, %1426 : vector<16x16xf32>
    %c505 = arith.constant 505 : index
    %1428 = memref.load %arg1[%c505] : memref<512xf32, #tpu.memory_space<smem>>
    %1429 = vector.broadcast %1428 : f32 to vector<16x16xf32>
    %1430 = arith.mulf %1429, %1403 : vector<16x16xf32>
    %1431 = arith.addf %1397, %1430 : vector<16x16xf32>
    %c509 = arith.constant 509 : index
    %1432 = memref.load %arg1[%c509] : memref<512xf32, #tpu.memory_space<smem>>
    %1433 = vector.broadcast %1432 : f32 to vector<16x16xf32>
    %1434 = arith.mulf %1433, %1403 : vector<16x16xf32>
    %1435 = arith.addf %1401, %1434 : vector<16x16xf32>
    %c0_335 = arith.constant 0 : index
    %c2_336 = arith.constant 2 : index
    %c1_337 = arith.constant 1 : index
    %c1_338 = arith.constant 1 : index
    %1436 = vector.load %arg4[%c0_335, %c2_336, %c1_337, %c1_338] : memref<1x4x17x17xf32, #tpu.memory_space<vmem>>, vector<1x1x16x16xf32>
    %1437 = vector.shape_cast %1436 : vector<1x1x16x16xf32> to vector<16x16xf32>
    %c482 = arith.constant 482 : index
    %1438 = memref.load %arg1[%c482] : memref<512xf32, #tpu.memory_space<smem>>
    %1439 = vector.broadcast %1438 : f32 to vector<16x16xf32>
    %1440 = arith.mulf %1439, %1437 : vector<16x16xf32>
    %1441 = arith.addf %1407, %1440 : vector<16x16xf32>
    %c486 = arith.constant 486 : index
    %1442 = memref.load %arg1[%c486] : memref<512xf32, #tpu.memory_space<smem>>
    %1443 = vector.broadcast %1442 : f32 to vector<16x16xf32>
    %1444 = arith.mulf %1443, %1437 : vector<16x16xf32>
    %1445 = arith.addf %1411, %1444 : vector<16x16xf32>
    %c490 = arith.constant 490 : index
    %1446 = memref.load %arg1[%c490] : memref<512xf32, #tpu.memory_space<smem>>
    %1447 = vector.broadcast %1446 : f32 to vector<16x16xf32>
    %1448 = arith.mulf %1447, %1437 : vector<16x16xf32>
    %1449 = arith.addf %1415, %1448 : vector<16x16xf32>
    %c494 = arith.constant 494 : index
    %1450 = memref.load %arg1[%c494] : memref<512xf32, #tpu.memory_space<smem>>
    %1451 = vector.broadcast %1450 : f32 to vector<16x16xf32>
    %1452 = arith.mulf %1451, %1437 : vector<16x16xf32>
    %1453 = arith.addf %1419, %1452 : vector<16x16xf32>
    %c498 = arith.constant 498 : index
    %1454 = memref.load %arg1[%c498] : memref<512xf32, #tpu.memory_space<smem>>
    %1455 = vector.broadcast %1454 : f32 to vector<16x16xf32>
    %1456 = arith.mulf %1455, %1437 : vector<16x16xf32>
    %1457 = arith.addf %1423, %1456 : vector<16x16xf32>
    %c502 = arith.constant 502 : index
    %1458 = memref.load %arg1[%c502] : memref<512xf32, #tpu.memory_space<smem>>
    %1459 = vector.broadcast %1458 : f32 to vector<16x16xf32>
    %1460 = arith.mulf %1459, %1437 : vector<16x16xf32>
    %1461 = arith.addf %1427, %1460 : vector<16x16xf32>
    %c506 = arith.constant 506 : index
    %1462 = memref.load %arg1[%c506] : memref<512xf32, #tpu.memory_space<smem>>
    %1463 = vector.broadcast %1462 : f32 to vector<16x16xf32>
    %1464 = arith.mulf %1463, %1437 : vector<16x16xf32>
    %1465 = arith.addf %1431, %1464 : vector<16x16xf32>
    %c510 = arith.constant 510 : index
    %1466 = memref.load %arg1[%c510] : memref<512xf32, #tpu.memory_space<smem>>
    %1467 = vector.broadcast %1466 : f32 to vector<16x16xf32>
    %1468 = arith.mulf %1467, %1437 : vector<16x16xf32>
    %1469 = arith.addf %1435, %1468 : vector<16x16xf32>
    %c0_339 = arith.constant 0 : index
    %c3_340 = arith.constant 3 : index
    %c1_341 = arith.constant 1 : index
    %c1_342 = arith.constant 1 : index
    %1470 = vector.load %arg4[%c0_339, %c3_340, %c1_341, %c1_342] : memref<1x4x17x17xf32, #tpu.memory_space<vmem>>, vector<1x1x16x16xf32>
    %1471 = vector.shape_cast %1470 : vector<1x1x16x16xf32> to vector<16x16xf32>
    %c483 = arith.constant 483 : index
    %1472 = memref.load %arg1[%c483] : memref<512xf32, #tpu.memory_space<smem>>
    %1473 = vector.broadcast %1472 : f32 to vector<16x16xf32>
    %1474 = arith.mulf %1473, %1471 : vector<16x16xf32>
    %1475 = arith.addf %1441, %1474 : vector<16x16xf32>
    %c487 = arith.constant 487 : index
    %1476 = memref.load %arg1[%c487] : memref<512xf32, #tpu.memory_space<smem>>
    %1477 = vector.broadcast %1476 : f32 to vector<16x16xf32>
    %1478 = arith.mulf %1477, %1471 : vector<16x16xf32>
    %1479 = arith.addf %1445, %1478 : vector<16x16xf32>
    %c491 = arith.constant 491 : index
    %1480 = memref.load %arg1[%c491] : memref<512xf32, #tpu.memory_space<smem>>
    %1481 = vector.broadcast %1480 : f32 to vector<16x16xf32>
    %1482 = arith.mulf %1481, %1471 : vector<16x16xf32>
    %1483 = arith.addf %1449, %1482 : vector<16x16xf32>
    %c495 = arith.constant 495 : index
    %1484 = memref.load %arg1[%c495] : memref<512xf32, #tpu.memory_space<smem>>
    %1485 = vector.broadcast %1484 : f32 to vector<16x16xf32>
    %1486 = arith.mulf %1485, %1471 : vector<16x16xf32>
    %1487 = arith.addf %1453, %1486 : vector<16x16xf32>
    %c499 = arith.constant 499 : index
    %1488 = memref.load %arg1[%c499] : memref<512xf32, #tpu.memory_space<smem>>
    %1489 = vector.broadcast %1488 : f32 to vector<16x16xf32>
    %1490 = arith.mulf %1489, %1471 : vector<16x16xf32>
    %1491 = arith.addf %1457, %1490 : vector<16x16xf32>
    %c503 = arith.constant 503 : index
    %1492 = memref.load %arg1[%c503] : memref<512xf32, #tpu.memory_space<smem>>
    %1493 = vector.broadcast %1492 : f32 to vector<16x16xf32>
    %1494 = arith.mulf %1493, %1471 : vector<16x16xf32>
    %1495 = arith.addf %1461, %1494 : vector<16x16xf32>
    %c507 = arith.constant 507 : index
    %1496 = memref.load %arg1[%c507] : memref<512xf32, #tpu.memory_space<smem>>
    %1497 = vector.broadcast %1496 : f32 to vector<16x16xf32>
    %1498 = arith.mulf %1497, %1471 : vector<16x16xf32>
    %1499 = arith.addf %1465, %1498 : vector<16x16xf32>
    %c511 = arith.constant 511 : index
    %1500 = memref.load %arg1[%c511] : memref<512xf32, #tpu.memory_space<smem>>
    %1501 = vector.broadcast %1500 : f32 to vector<16x16xf32>
    %1502 = arith.mulf %1501, %1471 : vector<16x16xf32>
    %1503 = arith.addf %1469, %1502 : vector<16x16xf32>
    %c0_343 = arith.constant 0 : index
    %1504 = memref.load %arg3[%c0_343] : memref<1xf32, #tpu.memory_space<smem>>
    %cst_344 = arith.constant 0.000000e+00 : f32
    %1505 = vector.broadcast %cst_344 : f32 to vector<16x16xf32>
    %1506 = arith.cmpf oge, %1475, %1505 : vector<16x16xf32>
    %1507 = vector.broadcast %1504 : f32 to vector<16x16xf32>
    %1508 = arith.mulf %1507, %1475 : vector<16x16xf32>
    %1509 = arith.select %1506, %1475, %1508 : vector<16x16xi1>, vector<16x16xf32>
    %c0_345 = arith.constant 0 : index
    %c3_346 = arith.constant 3 : index
    %c0_347 = arith.constant 0 : index
    %c0_348 = arith.constant 0 : index
    %c0_349 = arith.constant 0 : index
    %1510 = vector.load %arg5[%c0_345, %c3_346, %c0_347, %c0_348, %c0_349] : memref<1x4x8x16x16xf32, #tpu.memory_space<vmem>>, vector<1x1x1x16x16xf32>
    %1511 = vector.shape_cast %1510 : vector<1x1x1x16x16xf32> to vector<16x16xf32>
    %1512 = vector.shape_cast %1509 : vector<16x16xf32> to vector<1x1x1x16x16xf32>
    tpu.vector_store %arg5[%c0_345, %c3_346, %c0_347, %c0_348, %c0_349], %1512 {strides = array<i32>} : memref<1x4x8x16x16xf32, #tpu.memory_space<vmem>>, vector<1x1x1x16x16xf32>,
    %c0_350 = arith.constant 0 : index
    %1513 = memref.load %arg3[%c0_350] : memref<1xf32, #tpu.memory_space<smem>>
    %cst_351 = arith.constant 0.000000e+00 : f32
    %1514 = vector.broadcast %cst_351 : f32 to vector<16x16xf32>
    %1515 = arith.cmpf oge, %1479, %1514 : vector<16x16xf32>
    %1516 = vector.broadcast %1513 : f32 to vector<16x16xf32>
    %1517 = arith.mulf %1516, %1479 : vector<16x16xf32>
    %1518 = arith.select %1515, %1479, %1517 : vector<16x16xi1>, vector<16x16xf32>
    %c0_352 = arith.constant 0 : index
    %c3_353 = arith.constant 3 : index
    %c1_354 = arith.constant 1 : index
    %c0_355 = arith.constant 0 : index
    %c0_356 = arith.constant 0 : index
    %1519 = vector.load %arg5[%c0_352, %c3_353, %c1_354, %c0_355, %c0_356] : memref<1x4x8x16x16xf32, #tpu.memory_space<vmem>>, vector<1x1x1x16x16xf32>
    %1520 = vector.shape_cast %1519 : vector<1x1x1x16x16xf32> to vector<16x16xf32>
    %1521 = vector.shape_cast %1518 : vector<16x16xf32> to vector<1x1x1x16x16xf32>
    tpu.vector_store %arg5[%c0_352, %c3_353, %c1_354, %c0_355, %c0_356], %1521 {strides = array<i32>} : memref<1x4x8x16x16xf32, #tpu.memory_space<vmem>>, vector<1x1x1x16x16xf32>,
    %c0_357 = arith.constant 0 : index
    %1522 = memref.load %arg3[%c0_357] : memref<1xf32, #tpu.memory_space<smem>>
    %cst_358 = arith.constant 0.000000e+00 : f32
    %1523 = vector.broadcast %cst_358 : f32 to vector<16x16xf32>
    %1524 = arith.cmpf oge, %1483, %1523 : vector<16x16xf32>
    %1525 = vector.broadcast %1522 : f32 to vector<16x16xf32>
    %1526 = arith.mulf %1525, %1483 : vector<16x16xf32>
    %1527 = arith.select %1524, %1483, %1526 : vector<16x16xi1>, vector<16x16xf32>
    %c0_359 = arith.constant 0 : index
    %c3_360 = arith.constant 3 : index
    %c2_361 = arith.constant 2 : index
    %c0_362 = arith.constant 0 : index
    %c0_363 = arith.constant 0 : index
    %1528 = vector.load %arg5[%c0_359, %c3_360, %c2_361, %c0_362, %c0_363] : memref<1x4x8x16x16xf32, #tpu.memory_space<vmem>>, vector<1x1x1x16x16xf32>
    %1529 = vector.shape_cast %1528 : vector<1x1x1x16x16xf32> to vector<16x16xf32>
    %1530 = vector.shape_cast %1527 : vector<16x16xf32> to vector<1x1x1x16x16xf32>
    tpu.vector_store %arg5[%c0_359, %c3_360, %c2_361, %c0_362, %c0_363], %1530 {strides = array<i32>} : memref<1x4x8x16x16xf32, #tpu.memory_space<vmem>>, vector<1x1x1x16x16xf32>,
    %c0_364 = arith.constant 0 : index
    %1531 = memref.load %arg3[%c0_364] : memref<1xf32, #tpu.memory_space<smem>>
    %cst_365 = arith.constant 0.000000e+00 : f32
    %1532 = vector.broadcast %cst_365 : f32 to vector<16x16xf32>
    %1533 = arith.cmpf oge, %1487, %1532 : vector<16x16xf32>
    %1534 = vector.broadcast %1531 : f32 to vector<16x16xf32>
    %1535 = arith.mulf %1534, %1487 : vector<16x16xf32>
    %1536 = arith.select %1533, %1487, %1535 : vector<16x16xi1>, vector<16x16xf32>
    %c0_366 = arith.constant 0 : index
    %c3_367 = arith.constant 3 : index
    %c3_368 = arith.constant 3 : index
    %c0_369 = arith.constant 0 : index
    %c0_370 = arith.constant 0 : index
    %1537 = vector.load %arg5[%c0_366, %c3_367, %c3_368, %c0_369, %c0_370] : memref<1x4x8x16x16xf32, #tpu.memory_space<vmem>>, vector<1x1x1x16x16xf32>
    %1538 = vector.shape_cast %1537 : vector<1x1x1x16x16xf32> to vector<16x16xf32>
    %1539 = vector.shape_cast %1536 : vector<16x16xf32> to vector<1x1x1x16x16xf32>
    tpu.vector_store %arg5[%c0_366, %c3_367, %c3_368, %c0_369, %c0_370], %1539 {strides = array<i32>} : memref<1x4x8x16x16xf32, #tpu.memory_space<vmem>>, vector<1x1x1x16x16xf32>,
    %c0_371 = arith.constant 0 : index
    %1540 = memref.load %arg3[%c0_371] : memref<1xf32, #tpu.memory_space<smem>>
    %cst_372 = arith.constant 0.000000e+00 : f32
    %1541 = vector.broadcast %cst_372 : f32 to vector<16x16xf32>
    %1542 = arith.cmpf oge, %1491, %1541 : vector<16x16xf32>
    %1543 = vector.broadcast %1540 : f32 to vector<16x16xf32>
    %1544 = arith.mulf %1543, %1491 : vector<16x16xf32>
    %1545 = arith.select %1542, %1491, %1544 : vector<16x16xi1>, vector<16x16xf32>
    %c0_373 = arith.constant 0 : index
    %c3_374 = arith.constant 3 : index
    %c4_375 = arith.constant 4 : index
    %c0_376 = arith.constant 0 : index
    %c0_377 = arith.constant 0 : index
    %1546 = vector.load %arg5[%c0_373, %c3_374, %c4_375, %c0_376, %c0_377] : memref<1x4x8x16x16xf32, #tpu.memory_space<vmem>>, vector<1x1x1x16x16xf32>
    %1547 = vector.shape_cast %1546 : vector<1x1x1x16x16xf32> to vector<16x16xf32>
    %1548 = vector.shape_cast %1545 : vector<16x16xf32> to vector<1x1x1x16x16xf32>
    tpu.vector_store %arg5[%c0_373, %c3_374, %c4_375, %c0_376, %c0_377], %1548 {strides = array<i32>} : memref<1x4x8x16x16xf32, #tpu.memory_space<vmem>>, vector<1x1x1x16x16xf32>,
    %c0_378 = arith.constant 0 : index
    %1549 = memref.load %arg3[%c0_378] : memref<1xf32, #tpu.memory_space<smem>>
    %cst_379 = arith.constant 0.000000e+00 : f32
    %1550 = vector.broadcast %cst_379 : f32 to vector<16x16xf32>
    %1551 = arith.cmpf oge, %1495, %1550 : vector<16x16xf32>
    %1552 = vector.broadcast %1549 : f32 to vector<16x16xf32>
    %1553 = arith.mulf %1552, %1495 : vector<16x16xf32>
    %1554 = arith.select %1551, %1495, %1553 : vector<16x16xi1>, vector<16x16xf32>
    %c0_380 = arith.constant 0 : index
    %c3_381 = arith.constant 3 : index
    %c5_382 = arith.constant 5 : index
    %c0_383 = arith.constant 0 : index
    %c0_384 = arith.constant 0 : index
    %1555 = vector.load %arg5[%c0_380, %c3_381, %c5_382, %c0_383, %c0_384] : memref<1x4x8x16x16xf32, #tpu.memory_space<vmem>>, vector<1x1x1x16x16xf32>
    %1556 = vector.shape_cast %1555 : vector<1x1x1x16x16xf32> to vector<16x16xf32>
    %1557 = vector.shape_cast %1554 : vector<16x16xf32> to vector<1x1x1x16x16xf32>
    tpu.vector_store %arg5[%c0_380, %c3_381, %c5_382, %c0_383, %c0_384], %1557 {strides = array<i32>} : memref<1x4x8x16x16xf32, #tpu.memory_space<vmem>>, vector<1x1x1x16x16xf32>,
    %c0_385 = arith.constant 0 : index
    %1558 = memref.load %arg3[%c0_385] : memref<1xf32, #tpu.memory_space<smem>>
    %cst_386 = arith.constant 0.000000e+00 : f32
    %1559 = vector.broadcast %cst_386 : f32 to vector<16x16xf32>
    %1560 = arith.cmpf oge, %1499, %1559 : vector<16x16xf32>
    %1561 = vector.broadcast %1558 : f32 to vector<16x16xf32>
    %1562 = arith.mulf %1561, %1499 : vector<16x16xf32>
    %1563 = arith.select %1560, %1499, %1562 : vector<16x16xi1>, vector<16x16xf32>
    %c0_387 = arith.constant 0 : index
    %c3_388 = arith.constant 3 : index
    %c6_389 = arith.constant 6 : index
    %c0_390 = arith.constant 0 : index
    %c0_391 = arith.constant 0 : index
    %1564 = vector.load %arg5[%c0_387, %c3_388, %c6_389, %c0_390, %c0_391] : memref<1x4x8x16x16xf32, #tpu.memory_space<vmem>>, vector<1x1x1x16x16xf32>
    %1565 = vector.shape_cast %1564 : vector<1x1x1x16x16xf32> to vector<16x16xf32>
    %1566 = vector.shape_cast %1563 : vector<16x16xf32> to vector<1x1x1x16x16xf32>
    tpu.vector_store %arg5[%c0_387, %c3_388, %c6_389, %c0_390, %c0_391], %1566 {strides = array<i32>} : memref<1x4x8x16x16xf32, #tpu.memory_space<vmem>>, vector<1x1x1x16x16xf32>,
    %c0_392 = arith.constant 0 : index
    %1567 = memref.load %arg3[%c0_392] : memref<1xf32, #tpu.memory_space<smem>>
    %cst_393 = arith.constant 0.000000e+00 : f32
    %1568 = vector.broadcast %cst_393 : f32 to vector<16x16xf32>
    %1569 = arith.cmpf oge, %1503, %1568 : vector<16x16xf32>
    %1570 = vector.broadcast %1567 : f32 to vector<16x16xf32>
    %1571 = arith.mulf %1570, %1503 : vector<16x16xf32>
    %1572 = arith.select %1569, %1503, %1571 : vector<16x16xi1>, vector<16x16xf32>
    %c0_394 = arith.constant 0 : index
    %c3_395 = arith.constant 3 : index
    %c7_396 = arith.constant 7 : index
    %c0_397 = arith.constant 0 : index
    %c0_398 = arith.constant 0 : index
    %1573 = vector.load %arg5[%c0_394, %c3_395, %c7_396, %c0_397, %c0_398] : memref<1x4x8x16x16xf32, #tpu.memory_space<vmem>>, vector<1x1x1x16x16xf32>
    %1574 = vector.shape_cast %1573 : vector<1x1x1x16x16xf32> to vector<16x16xf32>
    %1575 = vector.shape_cast %1572 : vector<16x16xf32> to vector<1x1x1x16x16xf32>
    tpu.vector_store %arg5[%c0_394, %c3_395, %c7_396, %c0_397, %c0_398], %1575 {strides = array<i32>} : memref<1x4x8x16x16xf32, #tpu.memory_space<vmem>>, vector<1x1x1x16x16xf32>,
    return
  }
  func.func @transform_0(%arg0: i32) -> i32 {
    %c0_i32 = arith.constant 0 : i32
    %c0_i32_0 = arith.constant 0 : i32
    return %c0_i32 : i32
  }
  func.func @transform_1(%arg0: i32) -> i32 {
    %c0_i32 = arith.constant 0 : i32
    %c0_i32_0 = arith.constant 0 : i32
    return %c0_i32 : i32
  }
  func.func @transform_2(%arg0: i32) -> i32 {
    %c0_i32 = arith.constant 0 : i32
    %c0_i32_0 = arith.constant 0 : i32
    return %c0_i32 : i32
  }
  func.func @transform_3(%arg0: i32) -> (i32, i32, i32, i32) {
    %c0_i32 = arith.constant 0 : i32
    %c0_i32_0 = arith.constant 0 : i32
    %c0_i32_1 = arith.constant 0 : i32
    %c0_i32_2 = arith.constant 0 : i32
    return %arg0, %c0_i32, %c0_i32_0, %c0_i32_1 : i32, i32, i32, i32
  }
  func.func @transform_4(%arg0: i32) -> (i32, i32, i32, i32, i32) {
    %c0_i32 = arith.constant 0 : i32
    %c0_i32_0 = arith.constant 0 : i32
    %c0_i32_1 = arith.constant 0 : i32
    %c0_i32_2 = arith.constant 0 : i32
    %c0_i32_3 = arith.constant 0 : i32
    return %arg0, %c0_i32, %c0_i32_0, %c0_i32_1, %c0_i32_2 : i32, i32, i32, i32, i32
  }
}

</mosaic_0001>

<llo_original>
// kernel: trans_conv_prelu.1
$region0: #{trans_conv_prelu.1}
  #allocation0 [shape = 'u32[]', space=smem, size = 0x4, offset = 0x4, fixed_abs, tag = 'smem constant byte address 0x4 - core index']
  #allocation1 [shape = 'u32[144,128]{1,0:T(1,128)}', space=vmem, size = 0x12000, scoped, tag = 'internal scratch']
  #allocation2 [shape = 'f32[1]{0:T(128)S(6)}', space=smem, size = 0x200, scoped, tag = 'scoped memory for trans_conv_prelu.1']
  %s0 = inlined_call_operand.vmem [shape: f32[512], index: 0, kind: input, shape index: {}]
  %s1 = inlined_call_operand.vmem [shape: f32[8], index: 1, kind: input, shape index: {}]
  %s2 = inlined_call_operand.<no memory space> [shape: f32[1], index: 2, kind: input, shape index: {}]
  %s3 = inlined_call_operand.vmem [shape: f32[2,4,17,17], index: 3, kind: input, shape index: {}]
  %s4 = inlined_call_operand.vmem [shape: f32[2,4,8,16,16], index: 4, kind: output, shape index: {}]
  %s5 = sld [smem:[#allocation0]]
  $region57: #{trans_conv_prelu.1} parent=0
    _
  %s7 = ssub.s32 1, %s5
  %s8 = scalar_select 0, %s7, %s5
  %9 = sst [smem:[#allocation2]] %s2
  $region1: #{trans_conv_prelu.1} parent=0
    #allocation3 [shape = 'u8[2048]{0}', space=smem, size = 0x800, scoped, tag = 'input window, operand 0, single buffered']
    #allocation4 [shape = 's32[2]{0}', space=sflag, size = 0x8, scoped, tag = 'scoped memory for trans_conv_prelu.1']
    #allocation5 [shape = 'u8[512]{0}', space=smem, size = 0x200, scoped, tag = 'input window, operand 1, single buffered']
    #allocation6 [shape = 's32[1]{0}', space=sflag, size = 0x4, scoped, tag = 'scoped memory for trans_conv_prelu.1']
    %10 = vsyncpa [#allocation4], 0
    %11 = vsyncpa [#allocation6], 0
    loop: start=0, step=1, limit=4
    $region2: #{trans_conv_prelu.1} parent=1 // loop_pre_header
      _
    $region3: #{trans_conv_prelu.1} parent=1 // loop_header
      %s13 = sphi 0, %s17
      %p14 = scmp.ge.s32.totalorder %s13, 4
      %s21 = sphi 0, %s21
      %s23 = sphi 0, %s21
      %s24 = sphi 0, %s23
      %s38 = sphi 0, %s24
      %s42 = sphi 0, %s42
      %s44 = sphi 0, %s42
      %s45 = sphi 0, %s44
      %s59 = sphi 0, %s45
      %s63 = sphi 0, %s63
      %s65 = sphi 0, %s63
      %s66 = sphi 0, %s65
      %s80 = sphi 0, %s66
      %s86 = sphi 0, %s88
      %s89 = sphi 0, %s86
      %s90 = sphi 0, %s89
      %s106 = sphi 0, %s90
      %s112 = sphi 0, %s114
      %s115 = sphi 0, %s112
      %s116 = sphi 0, %s115
      %s132 = sphi 0, %s116
    $region4: #{trans_conv_prelu.1} parent=1 // loop_header_branch
      %16 = sbr.rel (%p14) target = $region8
    $region5: #{trans_conv_prelu.1} parent=1 // loop_body
      %s18 = ssub.s32 %s13, 1
      %s19 = ssub.s32 %s13, 2
      %s20 = sadd.s32 %s13, 1
      %s22 = sadd.s32 %s21, 1
      %p25 = scmp.eq.s32.totalorder %s13, 1
      %p26 = scmp.ne.s32.totalorder %s21, %s23
      %p27 = scmp.eq.s32.totalorder %s13, 0
      %p28 = por %p26, %p27
      %p29 = scmp.ne.s32.totalorder %s21, %s23
      %p30 = scmp.eq.s32.totalorder %s18, 1
      %p31 = por %p29, %p30
      %p32 = scmp.ne.s32.totalorder %s23, %s24
      %p33 = scmp.eq.s32.totalorder %s18, 0
      %p34 = por %p32, %p33
      %p35 = scmp.ne.s32.totalorder %s23, %s24
      %p36 = scmp.eq.s32.totalorder %s19, 1
      %p37 = por %p35, %p36
      %p39 = scmp.ne.s32.totalorder %s24, %s38
      %p40 = scmp.eq.s32.totalorder %s19, 0
      %p41 = por %p39, %p40
      %s43 = sadd.s32 %s42, 1
      %p46 = scmp.eq.s32.totalorder %s13, 1
      %p47 = scmp.ne.s32.totalorder %s42, %s44
      %p48 = scmp.eq.s32.totalorder %s13, 0
      %p49 = por %p47, %p48
      %p50 = scmp.ne.s32.totalorder %s42, %s44
      %p51 = scmp.eq.s32.totalorder %s18, 1
      %p52 = por %p50, %p51
      %p53 = scmp.ne.s32.totalorder %s44, %s45
      %p54 = scmp.eq.s32.totalorder %s18, 0
      %p55 = por %p53, %p54
      %p56 = scmp.ne.s32.totalorder %s44, %s45
      %p57 = scmp.eq.s32.totalorder %s19, 1
      %p58 = por %p56, %p57
      %p60 = scmp.ne.s32.totalorder %s45, %s59
      %p61 = scmp.eq.s32.totalorder %s19, 0
      %p62 = por %p60, %p61
      %s64 = sadd.s32 %s63, 1
      %p67 = scmp.eq.s32.totalorder %s13, 1
      %p68 = scmp.ne.s32.totalorder %s63, %s65
      %p69 = scmp.eq.s32.totalorder %s13, 0
      %p70 = por %p68, %p69
      %p71 = scmp.ne.s32.totalorder %s63, %s65
      %p72 = scmp.eq.s32.totalorder %s18, 1
      %p73 = por %p71, %p72
      %p74 = scmp.ne.s32.totalorder %s65, %s66
      %p75 = scmp.eq.s32.totalorder %s18, 0
      %p76 = por %p74, %p75
      %p77 = scmp.ne.s32.totalorder %s65, %s66
      %p78 = scmp.eq.s32.totalorder %s19, 1
      %p79 = por %p77, %p78
      %p81 = scmp.ne.s32.totalorder %s66, %s80
      %p82 = scmp.eq.s32.totalorder %s19, 0
      %p83 = por %p81, %p82
      %s84 = ssub.s32 %s13, %s20
      %p85 = scmp.eq.s32.totalorder %s84, 0
      %s87 = sadd.s32 %s86, 1
      %s88 = scalar_select %p85, %s86, %s87
      %p91 = pneg %p85
      %p92 = scmp.eq.s32.totalorder %s13, 1
      %p93 = por %p91, %p92
      %p94 = scmp.ne.s32.totalorder %s86, %s89
      %p95 = scmp.eq.s32.totalorder %s13, 0
      %p96 = por %p94, %p95
      %p97 = scmp.ne.s32.totalorder %s86, %s89
      %p98 = scmp.eq.s32.totalorder %s18, 1
      %p99 = por %p97, %p98
      %p100 = scmp.ne.s32.totalorder %s89, %s90
      %p101 = scmp.eq.s32.totalorder %s18, 0
      %p102 = por %p100, %p101
      %p103 = scmp.ne.s32.totalorder %s89, %s90
      %p104 = scmp.eq.s32.totalorder %s19, 1
      %p105 = por %p103, %p104
      %p107 = scmp.ne.s32.totalorder %s90, %s106
      %p108 = scmp.eq.s32.totalorder %s19, 0
      %p109 = por %p107, %p108
      %s110 = ssub.s32 %s13, %s20
      %p111 = scmp.eq.s32.totalorder %s110, 0
      %s113 = sadd.s32 %s112, 1
      %s114 = scalar_select %p111, %s112, %s113
      %p117 = pneg %p111
      %p118 = scmp.eq.s32.totalorder %s13, 1
      %p119 = por %p117, %p118
      %p120 = scmp.ne.s32.totalorder %s112, %s115
      %p121 = scmp.eq.s32.totalorder %s13, 0
      %p122 = por %p120, %p121
      %p123 = scmp.ne.s32.totalorder %s112, %s115
      %p124 = scmp.eq.s32.totalorder %s18, 1
      %p125 = por %p123, %p124
      %p126 = scmp.ne.s32.totalorder %s115, %s116
      %p127 = scmp.eq.s32.totalorder %s18, 0
      %p128 = por %p126, %p127
      %p129 = scmp.ne.s32.totalorder %s115, %s116
      %p130 = scmp.eq.s32.totalorder %s19, 1
      %p131 = por %p129, %p130
      %p133 = scmp.ne.s32.totalorder %s116, %s132
      %p134 = scmp.eq.s32.totalorder %s19, 0
      %p135 = por %p133, %p134
      %p136 = scmp.le.s32.totalorder 1, %s13
      %p137 = scmp.lt.s32.totalorder %s13, 3
      %p138 = pnand %p136, %p137
      %p139 = pneg %p138
      // Predicated region
      $region9: #{trans_conv_prelu.1} parent=5 // pred_check
        _
      $region10: #{trans_conv_prelu.1} parent=5 // pred_check_branch
        %141 = sbr.rel (%p138) target = $region12
      $region11: #{trans_conv_prelu.1} parent=5 // pred_region
        %s142 = ssub.s32 %s13, 1
        // Predicated region
        $region13: #{trans_conv_prelu.1} parent=11 // pred_check
          %p143 = pneg %p34
        $region14: #{trans_conv_prelu.1} parent=11 // pred_check_branch
          %145 = sbr.rel (%p143) target = $region16
        $region15: #{trans_conv_prelu.1} parent=11 // pred_region
          %s147 = ssub.s32 64, 64
          %148 = vsyncadd [#allocation4], %s147
          %s150 = sshll.u32 %s0, 4
          %s151 = int_to_ptr.vmem [resolvable:$true] %s150
          %153 = dma.vmem_to_smem %s151, 64, [#allocation3], [#allocation4]
        $region16: #{trans_conv_prelu.1} parent=11 // pred_fallthru
          _
        // Predicated region
        $region17: #{trans_conv_prelu.1} parent=11 // pred_check
          %p154 = pneg %p55
        $region18: #{trans_conv_prelu.1} parent=11 // pred_check_branch
          %156 = sbr.rel (%p154) target = $region20
        $region19: #{trans_conv_prelu.1} parent=11 // pred_region
          %s158 = ssub.s32 16, 16
          %159 = vsyncadd [#allocation6], %s158
          %s161 = sshll.u32 %s1, 4
          %s162 = int_to_ptr.vmem [resolvable:$true] %s161
          %164 = dma.vmem_to_smem %s162, 16, [#allocation5], [#allocation6]
        $region20: #{trans_conv_prelu.1} parent=11 // pred_fallthru
          _
        // Predicated region
        $region21: #{trans_conv_prelu.1} parent=11 // pred_check
          %p165 = pneg %p76
        $region22: #{trans_conv_prelu.1} parent=11 // pred_check_branch
          %167 = sbr.rel (%p165) target = $region24
        $region23: #{trans_conv_prelu.1} parent=11 // pred_region
          _
        $region24: #{trans_conv_prelu.1} parent=11 // pred_fallthru
          _
      $region12: #{trans_conv_prelu.1} parent=5 // pred_fallthru
        _
      %p168 = scmp.lt.s32.totalorder %s13, 2
      // Predicated region
      $region25: #{trans_conv_prelu.1} parent=5 // pred_check
        %p169 = pneg %p168
      $region26: #{trans_conv_prelu.1} parent=5 // pred_check_branch
        %171 = sbr.rel (%p169) target = $region28
      $region27: #{trans_conv_prelu.1} parent=5 // pred_region
        // Predicated region
        $region29: #{trans_conv_prelu.1} parent=27 // pred_check
          %p172 = pneg %p96
        $region30: #{trans_conv_prelu.1} parent=27 // pred_check_branch
          %174 = sbr.rel (%p172) target = $region32
        $region31: #{trans_conv_prelu.1} parent=27 // pred_region
          %p175 = scmp.lt.s32.totalorder %s13, 1
          %s176 = scalar_select %p175, %s13, 1
          %s177 = smul.addr %s176, 12
          %s178 = smul.addr %s177, 8
          %s179 = scalar_lea.vmem %s3, %s178
        $region32: #{trans_conv_prelu.1} parent=27 // pred_fallthru
          _
      $region28: #{trans_conv_prelu.1} parent=5 // pred_fallthru
        _
      %p180 = scmp.le.s32.totalorder 1, %s13
      %p181 = scmp.lt.s32.totalorder %s13, 3
      %p182 = pnand %p180, %p181
      %p183 = pneg %p182
      // Predicated region
      $region33: #{trans_conv_prelu.1} parent=5 // pred_check
        _
      $region34: #{trans_conv_prelu.1} parent=5 // pred_check_branch
        %185 = sbr.rel (%p182) target = $region36
      $region35: #{trans_conv_prelu.1} parent=5 // pred_region
        %s186 = ssub.s32 %s13, 1
        // Predicated region
        $region37: #{trans_conv_prelu.1} parent=35 // pred_check
          %p187 = pneg %p34
        $region38: #{trans_conv_prelu.1} parent=35 // pred_check_branch
          %189 = sbr.rel (%p187) target = $region40
        $region39: #{trans_conv_prelu.1} parent=35 // pred_region
          %190 = dma.done [#allocation4], 64
        $region40: #{trans_conv_prelu.1} parent=35 // pred_fallthru
          _
        // Predicated region
        $region41: #{trans_conv_prelu.1} parent=35 // pred_check
          %p191 = pneg %p55
        $region42: #{trans_conv_prelu.1} parent=35 // pred_check_branch
          %193 = sbr.rel (%p191) target = $region44
        $region43: #{trans_conv_prelu.1} parent=35 // pred_region
          %194 = dma.done [#allocation6], 16
        $region44: #{trans_conv_prelu.1} parent=35 // pred_fallthru
          _
        %195 = sfence
        %p196 = pneg %p34
        %p197 = pneg %p31
        %p198 = pneg %p55
        %p199 = pneg %p52
        %p200 = pneg %p76
        %p201 = pneg %p73
        %p202 = scmp.lt.s32.totalorder %s18, 1
        %s203 = scalar_select %p202, %s18, 1
        %s204 = smul.addr %s203, 12
        %s205 = smul.addr %s204, 8
        %s206 = scalar_lea.vmem %s3, %s205
        %p207 = pneg %p102
        %p208 = pneg %p99
        %p209 = pneg %p128
        %p210 = pneg %p125
        %p211 = scmp.lt.s32.totalorder %s18, 1
        %s212 = scalar_select %p211, %s18, 1
        %s213 = smul.addr %s212, 64
        %s214 = smul.addr %s213, 8
        %s215 = scalar_lea.vmem %s4, %s214
        %p216 = scmp.lt.s32.totalorder %s18, 1
        %s217 = scalar_select %p216, %s18, 1
        %s218 = smul.addr %s217, 12
        %s219 = smul.addr %s218, 8
        %s220 = scalar_lea.vmem %s3, %s219
        %p221 = scmp.lt.s32.totalorder %s18, 1
        %s222 = scalar_select %p221, %s18, 1
        %s223 = smul.addr %s222, 64
        %s224 = smul.addr %s223, 8
        %s225 = scalar_lea.vmem %s4, %s224
        %s226 = sld [smem:[#allocation5]]
        %v227 = vstv %s226
        %s228 = sld [smem:[#allocation5 + $0x1]]
        %v229 = vstv %s228
        %s230 = sld [smem:[#allocation5 + $0x2]]
        %v231 = vstv %s230
        %s232 = sld [smem:[#allocation5 + $0x3]]
        %v233 = vstv %s232
        %s234 = sld [smem:[#allocation5 + $0x4]]
        %v235 = vstv %s234
        %s236 = sld [smem:[#allocation5 + $0x5]]
        %v237 = vstv %s236
        %s238 = sld [smem:[#allocation5 + $0x6]]
        %v239 = vstv %s238
        %s240 = sld [smem:[#allocation5 + $0x7]]
        %v241 = vstv %s240
        %v242 = vld [vmem:[%s220] sm:$0xff]
        %v243 = vld [vmem:[%s220 + $0x8] sm:$0xff]
        %s244 = sld [smem:[#allocation3]]
        %v245 = vstv %s244
        %v246 = vmul.f32 %v245, %v242
        %v247 = vmul.f32 %v245, %v243
        %v248 = vadd.f32 %v227, %v246
        %v249 = vadd.f32 %v227, %v247
        %s250 = sld [smem:[#allocation3 + $0x4]]
        %v251 = vstv %s250
        %v252 = vmul.f32 %v251, %v242
        %v253 = vmul.f32 %v251, %v243
        %v254 = vadd.f32 %v229, %v252
        %v255 = vadd.f32 %v229, %v253
        %s256 = sld [smem:[#allocation3 + $0x8]]
        %v257 = vstv %s256
        %v258 = vmul.f32 %v257, %v242
        %v259 = vmul.f32 %v257, %v243
        %v260 = vadd.f32 %v231, %v258
        %v261 = vadd.f32 %v231, %v259
        %s262 = sld [smem:[#allocation3 + $0xc]]
        %v263 = vstv %s262
        %v264 = vmul.f32 %v263, %v242
        %v265 = vmul.f32 %v263, %v243
        %v266 = vadd.f32 %v233, %v264
        %v267 = vadd.f32 %v233, %v265
        %s268 = sld [smem:[#allocation3 + $0x10]]
        %v269 = vstv %s268
        %v270 = vmul.f32 %v269, %v242
        %v271 = vmul.f32 %v269, %v243
        %v272 = vadd.f32 %v235, %v270
        %v273 = vadd.f32 %v235, %v271
        %s274 = sld [smem:[#allocation3 + $0x14]]
        %v275 = vstv %s274
        %v276 = vmul.f32 %v275, %v242
        %v277 = vmul.f32 %v275, %v243
        %v278 = vadd.f32 %v237, %v276
        %v279 = vadd.f32 %v237, %v277
        %s280 = sld [smem:[#allocation3 + $0x18]]
        %v281 = vstv %s280
        %v282 = vmul.f32 %v281, %v242
        %v283 = vmul.f32 %v281, %v243
        %v284 = vadd.f32 %v239, %v282
        %v285 = vadd.f32 %v239, %v283
        %s286 = sld [smem:[#allocation3 + $0x1c]]
        %v287 = vstv %s286
        %v288 = vmul.f32 %v287, %v242
        %v289 = vmul.f32 %v287, %v243
        %v290 = vadd.f32 %v241, %v288
        %v291 = vadd.f32 %v241, %v289
        %s292 = scalar_lea.vmem %s220, 24
        %v293 = vld [vmem:[%s292] sm:$0xff]
        %v294 = vld [vmem:[%s292 + $0x8] sm:$0xff]
        %s295 = sld [smem:[#allocation3 + $0x1]]
        %v296 = vstv %s295
        %v297 = vmul.f32 %v296, %v293
        %v298 = vmul.f32 %v296, %v294
        %v299 = vadd.f32 %v248, %v297
        %v300 = vadd.f32 %v249, %v298
        %s301 = sld [smem:[#allocation3 + $0x5]]
        %v302 = vstv %s301
        %v303 = vmul.f32 %v302, %v293
        %v304 = vmul.f32 %v302, %v294
        %v305 = vadd.f32 %v254, %v303
        %v306 = vadd.f32 %v255, %v304
        %s307 = sld [smem:[#allocation3 + $0x9]]
        %v308 = vstv %s307
        %v309 = vmul.f32 %v308, %v293
        %v310 = vmul.f32 %v308, %v294
        %v311 = vadd.f32 %v260, %v309
        %v312 = vadd.f32 %v261, %v310
        %s313 = sld [smem:[#allocation3 + $0xd]]
        %v314 = vstv %s313
        %v315 = vmul.f32 %v314, %v293
        %v316 = vmul.f32 %v314, %v294
        %v317 = vadd.f32 %v266, %v315
        %v318 = vadd.f32 %v267, %v316
        %s319 = sld [smem:[#allocation3 + $0x11]]
        %v320 = vstv %s319
        %v321 = vmul.f32 %v320, %v293
        %v322 = vmul.f32 %v320, %v294
        %v323 = vadd.f32 %v272, %v321
        %v324 = vadd.f32 %v273, %v322
        %s325 = sld [smem:[#allocation3 + $0x15]]
        %v326 = vstv %s325
        %v327 = vmul.f32 %v326, %v293
        %v328 = vmul.f32 %v326, %v294
        %v329 = vadd.f32 %v278, %v327
        %v330 = vadd.f32 %v279, %v328
        %s331 = sld [smem:[#allocation3 + $0x19]]
        %v332 = vstv %s331
        %v333 = vmul.f32 %v332, %v293
        %v334 = vmul.f32 %v332, %v294
        %v335 = vadd.f32 %v284, %v333
        %v336 = vadd.f32 %v285, %v334
        %s337 = sld [smem:[#allocation3 + $0x1d]]
        %v338 = vstv %s337
        %v339 = vmul.f32 %v338, %v293
        %v340 = vmul.f32 %v338, %v294
        %v341 = vadd.f32 %v290, %v339
        %v342 = vadd.f32 %v291, %v340
        %s343 = scalar_lea.vmem %s220, 48
        %v344 = vld [vmem:[%s343] sm:$0xff]
        %v345 = vld [vmem:[%s343 + $0x8] sm:$0xff]
        %s346 = sld [smem:[#allocation3 + $0x2]]
        %v347 = vstv %s346
        %v348 = vmul.f32 %v347, %v344
        %v349 = vmul.f32 %v347, %v345
        %v350 = vadd.f32 %v299, %v348
        %v351 = vadd.f32 %v300, %v349
        %s352 = sld [smem:[#allocation3 + $0x6]]
        %v353 = vstv %s352
        %v354 = vmul.f32 %v353, %v344
        %v355 = vmul.f32 %v353, %v345
        %v356 = vadd.f32 %v305, %v354
        %v357 = vadd.f32 %v306, %v355
        %s358 = sld [smem:[#allocation3 + $0xa]]
        %v359 = vstv %s358
        %v360 = vmul.f32 %v359, %v344
        %v361 = vmul.f32 %v359, %v345
        %v362 = vadd.f32 %v311, %v360
        %v363 = vadd.f32 %v312, %v361
        %s364 = sld [smem:[#allocation3 + $0xe]]
        %v365 = vstv %s364
        %v366 = vmul.f32 %v365, %v344
        %v367 = vmul.f32 %v365, %v345
        %v368 = vadd.f32 %v317, %v366
        %v369 = vadd.f32 %v318, %v367
        %s370 = sld [smem:[#allocation3 + $0x12]]
        %v371 = vstv %s370
        %v372 = vmul.f32 %v371, %v344
        %v373 = vmul.f32 %v371, %v345
        %v374 = vadd.f32 %v323, %v372
        %v375 = vadd.f32 %v324, %v373
        %s376 = sld [smem:[#allocation3 + $0x16]]
        %v377 = vstv %s376
        %v378 = vmul.f32 %v377, %v344
        %v379 = vmul.f32 %v377, %v345
        %v380 = vadd.f32 %v329, %v378
        %v381 = vadd.f32 %v330, %v379
        %s382 = sld [smem:[#allocation3 + $0x1a]]
        %v383 = vstv %s382
        %v384 = vmul.f32 %v383, %v344
        %v385 = vmul.f32 %v383, %v345
        %v386 = vadd.f32 %v335, %v384
        %v387 = vadd.f32 %v336, %v385
        %s388 = sld [smem:[#allocation3 + $0x1e]]
        %v389 = vstv %s388
        %v390 = vmul.f32 %v389, %v344
        %v391 = vmul.f32 %v389, %v345
        %v392 = vadd.f32 %v341, %v390
        %v393 = vadd.f32 %v342, %v391
        %s394 = scalar_lea.vmem %s220, 72
        %v395 = vld [vmem:[%s394] sm:$0xff]
        %v396 = vld [vmem:[%s394 + $0x8] sm:$0xff]
        %s397 = sld [smem:[#allocation3 + $0x3]]
        %v398 = vstv %s397
        %v399 = vmul.f32 %v398, %v395
        %v400 = vmul.f32 %v398, %v396
        %v401 = vadd.f32 %v350, %v399
        %v402 = vadd.f32 %v351, %v400
        %s403 = sld [smem:[#allocation3 + $0x7]]
        %v404 = vstv %s403
        %v405 = vmul.f32 %v404, %v395
        %v406 = vmul.f32 %v404, %v396
        %v407 = vadd.f32 %v356, %v405
        %v408 = vadd.f32 %v357, %v406
        %s409 = sld [smem:[#allocation3 + $0xb]]
        %v410 = vstv %s409
        %v411 = vmul.f32 %v410, %v395
        %v412 = vmul.f32 %v410, %v396
        %v413 = vadd.f32 %v362, %v411
        %v414 = vadd.f32 %v363, %v412
        %s415 = sld [smem:[#allocation3 + $0xf]]
        %v416 = vstv %s415
        %v417 = vmul.f32 %v416, %v395
        %v418 = vmul.f32 %v416, %v396
        %v419 = vadd.f32 %v368, %v417
        %v420 = vadd.f32 %v369, %v418
        %s421 = sld [smem:[#allocation3 + $0x13]]
        %v422 = vstv %s421
        %v423 = vmul.f32 %v422, %v395
        %v424 = vmul.f32 %v422, %v396
        %v425 = vadd.f32 %v374, %v423
        %v426 = vadd.f32 %v375, %v424
        %s427 = sld [smem:[#allocation3 + $0x17]]
        %v428 = vstv %s427
        %v429 = vmul.f32 %v428, %v395
        %v430 = vmul.f32 %v428, %v396
        %v431 = vadd.f32 %v380, %v429
        %v432 = vadd.f32 %v381, %v430
        %s433 = sld [smem:[#allocation3 + $0x1b]]
        %v434 = vstv %s433
        %v435 = vmul.f32 %v434, %v395
        %v436 = vmul.f32 %v434, %v396
        %v437 = vadd.f32 %v386, %v435
        %v438 = vadd.f32 %v387, %v436
        %s439 = sld [smem:[#allocation3 + $0x1f]]
        %v440 = vstv %s439
        %v441 = vmul.f32 %v440, %v395
        %v442 = vmul.f32 %v440, %v396
        %v443 = vadd.f32 %v392, %v441
        %v444 = vadd.f32 %v393, %v442
        %s445 = sld [smem:[#allocation2]]
        %vm446 = vcmp.ge.f32.partialorder %v401, 0.0
        %vm447 = vcmp.ge.f32.partialorder %v402, 0.0
        %v448 = vstv %s445
        %v449 = vmul.f32 %v448, %v401
        %v450 = vmul.f32 %v448, %v402
        %v451 = vsel %vm446, %v401, %v449
        %v452 = vsel %vm447, %v402, %v450
        %vm453 = vcmask 130048
        %454 = vst.msk [vmem:[%s225] sm:$0xff] %vm453, %v451
        %455 = vst.msk [vmem:[%s225 + $0x8] sm:$0xff] %vm453, %v452
        %s456 = sld [smem:[#allocation2]]
        %vm457 = vcmp.ge.f32.partialorder %v407, 0.0
        %vm458 = vcmp.ge.f32.partialorder %v408, 0.0
        %v459 = vstv %s456
        %v460 = vmul.f32 %v459, %v407
        %v461 = vmul.f32 %v459, %v408
        %v462 = vsel %vm457, %v407, %v460
        %v463 = vsel %vm458, %v408, %v461
        %s464 = scalar_lea.vmem %s225, 16
        %465 = vst.msk [vmem:[%s464] sm:$0xff] %vm453, %v462
        %466 = vst.msk [vmem:[%s464 + $0x8] sm:$0xff] %vm453, %v463
        %s467 = sld [smem:[#allocation2]]
        %vm468 = vcmp.ge.f32.partialorder %v413, 0.0
        %vm469 = vcmp.ge.f32.partialorder %v414, 0.0
        %v470 = vstv %s467
        %v471 = vmul.f32 %v470, %v413
        %v472 = vmul.f32 %v470, %v414
        %v473 = vsel %vm468, %v413, %v471
        %v474 = vsel %vm469, %v414, %v472
        %s475 = scalar_lea.vmem %s225, 32
        %476 = vst.msk [vmem:[%s475] sm:$0xff] %vm453, %v473
        %477 = vst.msk [vmem:[%s475 + $0x8] sm:$0xff] %vm453, %v474
        %s478 = sld [smem:[#allocation2]]
        %vm479 = vcmp.ge.f32.partialorder %v419, 0.0
        %vm480 = vcmp.ge.f32.partialorder %v420, 0.0
        %v481 = vstv %s478
        %v482 = vmul.f32 %v481, %v419
        %v483 = vmul.f32 %v481, %v420
        %v484 = vsel %vm479, %v419, %v482
        %v485 = vsel %vm480, %v420, %v483
        %s486 = scalar_lea.vmem %s225, 48
        %487 = vst.msk [vmem:[%s486] sm:$0xff] %vm453, %v484
        %488 = vst.msk [vmem:[%s486 + $0x8] sm:$0xff] %vm453, %v485
        %s489 = sld [smem:[#allocation2]]
        %vm490 = vcmp.ge.f32.partialorder %v425, 0.0
        %vm491 = vcmp.ge.f32.partialorder %v426, 0.0
        %v492 = vstv %s489
        %v493 = vmul.f32 %v492, %v425
        %v494 = vmul.f32 %v492, %v426
        %v495 = vsel %vm490, %v425, %v493
        %v496 = vsel %vm491, %v426, %v494
        %s497 = scalar_lea.vmem %s225, 64
        %498 = vst.msk [vmem:[%s497] sm:$0xff] %vm453, %v495
        %499 = vst.msk [vmem:[%s497 + $0x8] sm:$0xff] %vm453, %v496
        %s500 = sld [smem:[#allocation2]]
        %vm501 = vcmp.ge.f32.partialorder %v431, 0.0
        %vm502 = vcmp.ge.f32.partialorder %v432, 0.0
        %v503 = vstv %s500
        %v504 = vmul.f32 %v503, %v431
        %v505 = vmul.f32 %v503, %v432
        %v506 = vsel %vm501, %v431, %v504
        %v507 = vsel %vm502, %v432, %v505
        %s508 = scalar_lea.vmem %s225, 80
        %509 = vst.msk [vmem:[%s508] sm:$0xff] %vm453, %v506
        %510 = vst.msk [vmem:[%s508 + $0x8] sm:$0xff] %vm453, %v507
        %s511 = sld [smem:[#allocation2]]
        %vm512 = vcmp.ge.f32.partialorder %v437, 0.0
        %vm513 = vcmp.ge.f32.partialorder %v438, 0.0
        %v514 = vstv %s511
        %v515 = vmul.f32 %v514, %v437
        %v516 = vmul.f32 %v514, %v438
        %v517 = vsel %vm512, %v437, %v515
        %v518 = vsel %vm513, %v438, %v516
        %s519 = scalar_lea.vmem %s225, 96
        %520 = vst.msk [vmem:[%s519] sm:$0xff] %vm453, %v517
        %521 = vst.msk [vmem:[%s519 + $0x8] sm:$0xff] %vm453, %v518
        %s522 = sld [smem:[#allocation2]]
        %vm523 = vcmp.ge.f32.partialorder %v443, 0.0
        %vm524 = vcmp.ge.f32.partialorder %v444, 0.0
        %v525 = vstv %s522
        %v526 = vmul.f32 %v525, %v443
        %v527 = vmul.f32 %v525, %v444
        %v528 = vsel %vm523, %v443, %v526
        %v529 = vsel %vm524, %v444, %v527
        %s530 = scalar_lea.vmem %s225, 112
        %531 = vst.msk [vmem:[%s530] sm:$0xff] %vm453, %v528
        %532 = vst.msk [vmem:[%s530 + $0x8] sm:$0xff] %vm453, %v529
        %s533 = sld [smem:[#allocation5]]
        %v534 = vstv %s533
        %s535 = sld [smem:[#allocation5 + $0x1]]
        %v536 = vstv %s535
        %s537 = sld [smem:[#allocation5 + $0x2]]
        %v538 = vstv %s537
        %s539 = sld [smem:[#allocation5 + $0x3]]
        %v540 = vstv %s539
        %s541 = sld [smem:[#allocation5 + $0x4]]
        %v542 = vstv %s541
        %s543 = sld [smem:[#allocation5 + $0x5]]
        %v544 = vstv %s543
        %s545 = sld [smem:[#allocation5 + $0x6]]
        %v546 = vstv %s545
        %s547 = sld [smem:[#allocation5 + $0x7]]
        %v548 = vstv %s547
        %v549 = vld [vmem:[%s220] sm:$0xff]
        %v550 = vld [vmem:[%s220 + $0x8] sm:$0xff]
        %s551 = sld [smem:[#allocation3 + $0x80]]
        %v552 = vstv %s551
        %v553 = vmul.f32 %v552, %v549
        %v554 = vmul.f32 %v552, %v550
        %v555 = vadd.f32 %v534, %v553
        %v556 = vadd.f32 %v534, %v554
        %s557 = sld [smem:[#allocation3 + $0x84]]
        %v558 = vstv %s557
        %v559 = vmul.f32 %v558, %v549
        %v560 = vmul.f32 %v558, %v550
        %v561 = vadd.f32 %v536, %v559
        %v562 = vadd.f32 %v536, %v560
        %s563 = sld [smem:[#allocation3 + $0x88]]
        %v564 = vstv %s563
        %v565 = vmul.f32 %v564, %v549
        %v566 = vmul.f32 %v564, %v550
        %v567 = vadd.f32 %v538, %v565
        %v568 = vadd.f32 %v538, %v566
        %s569 = sld [smem:[#allocation3 + $0x8c]]
        %v570 = vstv %s569
        %v571 = vmul.f32 %v570, %v549
        %v572 = vmul.f32 %v570, %v550
        %v573 = vadd.f32 %v540, %v571
        %v574 = vadd.f32 %v540, %v572
        %s575 = sld [smem:[#allocation3 + $0x90]]
        %v576 = vstv %s575
        %v577 = vmul.f32 %v576, %v549
        %v578 = vmul.f32 %v576, %v550
        %v579 = vadd.f32 %v542, %v577
        %v580 = vadd.f32 %v542, %v578
        %s581 = sld [smem:[#allocation3 + $0x94]]
        %v582 = vstv %s581
        %v583 = vmul.f32 %v582, %v549
        %v584 = vmul.f32 %v582, %v550
        %v585 = vadd.f32 %v544, %v583
        %v586 = vadd.f32 %v544, %v584
        %s587 = sld [smem:[#allocation3 + $0x98]]
        %v588 = vstv %s587
        %v589 = vmul.f32 %v588, %v549
        %v590 = vmul.f32 %v588, %v550
        %v591 = vadd.f32 %v546, %v589
        %v592 = vadd.f32 %v546, %v590
        %s593 = sld [smem:[#allocation3 + $0x9c]]
        %v594 = vstv %s593
        %v595 = vmul.f32 %v594, %v549
        %v596 = vmul.f32 %v594, %v550
        %v597 = vadd.f32 %v548, %v595
        %v598 = vadd.f32 %v548, %v596
        %v599 = vld [vmem:[%s292] sm:$0xff]
        %v600 = vld [vmem:[%s292 + $0x8] sm:$0xff]
        %s601 = sld [smem:[#allocation3 + $0x81]]
        %v602 = vstv %s601
        %v603 = vmul.f32 %v602, %v599
        %v604 = vmul.f32 %v602, %v600
        %v605 = vadd.f32 %v555, %v603
        %v606 = vadd.f32 %v556, %v604
        %s607 = sld [smem:[#allocation3 + $0x85]]
        %v608 = vstv %s607
        %v609 = vmul.f32 %v608, %v599
        %v610 = vmul.f32 %v608, %v600
        %v611 = vadd.f32 %v561, %v609
        %v612 = vadd.f32 %v562, %v610
        %s613 = sld [smem:[#allocation3 + $0x89]]
        %v614 = vstv %s613
        %v615 = vmul.f32 %v614, %v599
        %v616 = vmul.f32 %v614, %v600
        %v617 = vadd.f32 %v567, %v615
        %v618 = vadd.f32 %v568, %v616
        %s619 = sld [smem:[#allocation3 + $0x8d]]
        %v620 = vstv %s619
        %v621 = vmul.f32 %v620, %v599
        %v622 = vmul.f32 %v620, %v600
        %v623 = vadd.f32 %v573, %v621
        %v624 = vadd.f32 %v574, %v622
        %s625 = sld [smem:[#allocation3 + $0x91]]
        %v626 = vstv %s625
        %v627 = vmul.f32 %v626, %v599
        %v628 = vmul.f32 %v626, %v600
        %v629 = vadd.f32 %v579, %v627
        %v630 = vadd.f32 %v580, %v628
        %s631 = sld [smem:[#allocation3 + $0x95]]
        %v632 = vstv %s631
        %v633 = vmul.f32 %v632, %v599
        %v634 = vmul.f32 %v632, %v600
        %v635 = vadd.f32 %v585, %v633
        %v636 = vadd.f32 %v586, %v634
        %s637 = sld [smem:[#allocation3 + $0x99]]
        %v638 = vstv %s637
        %v639 = vmul.f32 %v638, %v599
        %v640 = vmul.f32 %v638, %v600
        %v641 = vadd.f32 %v591, %v639
        %v642 = vadd.f32 %v592, %v640
        %s643 = sld [smem:[#allocation3 + $0x9d]]
        %v644 = vstv %s643
        %v645 = vmul.f32 %v644, %v599
        %v646 = vmul.f32 %v644, %v600
        %v647 = vadd.f32 %v597, %v645
        %v648 = vadd.f32 %v598, %v646
        %v649 = vld [vmem:[%s343] sm:$0xff]
        %v650 = vld [vmem:[%s343 + $0x8] sm:$0xff]
        %s651 = sld [smem:[#allocation3 + $0x82]]
        %v652 = vstv %s651
        %v653 = vmul.f32 %v652, %v649
        %v654 = vmul.f32 %v652, %v650
        %v655 = vadd.f32 %v605, %v653
        %v656 = vadd.f32 %v606, %v654
        %s657 = sld [smem:[#allocation3 + $0x86]]
        %v658 = vstv %s657
        %v659 = vmul.f32 %v658, %v649
        %v660 = vmul.f32 %v658, %v650
        %v661 = vadd.f32 %v611, %v659
        %v662 = vadd.f32 %v612, %v660
        %s663 = sld [smem:[#allocation3 + $0x8a]]
        %v664 = vstv %s663
        %v665 = vmul.f32 %v664, %v649
        %v666 = vmul.f32 %v664, %v650
        %v667 = vadd.f32 %v617, %v665
        %v668 = vadd.f32 %v618, %v666
        %s669 = sld [smem:[#allocation3 + $0x8e]]
        %v670 = vstv %s669
        %v671 = vmul.f32 %v670, %v649
        %v672 = vmul.f32 %v670, %v650
        %v673 = vadd.f32 %v623, %v671
        %v674 = vadd.f32 %v624, %v672
        %s675 = sld [smem:[#allocation3 + $0x92]]
        %v676 = vstv %s675
        %v677 = vmul.f32 %v676, %v649
        %v678 = vmul.f32 %v676, %v650
        %v679 = vadd.f32 %v629, %v677
        %v680 = vadd.f32 %v630, %v678
        %s681 = sld [smem:[#allocation3 + $0x96]]
        %v682 = vstv %s681
        %v683 = vmul.f32 %v682, %v649
        %v684 = vmul.f32 %v682, %v650
        %v685 = vadd.f32 %v635, %v683
        %v686 = vadd.f32 %v636, %v684
        %s687 = sld [smem:[#allocation3 + $0x9a]]
        %v688 = vstv %s687
        %v689 = vmul.f32 %v688, %v649
        %v690 = vmul.f32 %v688, %v650
        %v691 = vadd.f32 %v641, %v689
        %v692 = vadd.f32 %v642, %v690
        %s693 = sld [smem:[#allocation3 + $0x9e]]
        %v694 = vstv %s693
        %v695 = vmul.f32 %v694, %v649
        %v696 = vmul.f32 %v694, %v650
        %v697 = vadd.f32 %v647, %v695
        %v698 = vadd.f32 %v648, %v696
        %v699 = vld [vmem:[%s394] sm:$0xff]
        %v700 = vld [vmem:[%s394 + $0x8] sm:$0xff]
        %s701 = sld [smem:[#allocation3 + $0x83]]
        %v702 = vstv %s701
        %v703 = vmul.f32 %v702, %v699
        %v704 = vmul.f32 %v702, %v700
        %v705 = vadd.f32 %v655, %v703
        %v706 = vadd.f32 %v656, %v704
        %s707 = sld [smem:[#allocation3 + $0x87]]
        %v708 = vstv %s707
        %v709 = vmul.f32 %v708, %v699
        %v710 = vmul.f32 %v708, %v700
        %v711 = vadd.f32 %v661, %v709
        %v712 = vadd.f32 %v662, %v710
        %s713 = sld [smem:[#allocation3 + $0x8b]]
        %v714 = vstv %s713
        %v715 = vmul.f32 %v714, %v699
        %v716 = vmul.f32 %v714, %v700
        %v717 = vadd.f32 %v667, %v715
        %v718 = vadd.f32 %v668, %v716
        %s719 = sld [smem:[#allocation3 + $0x8f]]
        %v720 = vstv %s719
        %v721 = vmul.f32 %v720, %v699
        %v722 = vmul.f32 %v720, %v700
        %v723 = vadd.f32 %v673, %v721
        %v724 = vadd.f32 %v674, %v722
        %s725 = sld [smem:[#allocation3 + $0x93]]
        %v726 = vstv %s725
        %v727 = vmul.f32 %v726, %v699
        %v728 = vmul.f32 %v726, %v700
        %v729 = vadd.f32 %v679, %v727
        %v730 = vadd.f32 %v680, %v728
        %s731 = sld [smem:[#allocation3 + $0x97]]
        %v732 = vstv %s731
        %v733 = vmul.f32 %v732, %v699
        %v734 = vmul.f32 %v732, %v700
        %v735 = vadd.f32 %v685, %v733
        %v736 = vadd.f32 %v686, %v734
        %s737 = sld [smem:[#allocation3 + $0x9b]]
        %v738 = vstv %s737
        %v739 = vmul.f32 %v738, %v699
        %v740 = vmul.f32 %v738, %v700
        %v741 = vadd.f32 %v691, %v739
        %v742 = vadd.f32 %v692, %v740
        %s743 = sld [smem:[#allocation3 + $0x9f]]
        %v744 = vstv %s743
        %v745 = vmul.f32 %v744, %v699
        %v746 = vmul.f32 %v744, %v700
        %v747 = vadd.f32 %v697, %v745
        %v748 = vadd.f32 %v698, %v746
        %s749 = sld [smem:[#allocation3 + $0xa0]]
        %v750 = vstv %s749
        %v751 = vmul.f32 %v750, %v549
        %v752 = vmul.f32 %v750, %v550
        %755 = vrot.lane.b32.xlu0 %v751, 127
        %v756 = vpop.permute.xlu0 %755
        %757 = vrot.lane.b32.xlu0 %v752, 127
        %v758 = vpop.permute.xlu0 %757
        %v761 = vadd.f32 %v705, %v756
        %v762 = vadd.f32 %v706, %v758
        %s763 = sld [smem:[#allocation3 + $0xa4]]
        %v764 = vstv %s763
        %v765 = vmul.f32 %v764, %v549
        %v766 = vmul.f32 %v764, %v550
        %769 = vrot.lane.b32.xlu0 %v765, 127
        %v770 = vpop.permute.xlu0 %769
        %771 = vrot.lane.b32.xlu0 %v766, 127
        %v772 = vpop.permute.xlu0 %771
        %v775 = vadd.f32 %v711, %v770
        %v776 = vadd.f32 %v712, %v772
        %s777 = sld [smem:[#allocation3 + $0xa8]]
        %v778 = vstv %s777
        %v779 = vmul.f32 %v778, %v549
        %v780 = vmul.f32 %v778, %v550
        %783 = vrot.lane.b32.xlu0 %v779, 127
        %v784 = vpop.permute.xlu0 %783
        %785 = vrot.lane.b32.xlu0 %v780, 127
        %v786 = vpop.permute.xlu0 %785
        %v789 = vadd.f32 %v717, %v784
        %v790 = vadd.f32 %v718, %v786
        %s791 = sld [smem:[#allocation3 + $0xac]]
        %v792 = vstv %s791
        %v793 = vmul.f32 %v792, %v549
        %v794 = vmul.f32 %v792, %v550
        %797 = vrot.lane.b32.xlu0 %v793, 127
        %v798 = vpop.permute.xlu0 %797
        %799 = vrot.lane.b32.xlu0 %v794, 127
        %v800 = vpop.permute.xlu0 %799
        %v803 = vadd.f32 %v723, %v798
        %v804 = vadd.f32 %v724, %v800
        %s805 = sld [smem:[#allocation3 + $0xb0]]
        %v806 = vstv %s805
        %v807 = vmul.f32 %v806, %v549
        %v808 = vmul.f32 %v806, %v550
        %811 = vrot.lane.b32.xlu0 %v807, 127
        %v812 = vpop.permute.xlu0 %811
        %813 = vrot.lane.b32.xlu0 %v808, 127
        %v814 = vpop.permute.xlu0 %813
        %v817 = vadd.f32 %v729, %v812
        %v818 = vadd.f32 %v730, %v814
        %s819 = sld [smem:[#allocation3 + $0xb4]]
        %v820 = vstv %s819
        %v821 = vmul.f32 %v820, %v549
        %v822 = vmul.f32 %v820, %v550
        %825 = vrot.lane.b32.xlu0 %v821, 127
        %v826 = vpop.permute.xlu0 %825
        %827 = vrot.lane.b32.xlu0 %v822, 127
        %v828 = vpop.permute.xlu0 %827
        %v831 = vadd.f32 %v735, %v826
        %v832 = vadd.f32 %v736, %v828
        %s833 = sld [smem:[#allocation3 + $0xb8]]
        %v834 = vstv %s833
        %v835 = vmul.f32 %v834, %v549
        %v836 = vmul.f32 %v834, %v550
        %839 = vrot.lane.b32.xlu0 %v835, 127
        %v840 = vpop.permute.xlu0 %839
        %841 = vrot.lane.b32.xlu0 %v836, 127
        %v842 = vpop.permute.xlu0 %841
        %v845 = vadd.f32 %v741, %v840
        %v846 = vadd.f32 %v742, %v842
        %s847 = sld [smem:[#allocation3 + $0xbc]]
        %v848 = vstv %s847
        %v849 = vmul.f32 %v848, %v549
        %v850 = vmul.f32 %v848, %v550
        %853 = vrot.lane.b32.xlu0 %v849, 127
        %v854 = vpop.permute.xlu0 %853
        %855 = vrot.lane.b32.xlu0 %v850, 127
        %v856 = vpop.permute.xlu0 %855
        %v859 = vadd.f32 %v747, %v854
        %v860 = vadd.f32 %v748, %v856
        %s861 = sld [smem:[#allocation3 + $0xa1]]
        %v862 = vstv %s861
        %v863 = vmul.f32 %v862, %v599
        %v864 = vmul.f32 %v862, %v600
        %867 = vrot.lane.b32.xlu0 %v863, 127
        %v868 = vpop.permute.xlu0 %867
        %869 = vrot.lane.b32.xlu0 %v864, 127
        %v870 = vpop.permute.xlu0 %869
        %v873 = vadd.f32 %v761, %v868
        %v874 = vadd.f32 %v762, %v870
        %s875 = sld [smem:[#allocation3 + $0xa5]]
        %v876 = vstv %s875
        %v877 = vmul.f32 %v876, %v599
        %v878 = vmul.f32 %v876, %v600
        %881 = vrot.lane.b32.xlu0 %v877, 127
        %v882 = vpop.permute.xlu0 %881
        %883 = vrot.lane.b32.xlu0 %v878, 127
        %v884 = vpop.permute.xlu0 %883
        %v887 = vadd.f32 %v775, %v882
        %v888 = vadd.f32 %v776, %v884
        %s889 = sld [smem:[#allocation3 + $0xa9]]
        %v890 = vstv %s889
        %v891 = vmul.f32 %v890, %v599
        %v892 = vmul.f32 %v890, %v600
        %895 = vrot.lane.b32.xlu0 %v891, 127
        %v896 = vpop.permute.xlu0 %895
        %897 = vrot.lane.b32.xlu0 %v892, 127
        %v898 = vpop.permute.xlu0 %897
        %v901 = vadd.f32 %v789, %v896
        %v902 = vadd.f32 %v790, %v898
        %s903 = sld [smem:[#allocation3 + $0xad]]
        %v904 = vstv %s903
        %v905 = vmul.f32 %v904, %v599
        %v906 = vmul.f32 %v904, %v600
        %909 = vrot.lane.b32.xlu0 %v905, 127
        %v910 = vpop.permute.xlu0 %909
        %911 = vrot.lane.b32.xlu0 %v906, 127
        %v912 = vpop.permute.xlu0 %911
        %v915 = vadd.f32 %v803, %v910
        %v916 = vadd.f32 %v804, %v912
        %s917 = sld [smem:[#allocation3 + $0xb1]]
        %v918 = vstv %s917
        %v919 = vmul.f32 %v918, %v599
        %v920 = vmul.f32 %v918, %v600
        %923 = vrot.lane.b32.xlu0 %v919, 127
        %v924 = vpop.permute.xlu0 %923
        %925 = vrot.lane.b32.xlu0 %v920, 127
        %v926 = vpop.permute.xlu0 %925
        %v929 = vadd.f32 %v817, %v924
        %v930 = vadd.f32 %v818, %v926
        %s931 = sld [smem:[#allocation3 + $0xb5]]
        %v932 = vstv %s931
        %v933 = vmul.f32 %v932, %v599
        %v934 = vmul.f32 %v932, %v600
        %937 = vrot.lane.b32.xlu0 %v933, 127
        %v938 = vpop.permute.xlu0 %937
        %939 = vrot.lane.b32.xlu0 %v934, 127
        %v940 = vpop.permute.xlu0 %939
        %v943 = vadd.f32 %v831, %v938
        %v944 = vadd.f32 %v832, %v940
        %s945 = sld [smem:[#allocation3 + $0xb9]]
        %v946 = vstv %s945
        %v947 = vmul.f32 %v946, %v599
        %v948 = vmul.f32 %v946, %v600
        %951 = vrot.lane.b32.xlu0 %v947, 127
        %v952 = vpop.permute.xlu0 %951
        %953 = vrot.lane.b32.xlu0 %v948, 127
        %v954 = vpop.permute.xlu0 %953
        %v957 = vadd.f32 %v845, %v952
        %v958 = vadd.f32 %v846, %v954
        %s959 = sld [smem:[#allocation3 + $0xbd]]
        %v960 = vstv %s959
        %v961 = vmul.f32 %v960, %v599
        %v962 = vmul.f32 %v960, %v600
        %965 = vrot.lane.b32.xlu0 %v961, 127
        %v966 = vpop.permute.xlu0 %965
        %967 = vrot.lane.b32.xlu0 %v962, 127
        %v968 = vpop.permute.xlu0 %967
        %v971 = vadd.f32 %v859, %v966
        %v972 = vadd.f32 %v860, %v968
        %s973 = sld [smem:[#allocation3 + $0xa2]]
        %v974 = vstv %s973
        %v975 = vmul.f32 %v974, %v649
        %v976 = vmul.f32 %v974, %v650
        %979 = vrot.lane.b32.xlu0 %v975, 127
        %v980 = vpop.permute.xlu0 %979
        %981 = vrot.lane.b32.xlu0 %v976, 127
        %v982 = vpop.permute.xlu0 %981
        %v985 = vadd.f32 %v873, %v980
        %v986 = vadd.f32 %v874, %v982
        %s987 = sld [smem:[#allocation3 + $0xa6]]
        %v988 = vstv %s987
        %v989 = vmul.f32 %v988, %v649
        %v990 = vmul.f32 %v988, %v650
        %993 = vrot.lane.b32.xlu0 %v989, 127
        %v994 = vpop.permute.xlu0 %993
        %995 = vrot.lane.b32.xlu0 %v990, 127
        %v996 = vpop.permute.xlu0 %995
        %v999 = vadd.f32 %v887, %v994
        %v1000 = vadd.f32 %v888, %v996
        %s1001 = sld [smem:[#allocation3 + $0xaa]]
        %v1002 = vstv %s1001
        %v1003 = vmul.f32 %v1002, %v649
        %v1004 = vmul.f32 %v1002, %v650
        %1007 = vrot.lane.b32.xlu0 %v1003, 127
        %v1008 = vpop.permute.xlu0 %1007
        %1009 = vrot.lane.b32.xlu0 %v1004, 127
        %v1010 = vpop.permute.xlu0 %1009
        %v1013 = vadd.f32 %v901, %v1008
        %v1014 = vadd.f32 %v902, %v1010
        %s1015 = sld [smem:[#allocation3 + $0xae]]
        %v1016 = vstv %s1015
        %v1017 = vmul.f32 %v1016, %v649
        %v1018 = vmul.f32 %v1016, %v650
        %1021 = vrot.lane.b32.xlu0 %v1017, 127
        %v1022 = vpop.permute.xlu0 %1021
        %1023 = vrot.lane.b32.xlu0 %v1018, 127
        %v1024 = vpop.permute.xlu0 %1023
        %v1027 = vadd.f32 %v915, %v1022
        %v1028 = vadd.f32 %v916, %v1024
        %s1029 = sld [smem:[#allocation3 + $0xb2]]
        %v1030 = vstv %s1029
        %v1031 = vmul.f32 %v1030, %v649
        %v1032 = vmul.f32 %v1030, %v650
        %1035 = vrot.lane.b32.xlu0 %v1031, 127
        %v1036 = vpop.permute.xlu0 %1035
        %1037 = vrot.lane.b32.xlu0 %v1032, 127
        %v1038 = vpop.permute.xlu0 %1037
        %v1041 = vadd.f32 %v929, %v1036
        %v1042 = vadd.f32 %v930, %v1038
        %s1043 = sld [smem:[#allocation3 + $0xb6]]
        %v1044 = vstv %s1043
        %v1045 = vmul.f32 %v1044, %v649
        %v1046 = vmul.f32 %v1044, %v650
        %1049 = vrot.lane.b32.xlu0 %v1045, 127
        %v1050 = vpop.permute.xlu0 %1049
        %1051 = vrot.lane.b32.xlu0 %v1046, 127
        %v1052 = vpop.permute.xlu0 %1051
        %v1055 = vadd.f32 %v943, %v1050
        %v1056 = vadd.f32 %v944, %v1052
        %s1057 = sld [smem:[#allocation3 + $0xba]]
        %v1058 = vstv %s1057
        %v1059 = vmul.f32 %v1058, %v649
        %v1060 = vmul.f32 %v1058, %v650
        %1063 = vrot.lane.b32.xlu0 %v1059, 127
        %v1064 = vpop.permute.xlu0 %1063
        %1065 = vrot.lane.b32.xlu0 %v1060, 127
        %v1066 = vpop.permute.xlu0 %1065
        %v1069 = vadd.f32 %v957, %v1064
        %v1070 = vadd.f32 %v958, %v1066
        %s1071 = sld [smem:[#allocation3 + $0xbe]]
        %v1072 = vstv %s1071
        %v1073 = vmul.f32 %v1072, %v649
        %v1074 = vmul.f32 %v1072, %v650
        %1077 = vrot.lane.b32.xlu0 %v1073, 127
        %v1078 = vpop.permute.xlu0 %1077
        %1079 = vrot.lane.b32.xlu0 %v1074, 127
        %v1080 = vpop.permute.xlu0 %1079
        %v1083 = vadd.f32 %v971, %v1078
        %v1084 = vadd.f32 %v972, %v1080
        %s1085 = sld [smem:[#allocation3 + $0xa3]]
        %v1086 = vstv %s1085
        %v1087 = vmul.f32 %v1086, %v699
        %v1088 = vmul.f32 %v1086, %v700
        %1091 = vrot.lane.b32.xlu0 %v1087, 127
        %v1092 = vpop.permute.xlu0 %1091
        %1093 = vrot.lane.b32.xlu0 %v1088, 127
        %v1094 = vpop.permute.xlu0 %1093
        %v1097 = vadd.f32 %v985, %v1092
        %v1098 = vadd.f32 %v986, %v1094
        %s1099 = sld [smem:[#allocation3 + $0xa7]]
        %v1100 = vstv %s1099
        %v1101 = vmul.f32 %v1100, %v699
        %v1102 = vmul.f32 %v1100, %v700
        %1105 = vrot.lane.b32.xlu0 %v1101, 127
        %v1106 = vpop.permute.xlu0 %1105
        %1107 = vrot.lane.b32.xlu0 %v1102, 127
        %v1108 = vpop.permute.xlu0 %1107
        %v1111 = vadd.f32 %v999, %v1106
        %v1112 = vadd.f32 %v1000, %v1108
        %s1113 = sld [smem:[#allocation3 + $0xab]]
        %v1114 = vstv %s1113
        %v1115 = vmul.f32 %v1114, %v699
        %v1116 = vmul.f32 %v1114, %v700
        %1119 = vrot.lane.b32.xlu0 %v1115, 127
        %v1120 = vpop.permute.xlu0 %1119
        %1121 = vrot.lane.b32.xlu0 %v1116, 127
        %v1122 = vpop.permute.xlu0 %1121
        %v1125 = vadd.f32 %v1013, %v1120
        %v1126 = vadd.f32 %v1014, %v1122
        %s1127 = sld [smem:[#allocation3 + $0xaf]]
        %v1128 = vstv %s1127
        %v1129 = vmul.f32 %v1128, %v699
        %v1130 = vmul.f32 %v1128, %v700
        %1133 = vrot.lane.b32.xlu0 %v1129, 127
        %v1134 = vpop.permute.xlu0 %1133
        %1135 = vrot.lane.b32.xlu0 %v1130, 127
        %v1136 = vpop.permute.xlu0 %1135
        %v1139 = vadd.f32 %v1027, %v1134
        %v1140 = vadd.f32 %v1028, %v1136
        %s1141 = sld [smem:[#allocation3 + $0xb3]]
        %v1142 = vstv %s1141
        %v1143 = vmul.f32 %v1142, %v699
        %v1144 = vmul.f32 %v1142, %v700
        %1147 = vrot.lane.b32.xlu0 %v1143, 127
        %v1148 = vpop.permute.xlu0 %1147
        %1149 = vrot.lane.b32.xlu0 %v1144, 127
        %v1150 = vpop.permute.xlu0 %1149
        %v1153 = vadd.f32 %v1041, %v1148
        %v1154 = vadd.f32 %v1042, %v1150
        %s1155 = sld [smem:[#allocation3 + $0xb7]]
        %v1156 = vstv %s1155
        %v1157 = vmul.f32 %v1156, %v699
        %v1158 = vmul.f32 %v1156, %v700
        %1161 = vrot.lane.b32.xlu0 %v1157, 127
        %v1162 = vpop.permute.xlu0 %1161
        %1163 = vrot.lane.b32.xlu0 %v1158, 127
        %v1164 = vpop.permute.xlu0 %1163
        %v1167 = vadd.f32 %v1055, %v1162
        %v1168 = vadd.f32 %v1056, %v1164
        %s1169 = sld [smem:[#allocation3 + $0xbb]]
        %v1170 = vstv %s1169
        %v1171 = vmul.f32 %v1170, %v699
        %v1172 = vmul.f32 %v1170, %v700
        %1175 = vrot.lane.b32.xlu0 %v1171, 127
        %v1176 = vpop.permute.xlu0 %1175
        %1177 = vrot.lane.b32.xlu0 %v1172, 127
        %v1178 = vpop.permute.xlu0 %1177
        %v1181 = vadd.f32 %v1069, %v1176
        %v1182 = vadd.f32 %v1070, %v1178
        %s1183 = sld [smem:[#allocation3 + $0xbf]]
        %v1184 = vstv %s1183
        %v1185 = vmul.f32 %v1184, %v699
        %v1186 = vmul.f32 %v1184, %v700
        %1189 = vrot.lane.b32.xlu0 %v1185, 127
        %v1190 = vpop.permute.xlu0 %1189
        %1191 = vrot.lane.b32.xlu0 %v1186, 127
        %v1192 = vpop.permute.xlu0 %1191
        %v1195 = vadd.f32 %v1083, %v1190
        %v1196 = vadd.f32 %v1084, %v1192
        %s1197 = sld [smem:[#allocation2]]
        %vm1198 = vcmp.ge.f32.partialorder %v1097, 0.0
        %vm1199 = vcmp.ge.f32.partialorder %v1098, 0.0
        %v1200 = vstv %s1197
        %v1201 = vmul.f32 %v1200, %v1097
        %v1202 = vmul.f32 %v1200, %v1098
        %v1203 = vsel %vm1198, %v1097, %v1201
        %v1204 = vsel %vm1199, %v1098, %v1202
        %s1205 = scalar_lea.vmem %s225, 128
        %1206 = vst.msk [vmem:[%s1205] sm:$0xff] %vm453, %v1203
        %1207 = vst.msk [vmem:[%s1205 + $0x8] sm:$0xff] %vm453, %v1204
        %s1208 = sld [smem:[#allocation2]]
        %vm1209 = vcmp.ge.f32.partialorder %v1111, 0.0
        %vm1210 = vcmp.ge.f32.partialorder %v1112, 0.0
        %v1211 = vstv %s1208
        %v1212 = vmul.f32 %v1211, %v1111
        %v1213 = vmul.f32 %v1211, %v1112
        %v1214 = vsel %vm1209, %v1111, %v1212
        %v1215 = vsel %vm1210, %v1112, %v1213
        %s1216 = scalar_lea.vmem %s225, 144
        %1217 = vst.msk [vmem:[%s1216] sm:$0xff] %vm453, %v1214
        %1218 = vst.msk [vmem:[%s1216 + $0x8] sm:$0xff] %vm453, %v1215
        %s1219 = sld [smem:[#allocation2]]
        %vm1220 = vcmp.ge.f32.partialorder %v1125, 0.0
        %vm1221 = vcmp.ge.f32.partialorder %v1126, 0.0
        %v1222 = vstv %s1219
        %v1223 = vmul.f32 %v1222, %v1125
        %v1224 = vmul.f32 %v1222, %v1126
        %v1225 = vsel %vm1220, %v1125, %v1223
        %v1226 = vsel %vm1221, %v1126, %v1224
        %s1227 = scalar_lea.vmem %s225, 160
        %1228 = vst.msk [vmem:[%s1227] sm:$0xff] %vm453, %v1225
        %1229 = vst.msk [vmem:[%s1227 + $0x8] sm:$0xff] %vm453, %v1226
        %s1230 = sld [smem:[#allocation2]]
        %vm1231 = vcmp.ge.f32.partialorder %v1139, 0.0
        %vm1232 = vcmp.ge.f32.partialorder %v1140, 0.0
        %v1233 = vstv %s1230
        %v1234 = vmul.f32 %v1233, %v1139
        %v1235 = vmul.f32 %v1233, %v1140
        %v1236 = vsel %vm1231, %v1139, %v1234
        %v1237 = vsel %vm1232, %v1140, %v1235
        %s1238 = scalar_lea.vmem %s225, 176
        %1239 = vst.msk [vmem:[%s1238] sm:$0xff] %vm453, %v1236
        %1240 = vst.msk [vmem:[%s1238 + $0x8] sm:$0xff] %vm453, %v1237
        %s1241 = sld [smem:[#allocation2]]
        %vm1242 = vcmp.ge.f32.partialorder %v1153, 0.0
        %vm1243 = vcmp.ge.f32.partialorder %v1154, 0.0
        %v1244 = vstv %s1241
        %v1245 = vmul.f32 %v1244, %v1153
        %v1246 = vmul.f32 %v1244, %v1154
        %v1247 = vsel %vm1242, %v1153, %v1245
        %v1248 = vsel %vm1243, %v1154, %v1246
        %s1249 = scalar_lea.vmem %s225, 192
        %1250 = vst.msk [vmem:[%s1249] sm:$0xff] %vm453, %v1247
        %1251 = vst.msk [vmem:[%s1249 + $0x8] sm:$0xff] %vm453, %v1248
        %s1252 = sld [smem:[#allocation2]]
        %vm1253 = vcmp.ge.f32.partialorder %v1167, 0.0
        %vm1254 = vcmp.ge.f32.partialorder %v1168, 0.0
        %v1255 = vstv %s1252
        %v1256 = vmul.f32 %v1255, %v1167
        %v1257 = vmul.f32 %v1255, %v1168
        %v1258 = vsel %vm1253, %v1167, %v1256
        %v1259 = vsel %vm1254, %v1168, %v1257
        %s1260 = scalar_lea.vmem %s225, 208
        %1261 = vst.msk [vmem:[%s1260] sm:$0xff] %vm453, %v1258
        %1262 = vst.msk [vmem:[%s1260 + $0x8] sm:$0xff] %vm453, %v1259
        %s1263 = sld [smem:[#allocation2]]
        %vm1264 = vcmp.ge.f32.partialorder %v1181, 0.0
        %vm1265 = vcmp.ge.f32.partialorder %v1182, 0.0
        %v1266 = vstv %s1263
        %v1267 = vmul.f32 %v1266, %v1181
        %v1268 = vmul.f32 %v1266, %v1182
        %v1269 = vsel %vm1264, %v1181, %v1267
        %v1270 = vsel %vm1265, %v1182, %v1268
        %s1271 = scalar_lea.vmem %s225, 224
        %1272 = vst.msk [vmem:[%s1271] sm:$0xff] %vm453, %v1269
        %1273 = vst.msk [vmem:[%s1271 + $0x8] sm:$0xff] %vm453, %v1270
        %s1274 = sld [smem:[#allocation2]]
        %vm1275 = vcmp.ge.f32.partialorder %v1195, 0.0
        %vm1276 = vcmp.ge.f32.partialorder %v1196, 0.0
        %v1277 = vstv %s1274
        %v1278 = vmul.f32 %v1277, %v1195
        %v1279 = vmul.f32 %v1277, %v1196
        %v1280 = vsel %vm1275, %v1195, %v1278
        %v1281 = vsel %vm1276, %v1196, %v1279
        %s1282 = scalar_lea.vmem %s225, 240
        %1283 = vst.msk [vmem:[%s1282] sm:$0xff] %vm453, %v1280
        %1284 = vst.msk [vmem:[%s1282 + $0x8] sm:$0xff] %vm453, %v1281
        %s1285 = sld [smem:[#allocation5]]
        %v1286 = vstv %s1285
        %s1287 = sld [smem:[#allocation5 + $0x1]]
        %v1288 = vstv %s1287
        %s1289 = sld [smem:[#allocation5 + $0x2]]
        %v1290 = vstv %s1289
        %s1291 = sld [smem:[#allocation5 + $0x3]]
        %v1292 = vstv %s1291
        %s1293 = sld [smem:[#allocation5 + $0x4]]
        %v1294 = vstv %s1293
        %s1295 = sld [smem:[#allocation5 + $0x5]]
        %v1296 = vstv %s1295
        %s1297 = sld [smem:[#allocation5 + $0x6]]
        %v1298 = vstv %s1297
        %s1299 = sld [smem:[#allocation5 + $0x7]]
        %v1300 = vstv %s1299
        %v1301 = vld [vmem:[%s220] sm:$0xff]
        %v1302 = vld [vmem:[%s220 + $0x8] sm:$0xff]
        %s1303 = sld [smem:[#allocation3 + $0x100]]
        %v1304 = vstv %s1303
        %v1305 = vmul.f32 %v1304, %v1301
        %v1306 = vmul.f32 %v1304, %v1302
        %v1307 = vadd.f32 %v1286, %v1305
        %v1308 = vadd.f32 %v1286, %v1306
        %s1309 = sld [smem:[#allocation3 + $0x104]]
        %v1310 = vstv %s1309
        %v1311 = vmul.f32 %v1310, %v1301
        %v1312 = vmul.f32 %v1310, %v1302
        %v1313 = vadd.f32 %v1288, %v1311
        %v1314 = vadd.f32 %v1288, %v1312
        %s1315 = sld [smem:[#allocation3 + $0x108]]
        %v1316 = vstv %s1315
        %v1317 = vmul.f32 %v1316, %v1301
        %v1318 = vmul.f32 %v1316, %v1302
        %v1319 = vadd.f32 %v1290, %v1317
        %v1320 = vadd.f32 %v1290, %v1318
        %s1321 = sld [smem:[#allocation3 + $0x10c]]
        %v1322 = vstv %s1321
        %v1323 = vmul.f32 %v1322, %v1301
        %v1324 = vmul.f32 %v1322, %v1302
        %v1325 = vadd.f32 %v1292, %v1323
        %v1326 = vadd.f32 %v1292, %v1324
        %s1327 = sld [smem:[#allocation3 + $0x110]]
        %v1328 = vstv %s1327
        %v1329 = vmul.f32 %v1328, %v1301
        %v1330 = vmul.f32 %v1328, %v1302
        %v1331 = vadd.f32 %v1294, %v1329
        %v1332 = vadd.f32 %v1294, %v1330
        %s1333 = sld [smem:[#allocation3 + $0x114]]
        %v1334 = vstv %s1333
        %v1335 = vmul.f32 %v1334, %v1301
        %v1336 = vmul.f32 %v1334, %v1302
        %v1337 = vadd.f32 %v1296, %v1335
        %v1338 = vadd.f32 %v1296, %v1336
        %s1339 = sld [smem:[#allocation3 + $0x118]]
        %v1340 = vstv %s1339
        %v1341 = vmul.f32 %v1340, %v1301
        %v1342 = vmul.f32 %v1340, %v1302
        %v1343 = vadd.f32 %v1298, %v1341
        %v1344 = vadd.f32 %v1298, %v1342
        %s1345 = sld [smem:[#allocation3 + $0x11c]]
        %v1346 = vstv %s1345
        %v1347 = vmul.f32 %v1346, %v1301
        %v1348 = vmul.f32 %v1346, %v1302
        %v1349 = vadd.f32 %v1300, %v1347
        %v1350 = vadd.f32 %v1300, %v1348
        %v1351 = vld [vmem:[%s292] sm:$0xff]
        %v1352 = vld [vmem:[%s292 + $0x8] sm:$0xff]
        %s1353 = sld [smem:[#allocation3 + $0x101]]
        %v1354 = vstv %s1353
        %v1355 = vmul.f32 %v1354, %v1351
        %v1356 = vmul.f32 %v1354, %v1352
        %v1357 = vadd.f32 %v1307, %v1355
        %v1358 = vadd.f32 %v1308, %v1356
        %s1359 = sld [smem:[#allocation3 + $0x105]]
        %v1360 = vstv %s1359
        %v1361 = vmul.f32 %v1360, %v1351
        %v1362 = vmul.f32 %v1360, %v1352
        %v1363 = vadd.f32 %v1313, %v1361
        %v1364 = vadd.f32 %v1314, %v1362
        %s1365 = sld [smem:[#allocation3 + $0x109]]
        %v1366 = vstv %s1365
        %v1367 = vmul.f32 %v1366, %v1351
        %v1368 = vmul.f32 %v1366, %v1352
        %v1369 = vadd.f32 %v1319, %v1367
        %v1370 = vadd.f32 %v1320, %v1368
        %s1371 = sld [smem:[#allocation3 + $0x10d]]
        %v1372 = vstv %s1371
        %v1373 = vmul.f32 %v1372, %v1351
        %v1374 = vmul.f32 %v1372, %v1352
        %v1375 = vadd.f32 %v1325, %v1373
        %v1376 = vadd.f32 %v1326, %v1374
        %s1377 = sld [smem:[#allocation3 + $0x111]]
        %v1378 = vstv %s1377
        %v1379 = vmul.f32 %v1378, %v1351
        %v1380 = vmul.f32 %v1378, %v1352
        %v1381 = vadd.f32 %v1331, %v1379
        %v1382 = vadd.f32 %v1332, %v1380
        %s1383 = sld [smem:[#allocation3 + $0x115]]
        %v1384 = vstv %s1383
        %v1385 = vmul.f32 %v1384, %v1351
        %v1386 = vmul.f32 %v1384, %v1352
        %v1387 = vadd.f32 %v1337, %v1385
        %v1388 = vadd.f32 %v1338, %v1386
        %s1389 = sld [smem:[#allocation3 + $0x119]]
        %v1390 = vstv %s1389
        %v1391 = vmul.f32 %v1390, %v1351
        %v1392 = vmul.f32 %v1390, %v1352
        %v1393 = vadd.f32 %v1343, %v1391
        %v1394 = vadd.f32 %v1344, %v1392
        %s1395 = sld [smem:[#allocation3 + $0x11d]]
        %v1396 = vstv %s1395
        %v1397 = vmul.f32 %v1396, %v1351
        %v1398 = vmul.f32 %v1396, %v1352
        %v1399 = vadd.f32 %v1349, %v1397
        %v1400 = vadd.f32 %v1350, %v1398
        %v1401 = vld [vmem:[%s343] sm:$0xff]
        %v1402 = vld [vmem:[%s343 + $0x8] sm:$0xff]
        %s1403 = sld [smem:[#allocation3 + $0x102]]
        %v1404 = vstv %s1403
        %v1405 = vmul.f32 %v1404, %v1401
        %v1406 = vmul.f32 %v1404, %v1402
        %v1407 = vadd.f32 %v1357, %v1405
        %v1408 = vadd.f32 %v1358, %v1406
        %s1409 = sld [smem:[#allocation3 + $0x106]]
        %v1410 = vstv %s1409
        %v1411 = vmul.f32 %v1410, %v1401
        %v1412 = vmul.f32 %v1410, %v1402
        %v1413 = vadd.f32 %v1363, %v1411
        %v1414 = vadd.f32 %v1364, %v1412
        %s1415 = sld [smem:[#allocation3 + $0x10a]]
        %v1416 = vstv %s1415
        %v1417 = vmul.f32 %v1416, %v1401
        %v1418 = vmul.f32 %v1416, %v1402
        %v1419 = vadd.f32 %v1369, %v1417
        %v1420 = vadd.f32 %v1370, %v1418
        %s1421 = sld [smem:[#allocation3 + $0x10e]]
        %v1422 = vstv %s1421
        %v1423 = vmul.f32 %v1422, %v1401
        %v1424 = vmul.f32 %v1422, %v1402
        %v1425 = vadd.f32 %v1375, %v1423
        %v1426 = vadd.f32 %v1376, %v1424
        %s1427 = sld [smem:[#allocation3 + $0x112]]
        %v1428 = vstv %s1427
        %v1429 = vmul.f32 %v1428, %v1401
        %v1430 = vmul.f32 %v1428, %v1402
        %v1431 = vadd.f32 %v1381, %v1429
        %v1432 = vadd.f32 %v1382, %v1430
        %s1433 = sld [smem:[#allocation3 + $0x116]]
        %v1434 = vstv %s1433
        %v1435 = vmul.f32 %v1434, %v1401
        %v1436 = vmul.f32 %v1434, %v1402
        %v1437 = vadd.f32 %v1387, %v1435
        %v1438 = vadd.f32 %v1388, %v1436
        %s1439 = sld [smem:[#allocation3 + $0x11a]]
        %v1440 = vstv %s1439
        %v1441 = vmul.f32 %v1440, %v1401
        %v1442 = vmul.f32 %v1440, %v1402
        %v1443 = vadd.f32 %v1393, %v1441
        %v1444 = vadd.f32 %v1394, %v1442
        %s1445 = sld [smem:[#allocation3 + $0x11e]]
        %v1446 = vstv %s1445
        %v1447 = vmul.f32 %v1446, %v1401
        %v1448 = vmul.f32 %v1446, %v1402
        %v1449 = vadd.f32 %v1399, %v1447
        %v1450 = vadd.f32 %v1400, %v1448
        %v1451 = vld [vmem:[%s394] sm:$0xff]
        %v1452 = vld [vmem:[%s394 + $0x8] sm:$0xff]
        %s1453 = sld [smem:[#allocation3 + $0x103]]
        %v1454 = vstv %s1453
        %v1455 = vmul.f32 %v1454, %v1451
        %v1456 = vmul.f32 %v1454, %v1452
        %v1457 = vadd.f32 %v1407, %v1455
        %v1458 = vadd.f32 %v1408, %v1456
        %s1459 = sld [smem:[#allocation3 + $0x107]]
        %v1460 = vstv %s1459
        %v1461 = vmul.f32 %v1460, %v1451
        %v1462 = vmul.f32 %v1460, %v1452
        %v1463 = vadd.f32 %v1413, %v1461
        %v1464 = vadd.f32 %v1414, %v1462
        %s1465 = sld [smem:[#allocation3 + $0x10b]]
        %v1466 = vstv %s1465
        %v1467 = vmul.f32 %v1466, %v1451
        %v1468 = vmul.f32 %v1466, %v1452
        %v1469 = vadd.f32 %v1419, %v1467
        %v1470 = vadd.f32 %v1420, %v1468
        %s1471 = sld [smem:[#allocation3 + $0x10f]]
        %v1472 = vstv %s1471
        %v1473 = vmul.f32 %v1472, %v1451
        %v1474 = vmul.f32 %v1472, %v1452
        %v1475 = vadd.f32 %v1425, %v1473
        %v1476 = vadd.f32 %v1426, %v1474
        %s1477 = sld [smem:[#allocation3 + $0x113]]
        %v1478 = vstv %s1477
        %v1479 = vmul.f32 %v1478, %v1451
        %v1480 = vmul.f32 %v1478, %v1452
        %v1481 = vadd.f32 %v1431, %v1479
        %v1482 = vadd.f32 %v1432, %v1480
        %s1483 = sld [smem:[#allocation3 + $0x117]]
        %v1484 = vstv %s1483
        %v1485 = vmul.f32 %v1484, %v1451
        %v1486 = vmul.f32 %v1484, %v1452
        %v1487 = vadd.f32 %v1437, %v1485
        %v1488 = vadd.f32 %v1438, %v1486
        %s1489 = sld [smem:[#allocation3 + $0x11b]]
        %v1490 = vstv %s1489
        %v1491 = vmul.f32 %v1490, %v1451
        %v1492 = vmul.f32 %v1490, %v1452
        %v1493 = vadd.f32 %v1443, %v1491
        %v1494 = vadd.f32 %v1444, %v1492
        %s1495 = sld [smem:[#allocation3 + $0x11f]]
        %v1496 = vstv %s1495
        %v1497 = vmul.f32 %v1496, %v1451
        %v1498 = vmul.f32 %v1496, %v1452
        %v1499 = vadd.f32 %v1449, %v1497
        %v1500 = vadd.f32 %v1450, %v1498
        %v1501 = vld [vmem:[%s220 + $0x1] sm:$0xff]
        %v1502 = vld [vmem:[%s220 + $0x9] sm:$0xff]
        %s1503 = sld [smem:[#allocation3 + $0x140]]
        %v1504 = vstv %s1503
        %v1505 = vmul.f32 %v1504, %v1501
        %v1506 = vmul.f32 %v1504, %v1502
        %v1507 = vadd.f32 %v1457, %v1505
        %v1508 = vadd.f32 %v1458, %v1506
        %s1509 = sld [smem:[#allocation3 + $0x144]]
        %v1510 = vstv %s1509
        %v1511 = vmul.f32 %v1510, %v1501
        %v1512 = vmul.f32 %v1510, %v1502
        %v1513 = vadd.f32 %v1463, %v1511
        %v1514 = vadd.f32 %v1464, %v1512
        %s1515 = sld [smem:[#allocation3 + $0x148]]
        %v1516 = vstv %s1515
        %v1517 = vmul.f32 %v1516, %v1501
        %v1518 = vmul.f32 %v1516, %v1502
        %v1519 = vadd.f32 %v1469, %v1517
        %v1520 = vadd.f32 %v1470, %v1518
        %s1521 = sld [smem:[#allocation3 + $0x14c]]
        %v1522 = vstv %s1521
        %v1523 = vmul.f32 %v1522, %v1501
        %v1524 = vmul.f32 %v1522, %v1502
        %v1525 = vadd.f32 %v1475, %v1523
        %v1526 = vadd.f32 %v1476, %v1524
        %s1527 = sld [smem:[#allocation3 + $0x150]]
        %v1528 = vstv %s1527
        %v1529 = vmul.f32 %v1528, %v1501
        %v1530 = vmul.f32 %v1528, %v1502
        %v1531 = vadd.f32 %v1481, %v1529
        %v1532 = vadd.f32 %v1482, %v1530
        %s1533 = sld [smem:[#allocation3 + $0x154]]
        %v1534 = vstv %s1533
        %v1535 = vmul.f32 %v1534, %v1501
        %v1536 = vmul.f32 %v1534, %v1502
        %v1537 = vadd.f32 %v1487, %v1535
        %v1538 = vadd.f32 %v1488, %v1536
        %s1539 = sld [smem:[#allocation3 + $0x158]]
        %v1540 = vstv %s1539
        %v1541 = vmul.f32 %v1540, %v1501
        %v1542 = vmul.f32 %v1540, %v1502
        %v1543 = vadd.f32 %v1493, %v1541
        %v1544 = vadd.f32 %v1494, %v1542
        %s1545 = sld [smem:[#allocation3 + $0x15c]]
        %v1546 = vstv %s1545
        %v1547 = vmul.f32 %v1546, %v1501
        %v1548 = vmul.f32 %v1546, %v1502
        %v1549 = vadd.f32 %v1499, %v1547
        %v1550 = vadd.f32 %v1500, %v1548
        %v1551 = vld [vmem:[%s292 + $0x1] sm:$0xff]
        %v1552 = vld [vmem:[%s292 + $0x9] sm:$0xff]
        %s1553 = sld [smem:[#allocation3 + $0x141]]
        %v1554 = vstv %s1553
        %v1555 = vmul.f32 %v1554, %v1551
        %v1556 = vmul.f32 %v1554, %v1552
        %v1557 = vadd.f32 %v1507, %v1555
        %v1558 = vadd.f32 %v1508, %v1556
        %s1559 = sld [smem:[#allocation3 + $0x145]]
        %v1560 = vstv %s1559
        %v1561 = vmul.f32 %v1560, %v1551
        %v1562 = vmul.f32 %v1560, %v1552
        %v1563 = vadd.f32 %v1513, %v1561
        %v1564 = vadd.f32 %v1514, %v1562
        %s1565 = sld [smem:[#allocation3 + $0x149]]
        %v1566 = vstv %s1565
        %v1567 = vmul.f32 %v1566, %v1551
        %v1568 = vmul.f32 %v1566, %v1552
        %v1569 = vadd.f32 %v1519, %v1567
        %v1570 = vadd.f32 %v1520, %v1568
        %s1571 = sld [smem:[#allocation3 + $0x14d]]
        %v1572 = vstv %s1571
        %v1573 = vmul.f32 %v1572, %v1551
        %v1574 = vmul.f32 %v1572, %v1552
        %v1575 = vadd.f32 %v1525, %v1573
        %v1576 = vadd.f32 %v1526, %v1574
        %s1577 = sld [smem:[#allocation3 + $0x151]]
        %v1578 = vstv %s1577
        %v1579 = vmul.f32 %v1578, %v1551
        %v1580 = vmul.f32 %v1578, %v1552
        %v1581 = vadd.f32 %v1531, %v1579
        %v1582 = vadd.f32 %v1532, %v1580
        %s1583 = sld [smem:[#allocation3 + $0x155]]
        %v1584 = vstv %s1583
        %v1585 = vmul.f32 %v1584, %v1551
        %v1586 = vmul.f32 %v1584, %v1552
        %v1587 = vadd.f32 %v1537, %v1585
        %v1588 = vadd.f32 %v1538, %v1586
        %s1589 = sld [smem:[#allocation3 + $0x159]]
        %v1590 = vstv %s1589
        %v1591 = vmul.f32 %v1590, %v1551
        %v1592 = vmul.f32 %v1590, %v1552
        %v1593 = vadd.f32 %v1543, %v1591
        %v1594 = vadd.f32 %v1544, %v1592
        %s1595 = sld [smem:[#allocation3 + $0x15d]]
        %v1596 = vstv %s1595
        %v1597 = vmul.f32 %v1596, %v1551
        %v1598 = vmul.f32 %v1596, %v1552
        %v1599 = vadd.f32 %v1549, %v1597
        %v1600 = vadd.f32 %v1550, %v1598
        %v1601 = vld [vmem:[%s343 + $0x1] sm:$0xff]
        %v1602 = vld [vmem:[%s343 + $0x9] sm:$0xff]
        %s1603 = sld [smem:[#allocation3 + $0x142]]
        %v1604 = vstv %s1603
        %v1605 = vmul.f32 %v1604, %v1601
        %v1606 = vmul.f32 %v1604, %v1602
        %v1607 = vadd.f32 %v1557, %v1605
        %v1608 = vadd.f32 %v1558, %v1606
        %s1609 = sld [smem:[#allocation3 + $0x146]]
        %v1610 = vstv %s1609
        %v1611 = vmul.f32 %v1610, %v1601
        %v1612 = vmul.f32 %v1610, %v1602
        %v1613 = vadd.f32 %v1563, %v1611
        %v1614 = vadd.f32 %v1564, %v1612
        %s1615 = sld [smem:[#allocation3 + $0x14a]]
        %v1616 = vstv %s1615
        %v1617 = vmul.f32 %v1616, %v1601
        %v1618 = vmul.f32 %v1616, %v1602
        %v1619 = vadd.f32 %v1569, %v1617
        %v1620 = vadd.f32 %v1570, %v1618
        %s1621 = sld [smem:[#allocation3 + $0x14e]]
        %v1622 = vstv %s1621
        %v1623 = vmul.f32 %v1622, %v1601
        %v1624 = vmul.f32 %v1622, %v1602
        %v1625 = vadd.f32 %v1575, %v1623
        %v1626 = vadd.f32 %v1576, %v1624
        %s1627 = sld [smem:[#allocation3 + $0x152]]
        %v1628 = vstv %s1627
        %v1629 = vmul.f32 %v1628, %v1601
        %v1630 = vmul.f32 %v1628, %v1602
        %v1631 = vadd.f32 %v1581, %v1629
        %v1632 = vadd.f32 %v1582, %v1630
        %s1633 = sld [smem:[#allocation3 + $0x156]]
        %v1634 = vstv %s1633
        %v1635 = vmul.f32 %v1634, %v1601
        %v1636 = vmul.f32 %v1634, %v1602
        %v1637 = vadd.f32 %v1587, %v1635
        %v1638 = vadd.f32 %v1588, %v1636
        %s1639 = sld [smem:[#allocation3 + $0x15a]]
        %v1640 = vstv %s1639
        %v1641 = vmul.f32 %v1640, %v1601
        %v1642 = vmul.f32 %v1640, %v1602
        %v1643 = vadd.f32 %v1593, %v1641
        %v1644 = vadd.f32 %v1594, %v1642
        %s1645 = sld [smem:[#allocation3 + $0x15e]]
        %v1646 = vstv %s1645
        %v1647 = vmul.f32 %v1646, %v1601
        %v1648 = vmul.f32 %v1646, %v1602
        %v1649 = vadd.f32 %v1599, %v1647
        %v1650 = vadd.f32 %v1600, %v1648
        %v1651 = vld [vmem:[%s394 + $0x1] sm:$0xff]
        %v1652 = vld [vmem:[%s394 + $0x9] sm:$0xff]
        %s1653 = sld [smem:[#allocation3 + $0x143]]
        %v1654 = vstv %s1653
        %v1655 = vmul.f32 %v1654, %v1651
        %v1656 = vmul.f32 %v1654, %v1652
        %v1657 = vadd.f32 %v1607, %v1655
        %v1658 = vadd.f32 %v1608, %v1656
        %s1659 = sld [smem:[#allocation3 + $0x147]]
        %v1660 = vstv %s1659
        %v1661 = vmul.f32 %v1660, %v1651
        %v1662 = vmul.f32 %v1660, %v1652
        %v1663 = vadd.f32 %v1613, %v1661
        %v1664 = vadd.f32 %v1614, %v1662
        %s1665 = sld [smem:[#allocation3 + $0x14b]]
        %v1666 = vstv %s1665
        %v1667 = vmul.f32 %v1666, %v1651
        %v1668 = vmul.f32 %v1666, %v1652
        %v1669 = vadd.f32 %v1619, %v1667
        %v1670 = vadd.f32 %v1620, %v1668
        %s1671 = sld [smem:[#allocation3 + $0x14f]]
        %v1672 = vstv %s1671
        %v1673 = vmul.f32 %v1672, %v1651
        %v1674 = vmul.f32 %v1672, %v1652
        %v1675 = vadd.f32 %v1625, %v1673
        %v1676 = vadd.f32 %v1626, %v1674
        %s1677 = sld [smem:[#allocation3 + $0x153]]
        %v1678 = vstv %s1677
        %v1679 = vmul.f32 %v1678, %v1651
        %v1680 = vmul.f32 %v1678, %v1652
        %v1681 = vadd.f32 %v1631, %v1679
        %v1682 = vadd.f32 %v1632, %v1680
        %s1683 = sld [smem:[#allocation3 + $0x157]]
        %v1684 = vstv %s1683
        %v1685 = vmul.f32 %v1684, %v1651
        %v1686 = vmul.f32 %v1684, %v1652
        %v1687 = vadd.f32 %v1637, %v1685
        %v1688 = vadd.f32 %v1638, %v1686
        %s1689 = sld [smem:[#allocation3 + $0x15b]]
        %v1690 = vstv %s1689
        %v1691 = vmul.f32 %v1690, %v1651
        %v1692 = vmul.f32 %v1690, %v1652
        %v1693 = vadd.f32 %v1643, %v1691
        %v1694 = vadd.f32 %v1644, %v1692
        %s1695 = sld [smem:[#allocation3 + $0x15f]]
        %v1696 = vstv %s1695
        %v1697 = vmul.f32 %v1696, %v1651
        %v1698 = vmul.f32 %v1696, %v1652
        %v1699 = vadd.f32 %v1649, %v1697
        %v1700 = vadd.f32 %v1650, %v1698
        %s1701 = sld [smem:[#allocation2]]
        %vm1702 = vcmp.ge.f32.partialorder %v1657, 0.0
        %vm1703 = vcmp.ge.f32.partialorder %v1658, 0.0
        %v1704 = vstv %s1701
        %v1705 = vmul.f32 %v1704, %v1657
        %v1706 = vmul.f32 %v1704, %v1658
        %v1707 = vsel %vm1702, %v1657, %v1705
        %v1708 = vsel %vm1703, %v1658, %v1706
        %s1709 = scalar_lea.vmem %s225, 256
        %1710 = vst.msk [vmem:[%s1709] sm:$0xff] %vm453, %v1707
        %1711 = vst.msk [vmem:[%s1709 + $0x8] sm:$0xff] %vm453, %v1708
        %s1712 = sld [smem:[#allocation2]]
        %vm1713 = vcmp.ge.f32.partialorder %v1663, 0.0
        %vm1714 = vcmp.ge.f32.partialorder %v1664, 0.0
        %v1715 = vstv %s1712
        %v1716 = vmul.f32 %v1715, %v1663
        %v1717 = vmul.f32 %v1715, %v1664
        %v1718 = vsel %vm1713, %v1663, %v1716
        %v1719 = vsel %vm1714, %v1664, %v1717
        %s1720 = scalar_lea.vmem %s225, 272
        %1721 = vst.msk [vmem:[%s1720] sm:$0xff] %vm453, %v1718
        %1722 = vst.msk [vmem:[%s1720 + $0x8] sm:$0xff] %vm453, %v1719
        %s1723 = sld [smem:[#allocation2]]
        %vm1724 = vcmp.ge.f32.partialorder %v1669, 0.0
        %vm1725 = vcmp.ge.f32.partialorder %v1670, 0.0
        %v1726 = vstv %s1723
        %v1727 = vmul.f32 %v1726, %v1669
        %v1728 = vmul.f32 %v1726, %v1670
        %v1729 = vsel %vm1724, %v1669, %v1727
        %v1730 = vsel %vm1725, %v1670, %v1728
        %s1731 = scalar_lea.vmem %s225, 288
        %1732 = vst.msk [vmem:[%s1731] sm:$0xff] %vm453, %v1729
        %1733 = vst.msk [vmem:[%s1731 + $0x8] sm:$0xff] %vm453, %v1730
        %s1734 = sld [smem:[#allocation2]]
        %vm1735 = vcmp.ge.f32.partialorder %v1675, 0.0
        %vm1736 = vcmp.ge.f32.partialorder %v1676, 0.0
        %v1737 = vstv %s1734
        %v1738 = vmul.f32 %v1737, %v1675
        %v1739 = vmul.f32 %v1737, %v1676
        %v1740 = vsel %vm1735, %v1675, %v1738
        %v1741 = vsel %vm1736, %v1676, %v1739
        %s1742 = scalar_lea.vmem %s225, 304
        %1743 = vst.msk [vmem:[%s1742] sm:$0xff] %vm453, %v1740
        %1744 = vst.msk [vmem:[%s1742 + $0x8] sm:$0xff] %vm453, %v1741
        %s1745 = sld [smem:[#allocation2]]
        %vm1746 = vcmp.ge.f32.partialorder %v1681, 0.0
        %vm1747 = vcmp.ge.f32.partialorder %v1682, 0.0
        %v1748 = vstv %s1745
        %v1749 = vmul.f32 %v1748, %v1681
        %v1750 = vmul.f32 %v1748, %v1682
        %v1751 = vsel %vm1746, %v1681, %v1749
        %v1752 = vsel %vm1747, %v1682, %v1750
        %s1753 = scalar_lea.vmem %s225, 320
        %1754 = vst.msk [vmem:[%s1753] sm:$0xff] %vm453, %v1751
        %1755 = vst.msk [vmem:[%s1753 + $0x8] sm:$0xff] %vm453, %v1752
        %s1756 = sld [smem:[#allocation2]]
        %vm1757 = vcmp.ge.f32.partialorder %v1687, 0.0
        %vm1758 = vcmp.ge.f32.partialorder %v1688, 0.0
        %v1759 = vstv %s1756
        %v1760 = vmul.f32 %v1759, %v1687
        %v1761 = vmul.f32 %v1759, %v1688
        %v1762 = vsel %vm1757, %v1687, %v1760
        %v1763 = vsel %vm1758, %v1688, %v1761
        %s1764 = scalar_lea.vmem %s225, 336
        %1765 = vst.msk [vmem:[%s1764] sm:$0xff] %vm453, %v1762
        %1766 = vst.msk [vmem:[%s1764 + $0x8] sm:$0xff] %vm453, %v1763
        %s1767 = sld [smem:[#allocation2]]
        %vm1768 = vcmp.ge.f32.partialorder %v1693, 0.0
        %vm1769 = vcmp.ge.f32.partialorder %v1694, 0.0
        %v1770 = vstv %s1767
        %v1771 = vmul.f32 %v1770, %v1693
        %v1772 = vmul.f32 %v1770, %v1694
        %v1773 = vsel %vm1768, %v1693, %v1771
        %v1774 = vsel %vm1769, %v1694, %v1772
        %s1775 = scalar_lea.vmem %s225, 352
        %1776 = vst.msk [vmem:[%s1775] sm:$0xff] %vm453, %v1773
        %1777 = vst.msk [vmem:[%s1775 + $0x8] sm:$0xff] %vm453, %v1774
        %s1778 = sld [smem:[#allocation2]]
        %vm1779 = vcmp.ge.f32.partialorder %v1699, 0.0
        %vm1780 = vcmp.ge.f32.partialorder %v1700, 0.0
        %v1781 = vstv %s1778
        %v1782 = vmul.f32 %v1781, %v1699
        %v1783 = vmul.f32 %v1781, %v1700
        %v1784 = vsel %vm1779, %v1699, %v1782
        %v1785 = vsel %vm1780, %v1700, %v1783
        %s1786 = scalar_lea.vmem %s225, 368
        %1787 = vst.msk [vmem:[%s1786] sm:$0xff] %vm453, %v1784
        %1788 = vst.msk [vmem:[%s1786 + $0x8] sm:$0xff] %vm453, %v1785
        %s1789 = sld [smem:[#allocation5]]
        %v1790 = vstv %s1789
        %s1791 = sld [smem:[#allocation5 + $0x1]]
        %v1792 = vstv %s1791
        %s1793 = sld [smem:[#allocation5 + $0x2]]
        %v1794 = vstv %s1793
        %s1795 = sld [smem:[#allocation5 + $0x3]]
        %v1796 = vstv %s1795
        %s1797 = sld [smem:[#allocation5 + $0x4]]
        %v1798 = vstv %s1797
        %s1799 = sld [smem:[#allocation5 + $0x5]]
        %v1800 = vstv %s1799
        %s1801 = sld [smem:[#allocation5 + $0x6]]
        %v1802 = vstv %s1801
        %s1803 = sld [smem:[#allocation5 + $0x7]]
        %v1804 = vstv %s1803
        %v1805 = vld [vmem:[%s220] sm:$0xff]
        %v1806 = vld [vmem:[%s220 + $0x8] sm:$0xff]
        %s1807 = sld [smem:[#allocation3 + $0x180]]
        %v1808 = vstv %s1807
        %v1809 = vmul.f32 %v1808, %v1805
        %v1810 = vmul.f32 %v1808, %v1806
        %v1811 = vadd.f32 %v1790, %v1809
        %v1812 = vadd.f32 %v1790, %v1810
        %s1813 = sld [smem:[#allocation3 + $0x184]]
        %v1814 = vstv %s1813
        %v1815 = vmul.f32 %v1814, %v1805
        %v1816 = vmul.f32 %v1814, %v1806
        %v1817 = vadd.f32 %v1792, %v1815
        %v1818 = vadd.f32 %v1792, %v1816
        %s1819 = sld [smem:[#allocation3 + $0x188]]
        %v1820 = vstv %s1819
        %v1821 = vmul.f32 %v1820, %v1805
        %v1822 = vmul.f32 %v1820, %v1806
        %v1823 = vadd.f32 %v1794, %v1821
        %v1824 = vadd.f32 %v1794, %v1822
        %s1825 = sld [smem:[#allocation3 + $0x18c]]
        %v1826 = vstv %s1825
        %v1827 = vmul.f32 %v1826, %v1805
        %v1828 = vmul.f32 %v1826, %v1806
        %v1829 = vadd.f32 %v1796, %v1827
        %v1830 = vadd.f32 %v1796, %v1828
        %s1831 = sld [smem:[#allocation3 + $0x190]]
        %v1832 = vstv %s1831
        %v1833 = vmul.f32 %v1832, %v1805
        %v1834 = vmul.f32 %v1832, %v1806
        %v1835 = vadd.f32 %v1798, %v1833
        %v1836 = vadd.f32 %v1798, %v1834
        %s1837 = sld [smem:[#allocation3 + $0x194]]
        %v1838 = vstv %s1837
        %v1839 = vmul.f32 %v1838, %v1805
        %v1840 = vmul.f32 %v1838, %v1806
        %v1841 = vadd.f32 %v1800, %v1839
        %v1842 = vadd.f32 %v1800, %v1840
        %s1843 = sld [smem:[#allocation3 + $0x198]]
        %v1844 = vstv %s1843
        %v1845 = vmul.f32 %v1844, %v1805
        %v1846 = vmul.f32 %v1844, %v1806
        %v1847 = vadd.f32 %v1802, %v1845
        %v1848 = vadd.f32 %v1802, %v1846
        %s1849 = sld [smem:[#allocation3 + $0x19c]]
        %v1850 = vstv %s1849
        %v1851 = vmul.f32 %v1850, %v1805
        %v1852 = vmul.f32 %v1850, %v1806
        %v1853 = vadd.f32 %v1804, %v1851
        %v1854 = vadd.f32 %v1804, %v1852
        %v1855 = vld [vmem:[%s292] sm:$0xff]
        %v1856 = vld [vmem:[%s292 + $0x8] sm:$0xff]
        %s1857 = sld [smem:[#allocation3 + $0x181]]
        %v1858 = vstv %s1857
        %v1859 = vmul.f32 %v1858, %v1855
        %v1860 = vmul.f32 %v1858, %v1856
        %v1861 = vadd.f32 %v1811, %v1859
        %v1862 = vadd.f32 %v1812, %v1860
        %s1863 = sld [smem:[#allocation3 + $0x185]]
        %v1864 = vstv %s1863
        %v1865 = vmul.f32 %v1864, %v1855
        %v1866 = vmul.f32 %v1864, %v1856
        %v1867 = vadd.f32 %v1817, %v1865
        %v1868 = vadd.f32 %v1818, %v1866
        %s1869 = sld [smem:[#allocation3 + $0x189]]
        %v1870 = vstv %s1869
        %v1871 = vmul.f32 %v1870, %v1855
        %v1872 = vmul.f32 %v1870, %v1856
        %v1873 = vadd.f32 %v1823, %v1871
        %v1874 = vadd.f32 %v1824, %v1872
        %s1875 = sld [smem:[#allocation3 + $0x18d]]
        %v1876 = vstv %s1875
        %v1877 = vmul.f32 %v1876, %v1855
        %v1878 = vmul.f32 %v1876, %v1856
        %v1879 = vadd.f32 %v1829, %v1877
        %v1880 = vadd.f32 %v1830, %v1878
        %s1881 = sld [smem:[#allocation3 + $0x191]]
        %v1882 = vstv %s1881
        %v1883 = vmul.f32 %v1882, %v1855
        %v1884 = vmul.f32 %v1882, %v1856
        %v1885 = vadd.f32 %v1835, %v1883
        %v1886 = vadd.f32 %v1836, %v1884
        %s1887 = sld [smem:[#allocation3 + $0x195]]
        %v1888 = vstv %s1887
        %v1889 = vmul.f32 %v1888, %v1855
        %v1890 = vmul.f32 %v1888, %v1856
        %v1891 = vadd.f32 %v1841, %v1889
        %v1892 = vadd.f32 %v1842, %v1890
        %s1893 = sld [smem:[#allocation3 + $0x199]]
        %v1894 = vstv %s1893
        %v1895 = vmul.f32 %v1894, %v1855
        %v1896 = vmul.f32 %v1894, %v1856
        %v1897 = vadd.f32 %v1847, %v1895
        %v1898 = vadd.f32 %v1848, %v1896
        %s1899 = sld [smem:[#allocation3 + $0x19d]]
        %v1900 = vstv %s1899
        %v1901 = vmul.f32 %v1900, %v1855
        %v1902 = vmul.f32 %v1900, %v1856
        %v1903 = vadd.f32 %v1853, %v1901
        %v1904 = vadd.f32 %v1854, %v1902
        %v1905 = vld [vmem:[%s343] sm:$0xff]
        %v1906 = vld [vmem:[%s343 + $0x8] sm:$0xff]
        %s1907 = sld [smem:[#allocation3 + $0x182]]
        %v1908 = vstv %s1907
        %v1909 = vmul.f32 %v1908, %v1905
        %v1910 = vmul.f32 %v1908, %v1906
        %v1911 = vadd.f32 %v1861, %v1909
        %v1912 = vadd.f32 %v1862, %v1910
        %s1913 = sld [smem:[#allocation3 + $0x186]]
        %v1914 = vstv %s1913
        %v1915 = vmul.f32 %v1914, %v1905
        %v1916 = vmul.f32 %v1914, %v1906
        %v1917 = vadd.f32 %v1867, %v1915
        %v1918 = vadd.f32 %v1868, %v1916
        %s1919 = sld [smem:[#allocation3 + $0x18a]]
        %v1920 = vstv %s1919
        %v1921 = vmul.f32 %v1920, %v1905
        %v1922 = vmul.f32 %v1920, %v1906
        %v1923 = vadd.f32 %v1873, %v1921
        %v1924 = vadd.f32 %v1874, %v1922
        %s1925 = sld [smem:[#allocation3 + $0x18e]]
        %v1926 = vstv %s1925
        %v1927 = vmul.f32 %v1926, %v1905
        %v1928 = vmul.f32 %v1926, %v1906
        %v1929 = vadd.f32 %v1879, %v1927
        %v1930 = vadd.f32 %v1880, %v1928
        %s1931 = sld [smem:[#allocation3 + $0x192]]
        %v1932 = vstv %s1931
        %v1933 = vmul.f32 %v1932, %v1905
        %v1934 = vmul.f32 %v1932, %v1906
        %v1935 = vadd.f32 %v1885, %v1933
        %v1936 = vadd.f32 %v1886, %v1934
        %s1937 = sld [smem:[#allocation3 + $0x196]]
        %v1938 = vstv %s1937
        %v1939 = vmul.f32 %v1938, %v1905
        %v1940 = vmul.f32 %v1938, %v1906
        %v1941 = vadd.f32 %v1891, %v1939
        %v1942 = vadd.f32 %v1892, %v1940
        %s1943 = sld [smem:[#allocation3 + $0x19a]]
        %v1944 = vstv %s1943
        %v1945 = vmul.f32 %v1944, %v1905
        %v1946 = vmul.f32 %v1944, %v1906
        %v1947 = vadd.f32 %v1897, %v1945
        %v1948 = vadd.f32 %v1898, %v1946
        %s1949 = sld [smem:[#allocation3 + $0x19e]]
        %v1950 = vstv %s1949
        %v1951 = vmul.f32 %v1950, %v1905
        %v1952 = vmul.f32 %v1950, %v1906
        %v1953 = vadd.f32 %v1903, %v1951
        %v1954 = vadd.f32 %v1904, %v1952
        %v1955 = vld [vmem:[%s394] sm:$0xff]
        %v1956 = vld [vmem:[%s394 + $0x8] sm:$0xff]
        %s1957 = sld [smem:[#allocation3 + $0x183]]
        %v1958 = vstv %s1957
        %v1959 = vmul.f32 %v1958, %v1955
        %v1960 = vmul.f32 %v1958, %v1956
        %v1961 = vadd.f32 %v1911, %v1959
        %v1962 = vadd.f32 %v1912, %v1960
        %s1963 = sld [smem:[#allocation3 + $0x187]]
        %v1964 = vstv %s1963
        %v1965 = vmul.f32 %v1964, %v1955
        %v1966 = vmul.f32 %v1964, %v1956
        %v1967 = vadd.f32 %v1917, %v1965
        %v1968 = vadd.f32 %v1918, %v1966
        %s1969 = sld [smem:[#allocation3 + $0x18b]]
        %v1970 = vstv %s1969
        %v1971 = vmul.f32 %v1970, %v1955
        %v1972 = vmul.f32 %v1970, %v1956
        %v1973 = vadd.f32 %v1923, %v1971
        %v1974 = vadd.f32 %v1924, %v1972
        %s1975 = sld [smem:[#allocation3 + $0x18f]]
        %v1976 = vstv %s1975
        %v1977 = vmul.f32 %v1976, %v1955
        %v1978 = vmul.f32 %v1976, %v1956
        %v1979 = vadd.f32 %v1929, %v1977
        %v1980 = vadd.f32 %v1930, %v1978
        %s1981 = sld [smem:[#allocation3 + $0x193]]
        %v1982 = vstv %s1981
        %v1983 = vmul.f32 %v1982, %v1955
        %v1984 = vmul.f32 %v1982, %v1956
        %v1985 = vadd.f32 %v1935, %v1983
        %v1986 = vadd.f32 %v1936, %v1984
        %s1987 = sld [smem:[#allocation3 + $0x197]]
        %v1988 = vstv %s1987
        %v1989 = vmul.f32 %v1988, %v1955
        %v1990 = vmul.f32 %v1988, %v1956
        %v1991 = vadd.f32 %v1941, %v1989
        %v1992 = vadd.f32 %v1942, %v1990
        %s1993 = sld [smem:[#allocation3 + $0x19b]]
        %v1994 = vstv %s1993
        %v1995 = vmul.f32 %v1994, %v1955
        %v1996 = vmul.f32 %v1994, %v1956
        %v1997 = vadd.f32 %v1947, %v1995
        %v1998 = vadd.f32 %v1948, %v1996
        %s1999 = sld [smem:[#allocation3 + $0x19f]]
        %v2000 = vstv %s1999
        %v2001 = vmul.f32 %v2000, %v1955
        %v2002 = vmul.f32 %v2000, %v1956
        %v2003 = vadd.f32 %v1953, %v2001
        %v2004 = vadd.f32 %v1954, %v2002
        %s2005 = sld [smem:[#allocation3 + $0x1a0]]
        %v2006 = vstv %s2005
        %v2007 = vmul.f32 %v2006, %v1805
        %v2008 = vmul.f32 %v2006, %v1806
        %2011 = vrot.lane.b32.xlu0 %v2007, 127
        %v2012 = vpop.permute.xlu0 %2011
        %2013 = vrot.lane.b32.xlu0 %v2008, 127
        %v2014 = vpop.permute.xlu0 %2013
        %v2017 = vadd.f32 %v1961, %v2012
        %v2018 = vadd.f32 %v1962, %v2014
        %s2019 = sld [smem:[#allocation3 + $0x1a4]]
        %v2020 = vstv %s2019
        %v2021 = vmul.f32 %v2020, %v1805
        %v2022 = vmul.f32 %v2020, %v1806
        %2025 = vrot.lane.b32.xlu0 %v2021, 127
        %v2026 = vpop.permute.xlu0 %2025
        %2027 = vrot.lane.b32.xlu0 %v2022, 127
        %v2028 = vpop.permute.xlu0 %2027
        %v2031 = vadd.f32 %v1967, %v2026
        %v2032 = vadd.f32 %v1968, %v2028
        %s2033 = sld [smem:[#allocation3 + $0x1a8]]
        %v2034 = vstv %s2033
        %v2035 = vmul.f32 %v2034, %v1805
        %v2036 = vmul.f32 %v2034, %v1806
        %2039 = vrot.lane.b32.xlu0 %v2035, 127
        %v2040 = vpop.permute.xlu0 %2039
        %2041 = vrot.lane.b32.xlu0 %v2036, 127
        %v2042 = vpop.permute.xlu0 %2041
        %v2045 = vadd.f32 %v1973, %v2040
        %v2046 = vadd.f32 %v1974, %v2042
        %s2047 = sld [smem:[#allocation3 + $0x1ac]]
        %v2048 = vstv %s2047
        %v2049 = vmul.f32 %v2048, %v1805
        %v2050 = vmul.f32 %v2048, %v1806
        %2053 = vrot.lane.b32.xlu0 %v2049, 127
        %v2054 = vpop.permute.xlu0 %2053
        %2055 = vrot.lane.b32.xlu0 %v2050, 127
        %v2056 = vpop.permute.xlu0 %2055
        %v2059 = vadd.f32 %v1979, %v2054
        %v2060 = vadd.f32 %v1980, %v2056
        %s2061 = sld [smem:[#allocation3 + $0x1b0]]
        %v2062 = vstv %s2061
        %v2063 = vmul.f32 %v2062, %v1805
        %v2064 = vmul.f32 %v2062, %v1806
        %2067 = vrot.lane.b32.xlu0 %v2063, 127
        %v2068 = vpop.permute.xlu0 %2067
        %2069 = vrot.lane.b32.xlu0 %v2064, 127
        %v2070 = vpop.permute.xlu0 %2069
        %v2073 = vadd.f32 %v1985, %v2068
        %v2074 = vadd.f32 %v1986, %v2070
        %s2075 = sld [smem:[#allocation3 + $0x1b4]]
        %v2076 = vstv %s2075
        %v2077 = vmul.f32 %v2076, %v1805
        %v2078 = vmul.f32 %v2076, %v1806
        %2081 = vrot.lane.b32.xlu0 %v2077, 127
        %v2082 = vpop.permute.xlu0 %2081
        %2083 = vrot.lane.b32.xlu0 %v2078, 127
        %v2084 = vpop.permute.xlu0 %2083
        %v2087 = vadd.f32 %v1991, %v2082
        %v2088 = vadd.f32 %v1992, %v2084
        %s2089 = sld [smem:[#allocation3 + $0x1b8]]
        %v2090 = vstv %s2089
        %v2091 = vmul.f32 %v2090, %v1805
        %v2092 = vmul.f32 %v2090, %v1806
        %2095 = vrot.lane.b32.xlu0 %v2091, 127
        %v2096 = vpop.permute.xlu0 %2095
        %2097 = vrot.lane.b32.xlu0 %v2092, 127
        %v2098 = vpop.permute.xlu0 %2097
        %v2101 = vadd.f32 %v1997, %v2096
        %v2102 = vadd.f32 %v1998, %v2098
        %s2103 = sld [smem:[#allocation3 + $0x1bc]]
        %v2104 = vstv %s2103
        %v2105 = vmul.f32 %v2104, %v1805
        %v2106 = vmul.f32 %v2104, %v1806
        %2109 = vrot.lane.b32.xlu0 %v2105, 127
        %v2110 = vpop.permute.xlu0 %2109
        %2111 = vrot.lane.b32.xlu0 %v2106, 127
        %v2112 = vpop.permute.xlu0 %2111
        %v2115 = vadd.f32 %v2003, %v2110
        %v2116 = vadd.f32 %v2004, %v2112
        %s2117 = sld [smem:[#allocation3 + $0x1a1]]
        %v2118 = vstv %s2117
        %v2119 = vmul.f32 %v2118, %v1855
        %v2120 = vmul.f32 %v2118, %v1856
        %2123 = vrot.lane.b32.xlu0 %v2119, 127
        %v2124 = vpop.permute.xlu0 %2123
        %2125 = vrot.lane.b32.xlu0 %v2120, 127
        %v2126 = vpop.permute.xlu0 %2125
        %v2129 = vadd.f32 %v2017, %v2124
        %v2130 = vadd.f32 %v2018, %v2126
        %s2131 = sld [smem:[#allocation3 + $0x1a5]]
        %v2132 = vstv %s2131
        %v2133 = vmul.f32 %v2132, %v1855
        %v2134 = vmul.f32 %v2132, %v1856
        %2137 = vrot.lane.b32.xlu0 %v2133, 127
        %v2138 = vpop.permute.xlu0 %2137
        %2139 = vrot.lane.b32.xlu0 %v2134, 127
        %v2140 = vpop.permute.xlu0 %2139
        %v2143 = vadd.f32 %v2031, %v2138
        %v2144 = vadd.f32 %v2032, %v2140
        %s2145 = sld [smem:[#allocation3 + $0x1a9]]
        %v2146 = vstv %s2145
        %v2147 = vmul.f32 %v2146, %v1855
        %v2148 = vmul.f32 %v2146, %v1856
        %2151 = vrot.lane.b32.xlu0 %v2147, 127
        %v2152 = vpop.permute.xlu0 %2151
        %2153 = vrot.lane.b32.xlu0 %v2148, 127
        %v2154 = vpop.permute.xlu0 %2153
        %v2157 = vadd.f32 %v2045, %v2152
        %v2158 = vadd.f32 %v2046, %v2154
        %s2159 = sld [smem:[#allocation3 + $0x1ad]]
        %v2160 = vstv %s2159
        %v2161 = vmul.f32 %v2160, %v1855
        %v2162 = vmul.f32 %v2160, %v1856
        %2165 = vrot.lane.b32.xlu0 %v2161, 127
        %v2166 = vpop.permute.xlu0 %2165
        %2167 = vrot.lane.b32.xlu0 %v2162, 127
        %v2168 = vpop.permute.xlu0 %2167
        %v2171 = vadd.f32 %v2059, %v2166
        %v2172 = vadd.f32 %v2060, %v2168
        %s2173 = sld [smem:[#allocation3 + $0x1b1]]
        %v2174 = vstv %s2173
        %v2175 = vmul.f32 %v2174, %v1855
        %v2176 = vmul.f32 %v2174, %v1856
        %2179 = vrot.lane.b32.xlu0 %v2175, 127
        %v2180 = vpop.permute.xlu0 %2179
        %2181 = vrot.lane.b32.xlu0 %v2176, 127
        %v2182 = vpop.permute.xlu0 %2181
        %v2185 = vadd.f32 %v2073, %v2180
        %v2186 = vadd.f32 %v2074, %v2182
        %s2187 = sld [smem:[#allocation3 + $0x1b5]]
        %v2188 = vstv %s2187
        %v2189 = vmul.f32 %v2188, %v1855
        %v2190 = vmul.f32 %v2188, %v1856
        %2193 = vrot.lane.b32.xlu0 %v2189, 127
        %v2194 = vpop.permute.xlu0 %2193
        %2195 = vrot.lane.b32.xlu0 %v2190, 127
        %v2196 = vpop.permute.xlu0 %2195
        %v2199 = vadd.f32 %v2087, %v2194
        %v2200 = vadd.f32 %v2088, %v2196
        %s2201 = sld [smem:[#allocation3 + $0x1b9]]
        %v2202 = vstv %s2201
        %v2203 = vmul.f32 %v2202, %v1855
        %v2204 = vmul.f32 %v2202, %v1856
        %2207 = vrot.lane.b32.xlu0 %v2203, 127
        %v2208 = vpop.permute.xlu0 %2207
        %2209 = vrot.lane.b32.xlu0 %v2204, 127
        %v2210 = vpop.permute.xlu0 %2209
        %v2213 = vadd.f32 %v2101, %v2208
        %v2214 = vadd.f32 %v2102, %v2210
        %s2215 = sld [smem:[#allocation3 + $0x1bd]]
        %v2216 = vstv %s2215
        %v2217 = vmul.f32 %v2216, %v1855
        %v2218 = vmul.f32 %v2216, %v1856
        %2221 = vrot.lane.b32.xlu0 %v2217, 127
        %v2222 = vpop.permute.xlu0 %2221
        %2223 = vrot.lane.b32.xlu0 %v2218, 127
        %v2224 = vpop.permute.xlu0 %2223
        %v2227 = vadd.f32 %v2115, %v2222
        %v2228 = vadd.f32 %v2116, %v2224
        %s2229 = sld [smem:[#allocation3 + $0x1a2]]
        %v2230 = vstv %s2229
        %v2231 = vmul.f32 %v2230, %v1905
        %v2232 = vmul.f32 %v2230, %v1906
        %2235 = vrot.lane.b32.xlu0 %v2231, 127
        %v2236 = vpop.permute.xlu0 %2235
        %2237 = vrot.lane.b32.xlu0 %v2232, 127
        %v2238 = vpop.permute.xlu0 %2237
        %v2241 = vadd.f32 %v2129, %v2236
        %v2242 = vadd.f32 %v2130, %v2238
        %s2243 = sld [smem:[#allocation3 + $0x1a6]]
        %v2244 = vstv %s2243
        %v2245 = vmul.f32 %v2244, %v1905
        %v2246 = vmul.f32 %v2244, %v1906
        %2249 = vrot.lane.b32.xlu0 %v2245, 127
        %v2250 = vpop.permute.xlu0 %2249
        %2251 = vrot.lane.b32.xlu0 %v2246, 127
        %v2252 = vpop.permute.xlu0 %2251
        %v2255 = vadd.f32 %v2143, %v2250
        %v2256 = vadd.f32 %v2144, %v2252
        %s2257 = sld [smem:[#allocation3 + $0x1aa]]
        %v2258 = vstv %s2257
        %v2259 = vmul.f32 %v2258, %v1905
        %v2260 = vmul.f32 %v2258, %v1906
        %2263 = vrot.lane.b32.xlu0 %v2259, 127
        %v2264 = vpop.permute.xlu0 %2263
        %2265 = vrot.lane.b32.xlu0 %v2260, 127
        %v2266 = vpop.permute.xlu0 %2265
        %v2269 = vadd.f32 %v2157, %v2264
        %v2270 = vadd.f32 %v2158, %v2266
        %s2271 = sld [smem:[#allocation3 + $0x1ae]]
        %v2272 = vstv %s2271
        %v2273 = vmul.f32 %v2272, %v1905
        %v2274 = vmul.f32 %v2272, %v1906
        %2277 = vrot.lane.b32.xlu0 %v2273, 127
        %v2278 = vpop.permute.xlu0 %2277
        %2279 = vrot.lane.b32.xlu0 %v2274, 127
        %v2280 = vpop.permute.xlu0 %2279
        %v2283 = vadd.f32 %v2171, %v2278
        %v2284 = vadd.f32 %v2172, %v2280
        %s2285 = sld [smem:[#allocation3 + $0x1b2]]
        %v2286 = vstv %s2285
        %v2287 = vmul.f32 %v2286, %v1905
        %v2288 = vmul.f32 %v2286, %v1906
        %2291 = vrot.lane.b32.xlu0 %v2287, 127
        %v2292 = vpop.permute.xlu0 %2291
        %2293 = vrot.lane.b32.xlu0 %v2288, 127
        %v2294 = vpop.permute.xlu0 %2293
        %v2297 = vadd.f32 %v2185, %v2292
        %v2298 = vadd.f32 %v2186, %v2294
        %s2299 = sld [smem:[#allocation3 + $0x1b6]]
        %v2300 = vstv %s2299
        %v2301 = vmul.f32 %v2300, %v1905
        %v2302 = vmul.f32 %v2300, %v1906
        %2305 = vrot.lane.b32.xlu0 %v2301, 127
        %v2306 = vpop.permute.xlu0 %2305
        %2307 = vrot.lane.b32.xlu0 %v2302, 127
        %v2308 = vpop.permute.xlu0 %2307
        %v2311 = vadd.f32 %v2199, %v2306
        %v2312 = vadd.f32 %v2200, %v2308
        %s2313 = sld [smem:[#allocation3 + $0x1ba]]
        %v2314 = vstv %s2313
        %v2315 = vmul.f32 %v2314, %v1905
        %v2316 = vmul.f32 %v2314, %v1906
        %2319 = vrot.lane.b32.xlu0 %v2315, 127
        %v2320 = vpop.permute.xlu0 %2319
        %2321 = vrot.lane.b32.xlu0 %v2316, 127
        %v2322 = vpop.permute.xlu0 %2321
        %v2325 = vadd.f32 %v2213, %v2320
        %v2326 = vadd.f32 %v2214, %v2322
        %s2327 = sld [smem:[#allocation3 + $0x1be]]
        %v2328 = vstv %s2327
        %v2329 = vmul.f32 %v2328, %v1905
        %v2330 = vmul.f32 %v2328, %v1906
        %2333 = vrot.lane.b32.xlu0 %v2329, 127
        %v2334 = vpop.permute.xlu0 %2333
        %2335 = vrot.lane.b32.xlu0 %v2330, 127
        %v2336 = vpop.permute.xlu0 %2335
        %v2339 = vadd.f32 %v2227, %v2334
        %v2340 = vadd.f32 %v2228, %v2336
        %s2341 = sld [smem:[#allocation3 + $0x1a3]]
        %v2342 = vstv %s2341
        %v2343 = vmul.f32 %v2342, %v1955
        %v2344 = vmul.f32 %v2342, %v1956
        %2347 = vrot.lane.b32.xlu0 %v2343, 127
        %v2348 = vpop.permute.xlu0 %2347
        %2349 = vrot.lane.b32.xlu0 %v2344, 127
        %v2350 = vpop.permute.xlu0 %2349
        %v2353 = vadd.f32 %v2241, %v2348
        %v2354 = vadd.f32 %v2242, %v2350
        %s2355 = sld [smem:[#allocation3 + $0x1a7]]
        %v2356 = vstv %s2355
        %v2357 = vmul.f32 %v2356, %v1955
        %v2358 = vmul.f32 %v2356, %v1956
        %2361 = vrot.lane.b32.xlu0 %v2357, 127
        %v2362 = vpop.permute.xlu0 %2361
        %2363 = vrot.lane.b32.xlu0 %v2358, 127
        %v2364 = vpop.permute.xlu0 %2363
        %v2367 = vadd.f32 %v2255, %v2362
        %v2368 = vadd.f32 %v2256, %v2364
        %s2369 = sld [smem:[#allocation3 + $0x1ab]]
        %v2370 = vstv %s2369
        %v2371 = vmul.f32 %v2370, %v1955
        %v2372 = vmul.f32 %v2370, %v1956
        %2375 = vrot.lane.b32.xlu0 %v2371, 127
        %v2376 = vpop.permute.xlu0 %2375
        %2377 = vrot.lane.b32.xlu0 %v2372, 127
        %v2378 = vpop.permute.xlu0 %2377
        %v2381 = vadd.f32 %v2269, %v2376
        %v2382 = vadd.f32 %v2270, %v2378
        %s2383 = sld [smem:[#allocation3 + $0x1af]]
        %v2384 = vstv %s2383
        %v2385 = vmul.f32 %v2384, %v1955
        %v2386 = vmul.f32 %v2384, %v1956
        %2389 = vrot.lane.b32.xlu0 %v2385, 127
        %v2390 = vpop.permute.xlu0 %2389
        %2391 = vrot.lane.b32.xlu0 %v2386, 127
        %v2392 = vpop.permute.xlu0 %2391
        %v2395 = vadd.f32 %v2283, %v2390
        %v2396 = vadd.f32 %v2284, %v2392
        %s2397 = sld [smem:[#allocation3 + $0x1b3]]
        %v2398 = vstv %s2397
        %v2399 = vmul.f32 %v2398, %v1955
        %v2400 = vmul.f32 %v2398, %v1956
        %2403 = vrot.lane.b32.xlu0 %v2399, 127
        %v2404 = vpop.permute.xlu0 %2403
        %2405 = vrot.lane.b32.xlu0 %v2400, 127
        %v2406 = vpop.permute.xlu0 %2405
        %v2409 = vadd.f32 %v2297, %v2404
        %v2410 = vadd.f32 %v2298, %v2406
        %s2411 = sld [smem:[#allocation3 + $0x1b7]]
        %v2412 = vstv %s2411
        %v2413 = vmul.f32 %v2412, %v1955
        %v2414 = vmul.f32 %v2412, %v1956
        %2417 = vrot.lane.b32.xlu0 %v2413, 127
        %v2418 = vpop.permute.xlu0 %2417
        %2419 = vrot.lane.b32.xlu0 %v2414, 127
        %v2420 = vpop.permute.xlu0 %2419
        %v2423 = vadd.f32 %v2311, %v2418
        %v2424 = vadd.f32 %v2312, %v2420
        %s2425 = sld [smem:[#allocation3 + $0x1bb]]
        %v2426 = vstv %s2425
        %v2427 = vmul.f32 %v2426, %v1955
        %v2428 = vmul.f32 %v2426, %v1956
        %2431 = vrot.lane.b32.xlu0 %v2427, 127
        %v2432 = vpop.permute.xlu0 %2431
        %2433 = vrot.lane.b32.xlu0 %v2428, 127
        %v2434 = vpop.permute.xlu0 %2433
        %v2437 = vadd.f32 %v2325, %v2432
        %v2438 = vadd.f32 %v2326, %v2434
        %s2439 = sld [smem:[#allocation3 + $0x1bf]]
        %v2440 = vstv %s2439
        %v2441 = vmul.f32 %v2440, %v1955
        %v2442 = vmul.f32 %v2440, %v1956
        %2445 = vrot.lane.b32.xlu0 %v2441, 127
        %v2446 = vpop.permute.xlu0 %2445
        %2447 = vrot.lane.b32.xlu0 %v2442, 127
        %v2448 = vpop.permute.xlu0 %2447
        %v2451 = vadd.f32 %v2339, %v2446
        %v2452 = vadd.f32 %v2340, %v2448
        %v2453 = vld [vmem:[%s220 + $0x1] sm:$0xff]
        %v2454 = vld [vmem:[%s220 + $0x9] sm:$0xff]
        %s2455 = sld [smem:[#allocation3 + $0x1c0]]
        %v2456 = vstv %s2455
        %v2457 = vmul.f32 %v2456, %v2453
        %v2458 = vmul.f32 %v2456, %v2454
        %v2459 = vadd.f32 %v2353, %v2457
        %v2460 = vadd.f32 %v2354, %v2458
        %s2461 = sld [smem:[#allocation3 + $0x1c4]]
        %v2462 = vstv %s2461
        %v2463 = vmul.f32 %v2462, %v2453
        %v2464 = vmul.f32 %v2462, %v2454
        %v2465 = vadd.f32 %v2367, %v2463
        %v2466 = vadd.f32 %v2368, %v2464
        %s2467 = sld [smem:[#allocation3 + $0x1c8]]
        %v2468 = vstv %s2467
        %v2469 = vmul.f32 %v2468, %v2453
        %v2470 = vmul.f32 %v2468, %v2454
        %v2471 = vadd.f32 %v2381, %v2469
        %v2472 = vadd.f32 %v2382, %v2470
        %s2473 = sld [smem:[#allocation3 + $0x1cc]]
        %v2474 = vstv %s2473
        %v2475 = vmul.f32 %v2474, %v2453
        %v2476 = vmul.f32 %v2474, %v2454
        %v2477 = vadd.f32 %v2395, %v2475
        %v2478 = vadd.f32 %v2396, %v2476
        %s2479 = sld [smem:[#allocation3 + $0x1d0]]
        %v2480 = vstv %s2479
        %v2481 = vmul.f32 %v2480, %v2453
        %v2482 = vmul.f32 %v2480, %v2454
        %v2483 = vadd.f32 %v2409, %v2481
        %v2484 = vadd.f32 %v2410, %v2482
        %s2485 = sld [smem:[#allocation3 + $0x1d4]]
        %v2486 = vstv %s2485
        %v2487 = vmul.f32 %v2486, %v2453
        %v2488 = vmul.f32 %v2486, %v2454
        %v2489 = vadd.f32 %v2423, %v2487
        %v2490 = vadd.f32 %v2424, %v2488
        %s2491 = sld [smem:[#allocation3 + $0x1d8]]
        %v2492 = vstv %s2491
        %v2493 = vmul.f32 %v2492, %v2453
        %v2494 = vmul.f32 %v2492, %v2454
        %v2495 = vadd.f32 %v2437, %v2493
        %v2496 = vadd.f32 %v2438, %v2494
        %s2497 = sld [smem:[#allocation3 + $0x1dc]]
        %v2498 = vstv %s2497
        %v2499 = vmul.f32 %v2498, %v2453
        %v2500 = vmul.f32 %v2498, %v2454
        %v2501 = vadd.f32 %v2451, %v2499
        %v2502 = vadd.f32 %v2452, %v2500
        %v2503 = vld [vmem:[%s292 + $0x1] sm:$0xff]
        %v2504 = vld [vmem:[%s292 + $0x9] sm:$0xff]
        %s2505 = sld [smem:[#allocation3 + $0x1c1]]
        %v2506 = vstv %s2505
        %v2507 = vmul.f32 %v2506, %v2503
        %v2508 = vmul.f32 %v2506, %v2504
        %v2509 = vadd.f32 %v2459, %v2507
        %v2510 = vadd.f32 %v2460, %v2508
        %s2511 = sld [smem:[#allocation3 + $0x1c5]]
        %v2512 = vstv %s2511
        %v2513 = vmul.f32 %v2512, %v2503
        %v2514 = vmul.f32 %v2512, %v2504
        %v2515 = vadd.f32 %v2465, %v2513
        %v2516 = vadd.f32 %v2466, %v2514
        %s2517 = sld [smem:[#allocation3 + $0x1c9]]
        %v2518 = vstv %s2517
        %v2519 = vmul.f32 %v2518, %v2503
        %v2520 = vmul.f32 %v2518, %v2504
        %v2521 = vadd.f32 %v2471, %v2519
        %v2522 = vadd.f32 %v2472, %v2520
        %s2523 = sld [smem:[#allocation3 + $0x1cd]]
        %v2524 = vstv %s2523
        %v2525 = vmul.f32 %v2524, %v2503
        %v2526 = vmul.f32 %v2524, %v2504
        %v2527 = vadd.f32 %v2477, %v2525
        %v2528 = vadd.f32 %v2478, %v2526
        %s2529 = sld [smem:[#allocation3 + $0x1d1]]
        %v2530 = vstv %s2529
        %v2531 = vmul.f32 %v2530, %v2503
        %v2532 = vmul.f32 %v2530, %v2504
        %v2533 = vadd.f32 %v2483, %v2531
        %v2534 = vadd.f32 %v2484, %v2532
        %s2535 = sld [smem:[#allocation3 + $0x1d5]]
        %v2536 = vstv %s2535
        %v2537 = vmul.f32 %v2536, %v2503
        %v2538 = vmul.f32 %v2536, %v2504
        %v2539 = vadd.f32 %v2489, %v2537
        %v2540 = vadd.f32 %v2490, %v2538
        %s2541 = sld [smem:[#allocation3 + $0x1d9]]
        %v2542 = vstv %s2541
        %v2543 = vmul.f32 %v2542, %v2503
        %v2544 = vmul.f32 %v2542, %v2504
        %v2545 = vadd.f32 %v2495, %v2543
        %v2546 = vadd.f32 %v2496, %v2544
        %s2547 = sld [smem:[#allocation3 + $0x1dd]]
        %v2548 = vstv %s2547
        %v2549 = vmul.f32 %v2548, %v2503
        %v2550 = vmul.f32 %v2548, %v2504
        %v2551 = vadd.f32 %v2501, %v2549
        %v2552 = vadd.f32 %v2502, %v2550
        %v2553 = vld [vmem:[%s343 + $0x1] sm:$0xff]
        %v2554 = vld [vmem:[%s343 + $0x9] sm:$0xff]
        %s2555 = sld [smem:[#allocation3 + $0x1c2]]
        %v2556 = vstv %s2555
        %v2557 = vmul.f32 %v2556, %v2553
        %v2558 = vmul.f32 %v2556, %v2554
        %v2559 = vadd.f32 %v2509, %v2557
        %v2560 = vadd.f32 %v2510, %v2558
        %s2561 = sld [smem:[#allocation3 + $0x1c6]]
        %v2562 = vstv %s2561
        %v2563 = vmul.f32 %v2562, %v2553
        %v2564 = vmul.f32 %v2562, %v2554
        %v2565 = vadd.f32 %v2515, %v2563
        %v2566 = vadd.f32 %v2516, %v2564
        %s2567 = sld [smem:[#allocation3 + $0x1ca]]
        %v2568 = vstv %s2567
        %v2569 = vmul.f32 %v2568, %v2553
        %v2570 = vmul.f32 %v2568, %v2554
        %v2571 = vadd.f32 %v2521, %v2569
        %v2572 = vadd.f32 %v2522, %v2570
        %s2573 = sld [smem:[#allocation3 + $0x1ce]]
        %v2574 = vstv %s2573
        %v2575 = vmul.f32 %v2574, %v2553
        %v2576 = vmul.f32 %v2574, %v2554
        %v2577 = vadd.f32 %v2527, %v2575
        %v2578 = vadd.f32 %v2528, %v2576
        %s2579 = sld [smem:[#allocation3 + $0x1d2]]
        %v2580 = vstv %s2579
        %v2581 = vmul.f32 %v2580, %v2553
        %v2582 = vmul.f32 %v2580, %v2554
        %v2583 = vadd.f32 %v2533, %v2581
        %v2584 = vadd.f32 %v2534, %v2582
        %s2585 = sld [smem:[#allocation3 + $0x1d6]]
        %v2586 = vstv %s2585
        %v2587 = vmul.f32 %v2586, %v2553
        %v2588 = vmul.f32 %v2586, %v2554
        %v2589 = vadd.f32 %v2539, %v2587
        %v2590 = vadd.f32 %v2540, %v2588
        %s2591 = sld [smem:[#allocation3 + $0x1da]]
        %v2592 = vstv %s2591
        %v2593 = vmul.f32 %v2592, %v2553
        %v2594 = vmul.f32 %v2592, %v2554
        %v2595 = vadd.f32 %v2545, %v2593
        %v2596 = vadd.f32 %v2546, %v2594
        %s2597 = sld [smem:[#allocation3 + $0x1de]]
        %v2598 = vstv %s2597
        %v2599 = vmul.f32 %v2598, %v2553
        %v2600 = vmul.f32 %v2598, %v2554
        %v2601 = vadd.f32 %v2551, %v2599
        %v2602 = vadd.f32 %v2552, %v2600
        %v2603 = vld [vmem:[%s394 + $0x1] sm:$0xff]
        %v2604 = vld [vmem:[%s394 + $0x9] sm:$0xff]
        %s2605 = sld [smem:[#allocation3 + $0x1c3]]
        %v2606 = vstv %s2605
        %v2607 = vmul.f32 %v2606, %v2603
        %v2608 = vmul.f32 %v2606, %v2604
        %v2609 = vadd.f32 %v2559, %v2607
        %v2610 = vadd.f32 %v2560, %v2608
        %s2611 = sld [smem:[#allocation3 + $0x1c7]]
        %v2612 = vstv %s2611
        %v2613 = vmul.f32 %v2612, %v2603
        %v2614 = vmul.f32 %v2612, %v2604
        %v2615 = vadd.f32 %v2565, %v2613
        %v2616 = vadd.f32 %v2566, %v2614
        %s2617 = sld [smem:[#allocation3 + $0x1cb]]
        %v2618 = vstv %s2617
        %v2619 = vmul.f32 %v2618, %v2603
        %v2620 = vmul.f32 %v2618, %v2604
        %v2621 = vadd.f32 %v2571, %v2619
        %v2622 = vadd.f32 %v2572, %v2620
        %s2623 = sld [smem:[#allocation3 + $0x1cf]]
        %v2624 = vstv %s2623
        %v2625 = vmul.f32 %v2624, %v2603
        %v2626 = vmul.f32 %v2624, %v2604
        %v2627 = vadd.f32 %v2577, %v2625
        %v2628 = vadd.f32 %v2578, %v2626
        %s2629 = sld [smem:[#allocation3 + $0x1d3]]
        %v2630 = vstv %s2629
        %v2631 = vmul.f32 %v2630, %v2603
        %v2632 = vmul.f32 %v2630, %v2604
        %v2633 = vadd.f32 %v2583, %v2631
        %v2634 = vadd.f32 %v2584, %v2632
        %s2635 = sld [smem:[#allocation3 + $0x1d7]]
        %v2636 = vstv %s2635
        %v2637 = vmul.f32 %v2636, %v2603
        %v2638 = vmul.f32 %v2636, %v2604
        %v2639 = vadd.f32 %v2589, %v2637
        %v2640 = vadd.f32 %v2590, %v2638
        %s2641 = sld [smem:[#allocation3 + $0x1db]]
        %v2642 = vstv %s2641
        %v2643 = vmul.f32 %v2642, %v2603
        %v2644 = vmul.f32 %v2642, %v2604
        %v2645 = vadd.f32 %v2595, %v2643
        %v2646 = vadd.f32 %v2596, %v2644
        %s2647 = sld [smem:[#allocation3 + $0x1df]]
        %v2648 = vstv %s2647
        %v2649 = vmul.f32 %v2648, %v2603
        %v2650 = vmul.f32 %v2648, %v2604
        %v2651 = vadd.f32 %v2601, %v2649
        %v2652 = vadd.f32 %v2602, %v2650
        %s2653 = sld [smem:[#allocation3 + $0x1e0]]
        %v2654 = vstv %s2653
        %v2655 = vmul.f32 %v2654, %v2453
        %v2656 = vmul.f32 %v2654, %v2454
        %2659 = vrot.lane.b32.xlu0 %v2655, 127
        %v2660 = vpop.permute.xlu0 %2659
        %2661 = vrot.lane.b32.xlu0 %v2656, 127
        %v2662 = vpop.permute.xlu0 %2661
        %v2665 = vadd.f32 %v2609, %v2660
        %v2666 = vadd.f32 %v2610, %v2662
        %s2667 = sld [smem:[#allocation3 + $0x1e4]]
        %v2668 = vstv %s2667
        %v2669 = vmul.f32 %v2668, %v2453
        %v2670 = vmul.f32 %v2668, %v2454
        %2673 = vrot.lane.b32.xlu0 %v2669, 127
        %v2674 = vpop.permute.xlu0 %2673
        %2675 = vrot.lane.b32.xlu0 %v2670, 127
        %v2676 = vpop.permute.xlu0 %2675
        %v2679 = vadd.f32 %v2615, %v2674
        %v2680 = vadd.f32 %v2616, %v2676
        %s2681 = sld [smem:[#allocation3 + $0x1e8]]
        %v2682 = vstv %s2681
        %v2683 = vmul.f32 %v2682, %v2453
        %v2684 = vmul.f32 %v2682, %v2454
        %2687 = vrot.lane.b32.xlu0 %v2683, 127
        %v2688 = vpop.permute.xlu0 %2687
        %2689 = vrot.lane.b32.xlu0 %v2684, 127
        %v2690 = vpop.permute.xlu0 %2689
        %v2693 = vadd.f32 %v2621, %v2688
        %v2694 = vadd.f32 %v2622, %v2690
        %s2695 = sld [smem:[#allocation3 + $0x1ec]]
        %v2696 = vstv %s2695
        %v2697 = vmul.f32 %v2696, %v2453
        %v2698 = vmul.f32 %v2696, %v2454
        %2701 = vrot.lane.b32.xlu0 %v2697, 127
        %v2702 = vpop.permute.xlu0 %2701
        %2703 = vrot.lane.b32.xlu0 %v2698, 127
        %v2704 = vpop.permute.xlu0 %2703
        %v2707 = vadd.f32 %v2627, %v2702
        %v2708 = vadd.f32 %v2628, %v2704
        %s2709 = sld [smem:[#allocation3 + $0x1f0]]
        %v2710 = vstv %s2709
        %v2711 = vmul.f32 %v2710, %v2453
        %v2712 = vmul.f32 %v2710, %v2454
        %2715 = vrot.lane.b32.xlu0 %v2711, 127
        %v2716 = vpop.permute.xlu0 %2715
        %2717 = vrot.lane.b32.xlu0 %v2712, 127
        %v2718 = vpop.permute.xlu0 %2717
        %v2721 = vadd.f32 %v2633, %v2716
        %v2722 = vadd.f32 %v2634, %v2718
        %s2723 = sld [smem:[#allocation3 + $0x1f4]]
        %v2724 = vstv %s2723
        %v2725 = vmul.f32 %v2724, %v2453
        %v2726 = vmul.f32 %v2724, %v2454
        %2729 = vrot.lane.b32.xlu0 %v2725, 127
        %v2730 = vpop.permute.xlu0 %2729
        %2731 = vrot.lane.b32.xlu0 %v2726, 127
        %v2732 = vpop.permute.xlu0 %2731
        %v2735 = vadd.f32 %v2639, %v2730
        %v2736 = vadd.f32 %v2640, %v2732
        %s2737 = sld [smem:[#allocation3 + $0x1f8]]
        %v2738 = vstv %s2737
        %v2739 = vmul.f32 %v2738, %v2453
        %v2740 = vmul.f32 %v2738, %v2454
        %2743 = vrot.lane.b32.xlu0 %v2739, 127
        %v2744 = vpop.permute.xlu0 %2743
        %2745 = vrot.lane.b32.xlu0 %v2740, 127
        %v2746 = vpop.permute.xlu0 %2745
        %v2749 = vadd.f32 %v2645, %v2744
        %v2750 = vadd.f32 %v2646, %v2746
        %s2751 = sld [smem:[#allocation3 + $0x1fc]]
        %v2752 = vstv %s2751
        %v2753 = vmul.f32 %v2752, %v2453
        %v2754 = vmul.f32 %v2752, %v2454
        %2757 = vrot.lane.b32.xlu0 %v2753, 127
        %v2758 = vpop.permute.xlu0 %2757
        %2759 = vrot.lane.b32.xlu0 %v2754, 127
        %v2760 = vpop.permute.xlu0 %2759
        %v2763 = vadd.f32 %v2651, %v2758
        %v2764 = vadd.f32 %v2652, %v2760
        %s2765 = sld [smem:[#allocation3 + $0x1e1]]
        %v2766 = vstv %s2765
        %v2767 = vmul.f32 %v2766, %v2503
        %v2768 = vmul.f32 %v2766, %v2504
        %2771 = vrot.lane.b32.xlu0 %v2767, 127
        %v2772 = vpop.permute.xlu0 %2771
        %2773 = vrot.lane.b32.xlu0 %v2768, 127
        %v2774 = vpop.permute.xlu0 %2773
        %v2777 = vadd.f32 %v2665, %v2772
        %v2778 = vadd.f32 %v2666, %v2774
        %s2779 = sld [smem:[#allocation3 + $0x1e5]]
        %v2780 = vstv %s2779
        %v2781 = vmul.f32 %v2780, %v2503
        %v2782 = vmul.f32 %v2780, %v2504
        %2785 = vrot.lane.b32.xlu0 %v2781, 127
        %v2786 = vpop.permute.xlu0 %2785
        %2787 = vrot.lane.b32.xlu0 %v2782, 127
        %v2788 = vpop.permute.xlu0 %2787
        %v2791 = vadd.f32 %v2679, %v2786
        %v2792 = vadd.f32 %v2680, %v2788
        %s2793 = sld [smem:[#allocation3 + $0x1e9]]
        %v2794 = vstv %s2793
        %v2795 = vmul.f32 %v2794, %v2503
        %v2796 = vmul.f32 %v2794, %v2504
        %2799 = vrot.lane.b32.xlu0 %v2795, 127
        %v2800 = vpop.permute.xlu0 %2799
        %2801 = vrot.lane.b32.xlu0 %v2796, 127
        %v2802 = vpop.permute.xlu0 %2801
        %v2805 = vadd.f32 %v2693, %v2800
        %v2806 = vadd.f32 %v2694, %v2802
        %s2807 = sld [smem:[#allocation3 + $0x1ed]]
        %v2808 = vstv %s2807
        %v2809 = vmul.f32 %v2808, %v2503
        %v2810 = vmul.f32 %v2808, %v2504
        %2813 = vrot.lane.b32.xlu0 %v2809, 127
        %v2814 = vpop.permute.xlu0 %2813
        %2815 = vrot.lane.b32.xlu0 %v2810, 127
        %v2816 = vpop.permute.xlu0 %2815
        %v2819 = vadd.f32 %v2707, %v2814
        %v2820 = vadd.f32 %v2708, %v2816
        %s2821 = sld [smem:[#allocation3 + $0x1f1]]
        %v2822 = vstv %s2821
        %v2823 = vmul.f32 %v2822, %v2503
        %v2824 = vmul.f32 %v2822, %v2504
        %2827 = vrot.lane.b32.xlu0 %v2823, 127
        %v2828 = vpop.permute.xlu0 %2827
        %2829 = vrot.lane.b32.xlu0 %v2824, 127
        %v2830 = vpop.permute.xlu0 %2829
        %v2833 = vadd.f32 %v2721, %v2828
        %v2834 = vadd.f32 %v2722, %v2830
        %s2835 = sld [smem:[#allocation3 + $0x1f5]]
        %v2836 = vstv %s2835
        %v2837 = vmul.f32 %v2836, %v2503
        %v2838 = vmul.f32 %v2836, %v2504
        %2841 = vrot.lane.b32.xlu0 %v2837, 127
        %v2842 = vpop.permute.xlu0 %2841
        %2843 = vrot.lane.b32.xlu0 %v2838, 127
        %v2844 = vpop.permute.xlu0 %2843
        %v2847 = vadd.f32 %v2735, %v2842
        %v2848 = vadd.f32 %v2736, %v2844
        %s2849 = sld [smem:[#allocation3 + $0x1f9]]
        %v2850 = vstv %s2849
        %v2851 = vmul.f32 %v2850, %v2503
        %v2852 = vmul.f32 %v2850, %v2504
        %2855 = vrot.lane.b32.xlu0 %v2851, 127
        %v2856 = vpop.permute.xlu0 %2855
        %2857 = vrot.lane.b32.xlu0 %v2852, 127
        %v2858 = vpop.permute.xlu0 %2857
        %v2861 = vadd.f32 %v2749, %v2856
        %v2862 = vadd.f32 %v2750, %v2858
        %s2863 = sld [smem:[#allocation3 + $0x1fd]]
        %v2864 = vstv %s2863
        %v2865 = vmul.f32 %v2864, %v2503
        %v2866 = vmul.f32 %v2864, %v2504
        %2869 = vrot.lane.b32.xlu0 %v2865, 127
        %v2870 = vpop.permute.xlu0 %2869
        %2871 = vrot.lane.b32.xlu0 %v2866, 127
        %v2872 = vpop.permute.xlu0 %2871
        %v2875 = vadd.f32 %v2763, %v2870
        %v2876 = vadd.f32 %v2764, %v2872
        %s2877 = sld [smem:[#allocation3 + $0x1e2]]
        %v2878 = vstv %s2877
        %v2879 = vmul.f32 %v2878, %v2553
        %v2880 = vmul.f32 %v2878, %v2554
        %2883 = vrot.lane.b32.xlu0 %v2879, 127
        %v2884 = vpop.permute.xlu0 %2883
        %2885 = vrot.lane.b32.xlu0 %v2880, 127
        %v2886 = vpop.permute.xlu0 %2885
        %v2889 = vadd.f32 %v2777, %v2884
        %v2890 = vadd.f32 %v2778, %v2886
        %s2891 = sld [smem:[#allocation3 + $0x1e6]]
        %v2892 = vstv %s2891
        %v2893 = vmul.f32 %v2892, %v2553
        %v2894 = vmul.f32 %v2892, %v2554
        %2897 = vrot.lane.b32.xlu0 %v2893, 127
        %v2898 = vpop.permute.xlu0 %2897
        %2899 = vrot.lane.b32.xlu0 %v2894, 127
        %v2900 = vpop.permute.xlu0 %2899
        %v2903 = vadd.f32 %v2791, %v2898
        %v2904 = vadd.f32 %v2792, %v2900
        %s2905 = sld [smem:[#allocation3 + $0x1ea]]
        %v2906 = vstv %s2905
        %v2907 = vmul.f32 %v2906, %v2553
        %v2908 = vmul.f32 %v2906, %v2554
        %2911 = vrot.lane.b32.xlu0 %v2907, 127
        %v2912 = vpop.permute.xlu0 %2911
        %2913 = vrot.lane.b32.xlu0 %v2908, 127
        %v2914 = vpop.permute.xlu0 %2913
        %v2917 = vadd.f32 %v2805, %v2912
        %v2918 = vadd.f32 %v2806, %v2914
        %s2919 = sld [smem:[#allocation3 + $0x1ee]]
        %v2920 = vstv %s2919
        %v2921 = vmul.f32 %v2920, %v2553
        %v2922 = vmul.f32 %v2920, %v2554
        %2925 = vrot.lane.b32.xlu0 %v2921, 127
        %v2926 = vpop.permute.xlu0 %2925
        %2927 = vrot.lane.b32.xlu0 %v2922, 127
        %v2928 = vpop.permute.xlu0 %2927
        %v2931 = vadd.f32 %v2819, %v2926
        %v2932 = vadd.f32 %v2820, %v2928
        %s2933 = sld [smem:[#allocation3 + $0x1f2]]
        %v2934 = vstv %s2933
        %v2935 = vmul.f32 %v2934, %v2553
        %v2936 = vmul.f32 %v2934, %v2554
        %2939 = vrot.lane.b32.xlu0 %v2935, 127
        %v2940 = vpop.permute.xlu0 %2939
        %2941 = vrot.lane.b32.xlu0 %v2936, 127
        %v2942 = vpop.permute.xlu0 %2941
        %v2945 = vadd.f32 %v2833, %v2940
        %v2946 = vadd.f32 %v2834, %v2942
        %s2947 = sld [smem:[#allocation3 + $0x1f6]]
        %v2948 = vstv %s2947
        %v2949 = vmul.f32 %v2948, %v2553
        %v2950 = vmul.f32 %v2948, %v2554
        %2953 = vrot.lane.b32.xlu0 %v2949, 127
        %v2954 = vpop.permute.xlu0 %2953
        %2955 = vrot.lane.b32.xlu0 %v2950, 127
        %v2956 = vpop.permute.xlu0 %2955
        %v2959 = vadd.f32 %v2847, %v2954
        %v2960 = vadd.f32 %v2848, %v2956
        %s2961 = sld [smem:[#allocation3 + $0x1fa]]
        %v2962 = vstv %s2961
        %v2963 = vmul.f32 %v2962, %v2553
        %v2964 = vmul.f32 %v2962, %v2554
        %2967 = vrot.lane.b32.xlu0 %v2963, 127
        %v2968 = vpop.permute.xlu0 %2967
        %2969 = vrot.lane.b32.xlu0 %v2964, 127
        %v2970 = vpop.permute.xlu0 %2969
        %v2973 = vadd.f32 %v2861, %v2968
        %v2974 = vadd.f32 %v2862, %v2970
        %s2975 = sld [smem:[#allocation3 + $0x1fe]]
        %v2976 = vstv %s2975
        %v2977 = vmul.f32 %v2976, %v2553
        %v2978 = vmul.f32 %v2976, %v2554
        %2981 = vrot.lane.b32.xlu0 %v2977, 127
        %v2982 = vpop.permute.xlu0 %2981
        %2983 = vrot.lane.b32.xlu0 %v2978, 127
        %v2984 = vpop.permute.xlu0 %2983
        %v2987 = vadd.f32 %v2875, %v2982
        %v2988 = vadd.f32 %v2876, %v2984
        %s2989 = sld [smem:[#allocation3 + $0x1e3]]
        %v2990 = vstv %s2989
        %v2991 = vmul.f32 %v2990, %v2603
        %v2992 = vmul.f32 %v2990, %v2604
        %2995 = vrot.lane.b32.xlu0 %v2991, 127
        %v2996 = vpop.permute.xlu0 %2995
        %2997 = vrot.lane.b32.xlu0 %v2992, 127
        %v2998 = vpop.permute.xlu0 %2997
        %v3001 = vadd.f32 %v2889, %v2996
        %v3002 = vadd.f32 %v2890, %v2998
        %s3003 = sld [smem:[#allocation3 + $0x1e7]]
        %v3004 = vstv %s3003
        %v3005 = vmul.f32 %v3004, %v2603
        %v3006 = vmul.f32 %v3004, %v2604
        %3009 = vrot.lane.b32.xlu0 %v3005, 127
        %v3010 = vpop.permute.xlu0 %3009
        %3011 = vrot.lane.b32.xlu0 %v3006, 127
        %v3012 = vpop.permute.xlu0 %3011
        %v3015 = vadd.f32 %v2903, %v3010
        %v3016 = vadd.f32 %v2904, %v3012
        %s3017 = sld [smem:[#allocation3 + $0x1eb]]
        %v3018 = vstv %s3017
        %v3019 = vmul.f32 %v3018, %v2603
        %v3020 = vmul.f32 %v3018, %v2604
        %3023 = vrot.lane.b32.xlu0 %v3019, 127
        %v3024 = vpop.permute.xlu0 %3023
        %3025 = vrot.lane.b32.xlu0 %v3020, 127
        %v3026 = vpop.permute.xlu0 %3025
        %v3029 = vadd.f32 %v2917, %v3024
        %v3030 = vadd.f32 %v2918, %v3026
        %s3031 = sld [smem:[#allocation3 + $0x1ef]]
        %v3032 = vstv %s3031
        %v3033 = vmul.f32 %v3032, %v2603
        %v3034 = vmul.f32 %v3032, %v2604
        %3037 = vrot.lane.b32.xlu0 %v3033, 127
        %v3038 = vpop.permute.xlu0 %3037
        %3039 = vrot.lane.b32.xlu0 %v3034, 127
        %v3040 = vpop.permute.xlu0 %3039
        %v3043 = vadd.f32 %v2931, %v3038
        %v3044 = vadd.f32 %v2932, %v3040
        %s3045 = sld [smem:[#allocation3 + $0x1f3]]
        %v3046 = vstv %s3045
        %v3047 = vmul.f32 %v3046, %v2603
        %v3048 = vmul.f32 %v3046, %v2604
        %3051 = vrot.lane.b32.xlu0 %v3047, 127
        %v3052 = vpop.permute.xlu0 %3051
        %3053 = vrot.lane.b32.xlu0 %v3048, 127
        %v3054 = vpop.permute.xlu0 %3053
        %v3057 = vadd.f32 %v2945, %v3052
        %v3058 = vadd.f32 %v2946, %v3054
        %s3059 = sld [smem:[#allocation3 + $0x1f7]]
        %v3060 = vstv %s3059
        %v3061 = vmul.f32 %v3060, %v2603
        %v3062 = vmul.f32 %v3060, %v2604
        %3065 = vrot.lane.b32.xlu0 %v3061, 127
        %v3066 = vpop.permute.xlu0 %3065
        %3067 = vrot.lane.b32.xlu0 %v3062, 127
        %v3068 = vpop.permute.xlu0 %3067
        %v3071 = vadd.f32 %v2959, %v3066
        %v3072 = vadd.f32 %v2960, %v3068
        %s3073 = sld [smem:[#allocation3 + $0x1fb]]
        %v3074 = vstv %s3073
        %v3075 = vmul.f32 %v3074, %v2603
        %v3076 = vmul.f32 %v3074, %v2604
        %3079 = vrot.lane.b32.xlu0 %v3075, 127
        %v3080 = vpop.permute.xlu0 %3079
        %3081 = vrot.lane.b32.xlu0 %v3076, 127
        %v3082 = vpop.permute.xlu0 %3081
        %v3085 = vadd.f32 %v2973, %v3080
        %v3086 = vadd.f32 %v2974, %v3082
        %s3087 = sld [smem:[#allocation3 + $0x1ff]]
        %v3088 = vstv %s3087
        %v3089 = vmul.f32 %v3088, %v2603
        %v3090 = vmul.f32 %v3088, %v2604
        %3093 = vrot.lane.b32.xlu0 %v3089, 127
        %v3094 = vpop.permute.xlu0 %3093
        %3095 = vrot.lane.b32.xlu0 %v3090, 127
        %v3096 = vpop.permute.xlu0 %3095
        %v3099 = vadd.f32 %v2987, %v3094
        %v3100 = vadd.f32 %v2988, %v3096
        %s3101 = sld [smem:[#allocation2]]
        %vm3102 = vcmp.ge.f32.partialorder %v3001, 0.0
        %vm3103 = vcmp.ge.f32.partialorder %v3002, 0.0
        %v3104 = vstv %s3101
        %v3105 = vmul.f32 %v3104, %v3001
        %v3106 = vmul.f32 %v3104, %v3002
        %v3107 = vsel %vm3102, %v3001, %v3105
        %v3108 = vsel %vm3103, %v3002, %v3106
        %s3109 = scalar_lea.vmem %s225, 384
        %3110 = vst.msk [vmem:[%s3109] sm:$0xff] %vm453, %v3107
        %3111 = vst.msk [vmem:[%s3109 + $0x8] sm:$0xff] %vm453, %v3108
        %s3112 = sld [smem:[#allocation2]]
        %vm3113 = vcmp.ge.f32.partialorder %v3015, 0.0
        %vm3114 = vcmp.ge.f32.partialorder %v3016, 0.0
        %v3115 = vstv %s3112
        %v3116 = vmul.f32 %v3115, %v3015
        %v3117 = vmul.f32 %v3115, %v3016
        %v3118 = vsel %vm3113, %v3015, %v3116
        %v3119 = vsel %vm3114, %v3016, %v3117
        %s3120 = scalar_lea.vmem %s225, 400
        %3121 = vst.msk [vmem:[%s3120] sm:$0xff] %vm453, %v3118
        %3122 = vst.msk [vmem:[%s3120 + $0x8] sm:$0xff] %vm453, %v3119
        %s3123 = sld [smem:[#allocation2]]
        %vm3124 = vcmp.ge.f32.partialorder %v3029, 0.0
        %vm3125 = vcmp.ge.f32.partialorder %v3030, 0.0
        %v3126 = vstv %s3123
        %v3127 = vmul.f32 %v3126, %v3029
        %v3128 = vmul.f32 %v3126, %v3030
        %v3129 = vsel %vm3124, %v3029, %v3127
        %v3130 = vsel %vm3125, %v3030, %v3128
        %s3131 = scalar_lea.vmem %s225, 416
        %3132 = vst.msk [vmem:[%s3131] sm:$0xff] %vm453, %v3129
        %3133 = vst.msk [vmem:[%s3131 + $0x8] sm:$0xff] %vm453, %v3130
        %s3134 = sld [smem:[#allocation2]]
        %vm3135 = vcmp.ge.f32.partialorder %v3043, 0.0
        %vm3136 = vcmp.ge.f32.partialorder %v3044, 0.0
        %v3137 = vstv %s3134
        %v3138 = vmul.f32 %v3137, %v3043
        %v3139 = vmul.f32 %v3137, %v3044
        %v3140 = vsel %vm3135, %v3043, %v3138
        %v3141 = vsel %vm3136, %v3044, %v3139
        %s3142 = scalar_lea.vmem %s225, 432
        %3143 = vst.msk [vmem:[%s3142] sm:$0xff] %vm453, %v3140
        %3144 = vst.msk [vmem:[%s3142 + $0x8] sm:$0xff] %vm453, %v3141
        %s3145 = sld [smem:[#allocation2]]
        %vm3146 = vcmp.ge.f32.partialorder %v3057, 0.0
        %vm3147 = vcmp.ge.f32.partialorder %v3058, 0.0
        %v3148 = vstv %s3145
        %v3149 = vmul.f32 %v3148, %v3057
        %v3150 = vmul.f32 %v3148, %v3058
        %v3151 = vsel %vm3146, %v3057, %v3149
        %v3152 = vsel %vm3147, %v3058, %v3150
        %s3153 = scalar_lea.vmem %s225, 448
        %3154 = vst.msk [vmem:[%s3153] sm:$0xff] %vm453, %v3151
        %3155 = vst.msk [vmem:[%s3153 + $0x8] sm:$0xff] %vm453, %v3152
        %s3156 = sld [smem:[#allocation2]]
        %vm3157 = vcmp.ge.f32.partialorder %v3071, 0.0
        %vm3158 = vcmp.ge.f32.partialorder %v3072, 0.0
        %v3159 = vstv %s3156
        %v3160 = vmul.f32 %v3159, %v3071
        %v3161 = vmul.f32 %v3159, %v3072
        %v3162 = vsel %vm3157, %v3071, %v3160
        %v3163 = vsel %vm3158, %v3072, %v3161
        %s3164 = scalar_lea.vmem %s225, 464
        %3165 = vst.msk [vmem:[%s3164] sm:$0xff] %vm453, %v3162
        %3166 = vst.msk [vmem:[%s3164 + $0x8] sm:$0xff] %vm453, %v3163
        %s3167 = sld [smem:[#allocation2]]
        %vm3168 = vcmp.ge.f32.partialorder %v3085, 0.0
        %vm3169 = vcmp.ge.f32.partialorder %v3086, 0.0
        %v3170 = vstv %s3167
        %v3171 = vmul.f32 %v3170, %v3085
        %v3172 = vmul.f32 %v3170, %v3086
        %v3173 = vsel %vm3168, %v3085, %v3171
        %v3174 = vsel %vm3169, %v3086, %v3172
        %s3175 = scalar_lea.vmem %s225, 480
        %3176 = vst.msk [vmem:[%s3175] sm:$0xff] %vm453, %v3173
        %3177 = vst.msk [vmem:[%s3175 + $0x8] sm:$0xff] %vm453, %v3174
        %s3178 = sld [smem:[#allocation2]]
        %vm3179 = vcmp.ge.f32.partialorder %v3099, 0.0
        %vm3180 = vcmp.ge.f32.partialorder %v3100, 0.0
        %v3181 = vstv %s3178
        %v3182 = vmul.f32 %v3181, %v3099
        %v3183 = vmul.f32 %v3181, %v3100
        %v3184 = vsel %vm3179, %v3099, %v3182
        %v3185 = vsel %vm3180, %v3100, %v3183
        %s3186 = scalar_lea.vmem %s225, 496
        %3187 = vst.msk [vmem:[%s3186] sm:$0xff] %vm453, %v3184
        %3188 = vst.msk [vmem:[%s3186 + $0x8] sm:$0xff] %vm453, %v3185
        %p3189 = scmp.lt.s32.totalorder %s18, 1
        %s3190 = scalar_select %p3189, %s18, 1
        %s3191 = smul.addr %s3190, 64
        %s3192 = smul.addr %s3191, 8
        %s3193 = scalar_lea.vmem %s4, %s3192
        // Predicated region
        $region45: #{trans_conv_prelu.1} parent=35 // pred_check
          %p3194 = pneg %p125
        $region46: #{trans_conv_prelu.1} parent=35 // pred_check_branch
          %3196 = sbr.rel (%p3194) target = $region48
        $region47: #{trans_conv_prelu.1} parent=35 // pred_region
          _
        $region48: #{trans_conv_prelu.1} parent=35 // pred_fallthru
          _
      $region36: #{trans_conv_prelu.1} parent=5 // pred_fallthru
        _
      %p3197 = scmp.le.s32.totalorder 2, %s13
      // Predicated region
      $region49: #{trans_conv_prelu.1} parent=5 // pred_check
        %p3198 = pneg %p3197
      $region50: #{trans_conv_prelu.1} parent=5 // pred_check_branch
        %3200 = sbr.rel (%p3198) target = $region52
      $region51: #{trans_conv_prelu.1} parent=5 // pred_region
        %s3201 = ssub.s32 %s13, 2
        // Predicated region
        $region53: #{trans_conv_prelu.1} parent=51 // pred_check
          %p3202 = pneg %p131
        $region54: #{trans_conv_prelu.1} parent=51 // pred_check_branch
          %3204 = sbr.rel (%p3202) target = $region56
        $region55: #{trans_conv_prelu.1} parent=51 // pred_region
          %p3205 = scmp.lt.s32.totalorder %s19, 1
          %s3206 = scalar_select %p3205, %s19, 1
          %s3207 = smul.addr %s3206, 64
          %s3208 = smul.addr %s3207, 8
          %s3209 = scalar_lea.vmem %s4, %s3208
        $region56: #{trans_conv_prelu.1} parent=51 // pred_fallthru
          _
      $region52: #{trans_conv_prelu.1} parent=5 // pred_fallthru
        _
    $region6: #{trans_conv_prelu.1} parent=1 // loop_footer
      %s17 = sadd.s32 1, %s13
    $region7: #{trans_conv_prelu.1} parent=1 // loop_footer_branch
      %12 = sbr.rel target = $region3
    $region8: #{trans_conv_prelu.1} parent=1 // loop_exit
      _
    %3210 = vsyncpa [#allocation4], 1
    %s3211 = scalar_lea.sflag [#allocation4], 1
    %3212 = vsyncpa %s3211, 1
    %3213 = vsyncpa [#allocation6], 1

</llo_original>
